<compile_context>
chip_gen: v7x
topology: tpu7x:2x2x1
jax: 0.10.0
libtpu: 0.0.40
codegen_flags: <defaults>
</compile_context>

<pallas_src>
import functools

import jax
import jax.numpy as jnp
from jax import lax
from jax.experimental import pallas as pl
from jax.experimental.pallas import tpu as pltpu


# ----------------------------- Pallas kernel ------------------------------- #
def _glu_conv_kernel(x_ref, w_ref, sel_ref, b_ref, o_ref, *, ho, stride_rows):
    """Fused GLU conv (both branches + gate) for one image.

    x_ref   : (1, H*Cin, W)        activation rows ordered (h major, c minor)
    w_ref   : (KW, 2*Cout, KH*Cin) conv1/conv2 weights stacked, per kernel col
    sel_ref : (KW, W, Wo)          0/1 column-selection matrices (stride handling)
    b_ref   : (2*Cout, 1)          conv1/conv2 biases stacked
    o_ref   : (1, Cout, Ho*Wo)     gated output -> NCHW slab for this image
    """
    kw = w_ref.shape[0]
    slab = w_ref.shape[2]                     # KH * Cin rows per output row
    wo = sel_ref.shape[2]
    cout = o_ref.shape[1]

    bias = b_ref[...]                         # (2*Cout, 1), lane-broadcasts
    w_k = [w_ref[kj] for kj in range(kw)]     # hoisted grid-invariant loads
    sel_k = [sel_ref[kj] for kj in range(kw)]

    # TODO(synk): for large Ho switch this static unroll to lax.fori_loop with a
    # dynamic pl.ds sublane slice (and a row-blocked grid) to bound code size.
    for oh in range(ho):
        r0 = oh * stride_rows                                    # static offset
        x_slab = x_ref[0, r0:r0 + slab, :]                       # (KH*Cin, W)

        acc = jnp.zeros((2 * cout, wo), dtype=jnp.float32)
        for kj in range(kw):
            # Stride-s column selection done as a matmul (MXU, compute is free).
            x_sel = jnp.dot(x_slab, sel_k[kj],
                            preferred_element_type=jnp.float32)  # (KH*Cin, Wo)
            acc = acc + jnp.dot(w_k[kj], x_sel,
                                preferred_element_type=jnp.float32)  # (2Cout, Wo)
        acc = acc + bias

        lin = acc[:cout, :]                    # conv1 branch
        g = acc[cout:, :]                      # conv2 branch (pre-sigmoid)
        # Exact, numerically stable sigmoid: exp argument is always <= 0.
        z = jnp.exp(-jnp.abs(g))
        gate = jnp.where(g >= 0, 1.0, z) / (1.0 + z)

        o_ref[0, :, oh * wo:(oh + 1) * wo] = (lin * gate).astype(o_ref.dtype)


# ------------------------------ JAX wrapper -------------------------------- #
@functools.partial(jax.jit, static_argnames=("stride",))
def glu_conv2d(x_nchw, w1, b1, w2, b2, *, stride):
    """Forward pass of GluConv2d. x_nchw: (N, Cin, H, W); weights PyTorch OIHW."""
    cout, cin, kh, kw_ = w1.shape
    n, _, h, w = x_nchw.shape
    ho = (h - kh) // stride + 1
    wo = (w - kw_) // stride + 1

    # Activation: (N, Cin, H, W) -> (N, H*Cin, W), rows ordered (h major, c minor).
    # This single fused transpose+reshape is the only wrapper-side data movement;
    # it lets the kernel use plain contiguous sublane slices for every window.
    # TODO(synk): remove it by reading the raw NCHW tensor with stride-H sublane
    # slices (pl.ds(..., stride=H)) once strided sublane loads are validated.
    x_rows = jnp.transpose(x_nchw, (0, 2, 1, 3)).reshape(n, h * cin, w)

    # Both conv branches stacked: (2*Cout, Cin, KH, KW) -> (KW, 2*Cout, KH*Cin)
    # with the contraction dim ordered (ki major, c minor) to match x_rows.
    w_cat = jnp.concatenate([w1, w2], axis=0)
    w_gemm = jnp.transpose(w_cat, (3, 0, 2, 1)).reshape(kw_, 2 * cout, kh * cin)
    b_cat = jnp.concatenate([b1, b2]).reshape(2 * cout, 1)

    # 0/1 column-selection matrices: sel[kj, w, ow] = (w == ow*stride + kj).
    w_idx = jnp.arange(w)[None, :, None]
    ow_idx = jnp.arange(wo)[None, None, :]
    kj_idx = jnp.arange(kw_)[:, None, None]
    sel = (w_idx == ow_idx * stride + kj_idx).astype(jnp.float32)

    kernel = functools.partial(_glu_conv_kernel, ho=ho, stride_rows=stride * cin)

    # Tight VMEM budget derived from the actual blocks (double-buffer margin).
    block_bytes = 4 * (h * cin * w + kw_ * 2 * cout * kh * cin
                       + kw_ * w * wo + 2 * cout + cout * ho * wo)
    vmem_limit = int(min(128 * 1024 * 1024,
                         max(8 * 1024 * 1024, 4 * block_bytes + 2 * 1024 * 1024)))

    flops_per_img = (2 * ho * kw_ * (kh * cin * w * wo + 2 * cout * kh * cin * wo)
                     + 8 * cout * ho * wo)
    cost = pl.CostEstimate(
        flops=n * flops_per_img,
        transcendentals=n * cout * ho * wo,
        bytes_accessed=4 * (n * h * cin * w + kw_ * 2 * cout * kh * cin
                            + kw_ * w * wo + 2 * cout + n * cout * ho * wo),
    )

    out_flat = pl.pallas_call(
        kernel,
        out_shape=jax.ShapeDtypeStruct((n, cout, ho * wo), jnp.float32),
        grid=(n,),
        in_specs=[
            # One image per grid step (re-used without re-DMA across steps with
            # equal block index; double-buffered across images).
            pl.BlockSpec((1, h * cin, w), lambda i: (i, 0, 0)),
            # Grid-invariant parameters: resident in VMEM, single-buffered.
            pl.BlockSpec((kw_, 2 * cout, kh * cin), lambda i: (0, 0, 0),
                         pipeline_mode=pl.Buffered(1)),
            pl.BlockSpec((kw_, w, wo), lambda i: (0, 0, 0),
                         pipeline_mode=pl.Buffered(1)),
            pl.BlockSpec((2 * cout, 1), lambda i: (0, 0),
                         pipeline_mode=pl.Buffered(1)),
        ],
        out_specs=pl.BlockSpec((1, cout, ho * wo), lambda i: (i, 0, 0)),
        compiler_params=pltpu.CompilerParams(
            dimension_semantics=("parallel",),   # batch images across TCs (v7x)
            vmem_limit_bytes=vmem_limit,
        ),
        cost_estimate=cost,
    )(x_rows, w_gemm, sel, b_cat)

    # (N, Cout, Ho*Wo) is already NCHW element order -> free reshape, no copy.
    return out_flat.reshape(n, cout, ho, wo)


# ------------------------------- reference --------------------------------- #
def _reference(x_nchw, w1, b1, w2, b2, stride):
    dn = ("NCHW", "OIHW", "NCHW")

    def conv(wgt, b):
        return lax.conv_general_dilated(
            x_nchw, wgt, window_strides=(stride, stride), padding="VALID",
            dimension_numbers=dn) + b.reshape(1, -1, 1, 1)

    return conv(w1, b1) * jax.nn.sigmoid(conv(w2, b2))


# --------------------------------- main ------------------------------------ #
if __name__ == "__main__":
    key = jax.random.PRNGKey(0)
    kx, k1, k2, k3, k4 = jax.random.split(key, 5)

    # GluConv2d(in_channels=4, out_channels=8, kernel_size=3, stride=2)
    # on a (2, 4, 16, 16) NCHW input.
    N, Cin, H, W = 2, 4, 16, 16
    Cout, K, S = 8, 3, 2

    x = jax.random.normal(kx, (N, Cin, H, W), dtype=jnp.float32)
    # Deterministic parameter init (Kaiming-uniform-ish bound like nn.Conv2d).
    fan_in = Cin * K * K
    bound = 1.0 / (fan_in ** 0.5)
    w1 = jax.random.uniform(k1, (Cout, Cin, K, K), jnp.float32, -bound, bound)
    b1 = jax.random.uniform(k2, (Cout,), jnp.float32, -bound, bound)
    w2 = jax.random.uniform(k3, (Cout, Cin, K, K), jnp.float32, -bound, bound)
    b2 = jax.random.uniform(k4, (Cout,), jnp.float32, -bound, bound)

    out = jax.block_until_ready(glu_conv2d(x, w1, b1, w2, b2, stride=S))

    ref = _reference(x, w1, b1, w2, b2, S)
    assert out.shape == ref.shape, (out.shape, ref.shape)
    err = float(jnp.max(jnp.abs(out - ref)))
    # Sigmoid is exact now; the tolerance only covers MXU multi-pass f32
    # rounding in the Pallas dots and in the XLA reference conv (observed error
    # is far smaller in practice).
    assert jnp.allclose(out, ref, atol=2e-3, rtol=2e-3), err
    print("KERNEL_OK")
</pallas_src>

<mosaic_0001>
module attributes {stable_mosaic.version = 11 : i64} {
  func.func @_glu_conv_kernel(%arg0: i32, %arg1: memref<1x64x16xf32, #tpu.memory_space<vmem>>, %arg2: memref<3x16x12xf32, #tpu.memory_space<vmem>>, %arg3: memref<3x16x7xf32, #tpu.memory_space<vmem>>, %arg4: memref<16x1xf32, #tpu.memory_space<vmem>>, %arg5: memref<1x8x49xf32, #tpu.memory_space<vmem>>) attributes {dimension_semantics = [#tpu.dimension_semantics<parallel>], iteration_bounds = array<i64: 2>, scalar_prefetch = 0 : i64, scratch_operands = 0 : i64, tpu.core_type = #tpu.core_type<tc>, window_params = [{transform_indices = @transform_0, window_bounds = array<i64: 1, 64, 16>}, {pipeline_mode = #tpu.pipeline_mode<synchronous>, transform_indices = @transform_1, window_bounds = array<i64: 3, 16, 12>}, {pipeline_mode = #tpu.pipeline_mode<synchronous>, transform_indices = @transform_2, window_bounds = array<i64: 3, 16, 7>}, {pipeline_mode = #tpu.pipeline_mode<synchronous>, transform_indices = @transform_3, window_bounds = array<i64: 16, 1>}, {transform_indices = @transform_4, window_bounds = array<i64: 1, 8, 49>}]} {
    %c0 = arith.constant 0 : index
    %c0_0 = arith.constant 0 : index
    %0 = vector.load %arg4[%c0, %c0_0] : memref<16x1xf32, #tpu.memory_space<vmem>>, vector<16x1xf32>
    %c0_1 = arith.constant 0 : index
    %c0_2 = arith.constant 0 : index
    %c0_3 = arith.constant 0 : index
    %1 = vector.load %arg2[%c0_1, %c0_2, %c0_3] : memref<3x16x12xf32, #tpu.memory_space<vmem>>, vector<1x16x12xf32>
    %2 = vector.shape_cast %1 : vector<1x16x12xf32> to vector<16x12xf32>
    %c1 = arith.constant 1 : index
    %c0_4 = arith.constant 0 : index
    %c0_5 = arith.constant 0 : index
    %3 = vector.load %arg2[%c1, %c0_4, %c0_5] : memref<3x16x12xf32, #tpu.memory_space<vmem>>, vector<1x16x12xf32>
    %4 = vector.shape_cast %3 : vector<1x16x12xf32> to vector<16x12xf32>
    %c2 = arith.constant 2 : index
    %c0_6 = arith.constant 0 : index
    %c0_7 = arith.constant 0 : index
    %5 = vector.load %arg2[%c2, %c0_6, %c0_7] : memref<3x16x12xf32, #tpu.memory_space<vmem>>, vector<1x16x12xf32>
    %6 = vector.shape_cast %5 : vector<1x16x12xf32> to vector<16x12xf32>
    %c0_8 = arith.constant 0 : index
    %c0_9 = arith.constant 0 : index
    %c0_10 = arith.constant 0 : index
    %7 = vector.load %arg3[%c0_8, %c0_9, %c0_10] : memref<3x16x7xf32, #tpu.memory_space<vmem>>, vector<1x16x7xf32>
    %8 = vector.shape_cast %7 : vector<1x16x7xf32> to vector<16x7xf32>
    %c1_11 = arith.constant 1 : index
    %c0_12 = arith.constant 0 : index
    %c0_13 = arith.constant 0 : index
    %9 = vector.load %arg3[%c1_11, %c0_12, %c0_13] : memref<3x16x7xf32, #tpu.memory_space<vmem>>, vector<1x16x7xf32>
    %10 = vector.shape_cast %9 : vector<1x16x7xf32> to vector<16x7xf32>
    %c2_14 = arith.constant 2 : index
    %c0_15 = arith.constant 0 : index
    %c0_16 = arith.constant 0 : index
    %11 = vector.load %arg3[%c2_14, %c0_15, %c0_16] : memref<3x16x7xf32, #tpu.memory_space<vmem>>, vector<1x16x7xf32>
    %12 = vector.shape_cast %11 : vector<1x16x7xf32> to vector<16x7xf32>
    %c0_17 = arith.constant 0 : index
    %c0_18 = arith.constant 0 : index
    %c0_19 = arith.constant 0 : index
    %13 = vector.load %arg1[%c0_17, %c0_18, %c0_19] : memref<1x64x16xf32, #tpu.memory_space<vmem>>, vector<1x12x16xf32>
    %14 = vector.shape_cast %13 : vector<1x12x16xf32> to vector<12x16xf32>
    %cst = arith.constant 0.000000e+00 : f32
    %15 = vector.broadcast %cst : f32 to vector<16x7xf32>
    %cst_20 = arith.constant dense<0.000000e+00> : vector<12x7xf32>
    %16 = tpu.matmul %14, %8, %cst_20 {dimension_numbers = #tpu.dot_dimension_numbers<[1], [0], [0], [1], [0, 0, 1, 1], [], []>} : vector<12x16xf32>, vector<16x7xf32>, vector<12x7xf32> -> vector<12x7xf32>
    %cst_21 = arith.constant dense<0.000000e+00> : vector<16x7xf32>
    %17 = tpu.matmul %2, %16, %cst_21 {dimension_numbers = #tpu.dot_dimension_numbers<[1], [0], [0], [1], [0, 0, 1, 1], [], []>} : vector<16x12xf32>, vector<12x7xf32>, vector<16x7xf32> -> vector<16x7xf32>
    %18 = arith.addf %15, %17 : vector<16x7xf32>
    %cst_22 = arith.constant dense<0.000000e+00> : vector<12x7xf32>
    %19 = tpu.matmul %14, %10, %cst_22 {dimension_numbers = #tpu.dot_dimension_numbers<[1], [0], [0], [1], [0, 0, 1, 1], [], []>} : vector<12x16xf32>, vector<16x7xf32>, vector<12x7xf32> -> vector<12x7xf32>
    %cst_23 = arith.constant dense<0.000000e+00> : vector<16x7xf32>
    %20 = tpu.matmul %4, %19, %cst_23 {dimension_numbers = #tpu.dot_dimension_numbers<[1], [0], [0], [1], [0, 0, 1, 1], [], []>} : vector<16x12xf32>, vector<12x7xf32>, vector<16x7xf32> -> vector<16x7xf32>
    %21 = arith.addf %18, %20 : vector<16x7xf32>
    %cst_24 = arith.constant dense<0.000000e+00> : vector<12x7xf32>
    %22 = tpu.matmul %14, %12, %cst_24 {dimension_numbers = #tpu.dot_dimension_numbers<[1], [0], [0], [1], [0, 0, 1, 1], [], []>} : vector<12x16xf32>, vector<16x7xf32>, vector<12x7xf32> -> vector<12x7xf32>
    %cst_25 = arith.constant dense<0.000000e+00> : vector<16x7xf32>
    %23 = tpu.matmul %6, %22, %cst_25 {dimension_numbers = #tpu.dot_dimension_numbers<[1], [0], [0], [1], [0, 0, 1, 1], [], []>} : vector<16x12xf32>, vector<12x7xf32>, vector<16x7xf32> -> vector<16x7xf32>
    %24 = arith.addf %21, %23 : vector<16x7xf32>
    %25 = vector.broadcast %0 : vector<16x1xf32> to vector<16x7xf32>
    %26 = arith.addf %24, %25 : vector<16x7xf32>
    %27 = vector.extract_strided_slice %26 {offsets = [0, 0], sizes = [8, 7], strides = [1, 1]} : vector<16x7xf32> to vector<8x7xf32>
    %28 = vector.extract_strided_slice %26 {offsets = [8, 0], sizes = [8, 7], strides = [1, 1]} : vector<16x7xf32> to vector<8x7xf32>
    %29 = math.absf %28 : vector<8x7xf32>
    %cst_26 = arith.constant 0.000000e+00 : f32
    %30 = vector.broadcast %cst_26 : f32 to vector<8x7xf32>
    %31 = arith.subf %30, %29 : vector<8x7xf32>
    %32 = math.exp %31 : vector<8x7xf32>
    %cst_27 = arith.constant 0.000000e+00 : f32
    %33 = vector.broadcast %cst_27 : f32 to vector<8x7xf32>
    %34 = arith.cmpf oge, %28, %33 : vector<8x7xf32>
    %cst_28 = arith.constant 1.000000e+00 : f32
    %35 = vector.broadcast %cst_28 : f32 to vector<8x7xf32>
    %36 = arith.select %34, %35, %32 : vector<8x7xi1>, vector<8x7xf32>
    %cst_29 = arith.constant 1.000000e+00 : f32
    %37 = vector.broadcast %cst_29 : f32 to vector<8x7xf32>
    %38 = arith.addf %37, %32 : vector<8x7xf32>
    %39 = arith.divf %36, %38 : vector<8x7xf32>
    %40 = arith.mulf %27, %39 : vector<8x7xf32>
    %c0_30 = arith.constant 0 : index
    %c0_31 = arith.constant 0 : index
    %c0_32 = arith.constant 0 : index
    %41 = vector.load %arg5[%c0_30, %c0_31, %c0_32] : memref<1x8x49xf32, #tpu.memory_space<vmem>>, vector<1x8x7xf32>
    %42 = vector.shape_cast %41 : vector<1x8x7xf32> to vector<8x7xf32>
    %43 = vector.shape_cast %40 : vector<8x7xf32> to vector<1x8x7xf32>
    tpu.vector_store %arg5[%c0_30, %c0_31, %c0_32], %43 {strides = array<i32>} : memref<1x8x49xf32, #tpu.memory_space<vmem>>, vector<1x8x7xf32>,
    %c0_33 = arith.constant 0 : index
    %c8 = arith.constant 8 : index
    %c0_34 = arith.constant 0 : index
    %44 = vector.load %arg1[%c0_33, %c8, %c0_34] : memref<1x64x16xf32, #tpu.memory_space<vmem>>, vector<1x12x16xf32>
    %45 = vector.shape_cast %44 : vector<1x12x16xf32> to vector<12x16xf32>
    %cst_35 = arith.constant 0.000000e+00 : f32
    %46 = vector.broadcast %cst_35 : f32 to vector<16x7xf32>
    %cst_36 = arith.constant dense<0.000000e+00> : vector<12x7xf32>
    %47 = tpu.matmul %45, %8, %cst_36 {dimension_numbers = #tpu.dot_dimension_numbers<[1], [0], [0], [1], [0, 0, 1, 1], [], []>} : vector<12x16xf32>, vector<16x7xf32>, vector<12x7xf32> -> vector<12x7xf32>
    %cst_37 = arith.constant dense<0.000000e+00> : vector<16x7xf32>
    %48 = tpu.matmul %2, %47, %cst_37 {dimension_numbers = #tpu.dot_dimension_numbers<[1], [0], [0], [1], [0, 0, 1, 1], [], []>} : vector<16x12xf32>, vector<12x7xf32>, vector<16x7xf32> -> vector<16x7xf32>
    %49 = arith.addf %46, %48 : vector<16x7xf32>
    %cst_38 = arith.constant dense<0.000000e+00> : vector<12x7xf32>
    %50 = tpu.matmul %45, %10, %cst_38 {dimension_numbers = #tpu.dot_dimension_numbers<[1], [0], [0], [1], [0, 0, 1, 1], [], []>} : vector<12x16xf32>, vector<16x7xf32>, vector<12x7xf32> -> vector<12x7xf32>
    %cst_39 = arith.constant dense<0.000000e+00> : vector<16x7xf32>
    %51 = tpu.matmul %4, %50, %cst_39 {dimension_numbers = #tpu.dot_dimension_numbers<[1], [0], [0], [1], [0, 0, 1, 1], [], []>} : vector<16x12xf32>, vector<12x7xf32>, vector<16x7xf32> -> vector<16x7xf32>
    %52 = arith.addf %49, %51 : vector<16x7xf32>
    %cst_40 = arith.constant dense<0.000000e+00> : vector<12x7xf32>
    %53 = tpu.matmul %45, %12, %cst_40 {dimension_numbers = #tpu.dot_dimension_numbers<[1], [0], [0], [1], [0, 0, 1, 1], [], []>} : vector<12x16xf32>, vector<16x7xf32>, vector<12x7xf32> -> vector<12x7xf32>
    %cst_41 = arith.constant dense<0.000000e+00> : vector<16x7xf32>
    %54 = tpu.matmul %6, %53, %cst_41 {dimension_numbers = #tpu.dot_dimension_numbers<[1], [0], [0], [1], [0, 0, 1, 1], [], []>} : vector<16x12xf32>, vector<12x7xf32>, vector<16x7xf32> -> vector<16x7xf32>
    %55 = arith.addf %52, %54 : vector<16x7xf32>
    %56 = vector.broadcast %0 : vector<16x1xf32> to vector<16x7xf32>
    %57 = arith.addf %55, %56 : vector<16x7xf32>
    %58 = vector.extract_strided_slice %57 {offsets = [0, 0], sizes = [8, 7], strides = [1, 1]} : vector<16x7xf32> to vector<8x7xf32>
    %59 = vector.extract_strided_slice %57 {offsets = [8, 0], sizes = [8, 7], strides = [1, 1]} : vector<16x7xf32> to vector<8x7xf32>
    %60 = math.absf %59 : vector<8x7xf32>
    %cst_42 = arith.constant 0.000000e+00 : f32
    %61 = vector.broadcast %cst_42 : f32 to vector<8x7xf32>
    %62 = arith.subf %61, %60 : vector<8x7xf32>
    %63 = math.exp %62 : vector<8x7xf32>
    %cst_43 = arith.constant 0.000000e+00 : f32
    %64 = vector.broadcast %cst_43 : f32 to vector<8x7xf32>
    %65 = arith.cmpf oge, %59, %64 : vector<8x7xf32>
    %cst_44 = arith.constant 1.000000e+00 : f32
    %66 = vector.broadcast %cst_44 : f32 to vector<8x7xf32>
    %67 = arith.select %65, %66, %63 : vector<8x7xi1>, vector<8x7xf32>
    %cst_45 = arith.constant 1.000000e+00 : f32
    %68 = vector.broadcast %cst_45 : f32 to vector<8x7xf32>
    %69 = arith.addf %68, %63 : vector<8x7xf32>
    %70 = arith.divf %67, %69 : vector<8x7xf32>
    %71 = arith.mulf %58, %70 : vector<8x7xf32>
    %c0_46 = arith.constant 0 : index
    %c0_47 = arith.constant 0 : index
    %c7 = arith.constant 7 : index
    %72 = vector.load %arg5[%c0_46, %c0_47, %c7] : memref<1x8x49xf32, #tpu.memory_space<vmem>>, vector<1x8x7xf32>
    %73 = vector.shape_cast %72 : vector<1x8x7xf32> to vector<8x7xf32>
    %74 = vector.shape_cast %71 : vector<8x7xf32> to vector<1x8x7xf32>
    tpu.vector_store %arg5[%c0_46, %c0_47, %c7], %74 {strides = array<i32>} : memref<1x8x49xf32, #tpu.memory_space<vmem>>, vector<1x8x7xf32>,
    %c0_48 = arith.constant 0 : index
    %c16 = arith.constant 16 : index
    %c0_49 = arith.constant 0 : index
    %75 = vector.load %arg1[%c0_48, %c16, %c0_49] : memref<1x64x16xf32, #tpu.memory_space<vmem>>, vector<1x12x16xf32>
    %76 = vector.shape_cast %75 : vector<1x12x16xf32> to vector<12x16xf32>
    %cst_50 = arith.constant 0.000000e+00 : f32
    %77 = vector.broadcast %cst_50 : f32 to vector<16x7xf32>
    %cst_51 = arith.constant dense<0.000000e+00> : vector<12x7xf32>
    %78 = tpu.matmul %76, %8, %cst_51 {dimension_numbers = #tpu.dot_dimension_numbers<[1], [0], [0], [1], [0, 0, 1, 1], [], []>} : vector<12x16xf32>, vector<16x7xf32>, vector<12x7xf32> -> vector<12x7xf32>
    %cst_52 = arith.constant dense<0.000000e+00> : vector<16x7xf32>
    %79 = tpu.matmul %2, %78, %cst_52 {dimension_numbers = #tpu.dot_dimension_numbers<[1], [0], [0], [1], [0, 0, 1, 1], [], []>} : vector<16x12xf32>, vector<12x7xf32>, vector<16x7xf32> -> vector<16x7xf32>
    %80 = arith.addf %77, %79 : vector<16x7xf32>
    %cst_53 = arith.constant dense<0.000000e+00> : vector<12x7xf32>
    %81 = tpu.matmul %76, %10, %cst_53 {dimension_numbers = #tpu.dot_dimension_numbers<[1], [0], [0], [1], [0, 0, 1, 1], [], []>} : vector<12x16xf32>, vector<16x7xf32>, vector<12x7xf32> -> vector<12x7xf32>
    %cst_54 = arith.constant dense<0.000000e+00> : vector<16x7xf32>
    %82 = tpu.matmul %4, %81, %cst_54 {dimension_numbers = #tpu.dot_dimension_numbers<[1], [0], [0], [1], [0, 0, 1, 1], [], []>} : vector<16x12xf32>, vector<12x7xf32>, vector<16x7xf32> -> vector<16x7xf32>
    %83 = arith.addf %80, %82 : vector<16x7xf32>
    %cst_55 = arith.constant dense<0.000000e+00> : vector<12x7xf32>
    %84 = tpu.matmul %76, %12, %cst_55 {dimension_numbers = #tpu.dot_dimension_numbers<[1], [0], [0], [1], [0, 0, 1, 1], [], []>} : vector<12x16xf32>, vector<16x7xf32>, vector<12x7xf32> -> vector<12x7xf32>
    %cst_56 = arith.constant dense<0.000000e+00> : vector<16x7xf32>
    %85 = tpu.matmul %6, %84, %cst_56 {dimension_numbers = #tpu.dot_dimension_numbers<[1], [0], [0], [1], [0, 0, 1, 1], [], []>} : vector<16x12xf32>, vector<12x7xf32>, vector<16x7xf32> -> vector<16x7xf32>
    %86 = arith.addf %83, %85 : vector<16x7xf32>
    %87 = vector.broadcast %0 : vector<16x1xf32> to vector<16x7xf32>
    %88 = arith.addf %86, %87 : vector<16x7xf32>
    %89 = vector.extract_strided_slice %88 {offsets = [0, 0], sizes = [8, 7], strides = [1, 1]} : vector<16x7xf32> to vector<8x7xf32>
    %90 = vector.extract_strided_slice %88 {offsets = [8, 0], sizes = [8, 7], strides = [1, 1]} : vector<16x7xf32> to vector<8x7xf32>
    %91 = math.absf %90 : vector<8x7xf32>
    %cst_57 = arith.constant 0.000000e+00 : f32
    %92 = vector.broadcast %cst_57 : f32 to vector<8x7xf32>
    %93 = arith.subf %92, %91 : vector<8x7xf32>
    %94 = math.exp %93 : vector<8x7xf32>
    %cst_58 = arith.constant 0.000000e+00 : f32
    %95 = vector.broadcast %cst_58 : f32 to vector<8x7xf32>
    %96 = arith.cmpf oge, %90, %95 : vector<8x7xf32>
    %cst_59 = arith.constant 1.000000e+00 : f32
    %97 = vector.broadcast %cst_59 : f32 to vector<8x7xf32>
    %98 = arith.select %96, %97, %94 : vector<8x7xi1>, vector<8x7xf32>
    %cst_60 = arith.constant 1.000000e+00 : f32
    %99 = vector.broadcast %cst_60 : f32 to vector<8x7xf32>
    %100 = arith.addf %99, %94 : vector<8x7xf32>
    %101 = arith.divf %98, %100 : vector<8x7xf32>
    %102 = arith.mulf %89, %101 : vector<8x7xf32>
    %c0_61 = arith.constant 0 : index
    %c0_62 = arith.constant 0 : index
    %c14 = arith.constant 14 : index
    %103 = vector.load %arg5[%c0_61, %c0_62, %c14] : memref<1x8x49xf32, #tpu.memory_space<vmem>>, vector<1x8x7xf32>
    %104 = vector.shape_cast %103 : vector<1x8x7xf32> to vector<8x7xf32>
    %105 = vector.shape_cast %102 : vector<8x7xf32> to vector<1x8x7xf32>
    tpu.vector_store %arg5[%c0_61, %c0_62, %c14], %105 {strides = array<i32>} : memref<1x8x49xf32, #tpu.memory_space<vmem>>, vector<1x8x7xf32>,
    %c0_63 = arith.constant 0 : index
    %c24 = arith.constant 24 : index
    %c0_64 = arith.constant 0 : index
    %106 = vector.load %arg1[%c0_63, %c24, %c0_64] : memref<1x64x16xf32, #tpu.memory_space<vmem>>, vector<1x12x16xf32>
    %107 = vector.shape_cast %106 : vector<1x12x16xf32> to vector<12x16xf32>
    %cst_65 = arith.constant 0.000000e+00 : f32
    %108 = vector.broadcast %cst_65 : f32 to vector<16x7xf32>
    %cst_66 = arith.constant dense<0.000000e+00> : vector<12x7xf32>
    %109 = tpu.matmul %107, %8, %cst_66 {dimension_numbers = #tpu.dot_dimension_numbers<[1], [0], [0], [1], [0, 0, 1, 1], [], []>} : vector<12x16xf32>, vector<16x7xf32>, vector<12x7xf32> -> vector<12x7xf32>
    %cst_67 = arith.constant dense<0.000000e+00> : vector<16x7xf32>
    %110 = tpu.matmul %2, %109, %cst_67 {dimension_numbers = #tpu.dot_dimension_numbers<[1], [0], [0], [1], [0, 0, 1, 1], [], []>} : vector<16x12xf32>, vector<12x7xf32>, vector<16x7xf32> -> vector<16x7xf32>
    %111 = arith.addf %108, %110 : vector<16x7xf32>
    %cst_68 = arith.constant dense<0.000000e+00> : vector<12x7xf32>
    %112 = tpu.matmul %107, %10, %cst_68 {dimension_numbers = #tpu.dot_dimension_numbers<[1], [0], [0], [1], [0, 0, 1, 1], [], []>} : vector<12x16xf32>, vector<16x7xf32>, vector<12x7xf32> -> vector<12x7xf32>
    %cst_69 = arith.constant dense<0.000000e+00> : vector<16x7xf32>
    %113 = tpu.matmul %4, %112, %cst_69 {dimension_numbers = #tpu.dot_dimension_numbers<[1], [0], [0], [1], [0, 0, 1, 1], [], []>} : vector<16x12xf32>, vector<12x7xf32>, vector<16x7xf32> -> vector<16x7xf32>
    %114 = arith.addf %111, %113 : vector<16x7xf32>
    %cst_70 = arith.constant dense<0.000000e+00> : vector<12x7xf32>
    %115 = tpu.matmul %107, %12, %cst_70 {dimension_numbers = #tpu.dot_dimension_numbers<[1], [0], [0], [1], [0, 0, 1, 1], [], []>} : vector<12x16xf32>, vector<16x7xf32>, vector<12x7xf32> -> vector<12x7xf32>
    %cst_71 = arith.constant dense<0.000000e+00> : vector<16x7xf32>
    %116 = tpu.matmul %6, %115, %cst_71 {dimension_numbers = #tpu.dot_dimension_numbers<[1], [0], [0], [1], [0, 0, 1, 1], [], []>} : vector<16x12xf32>, vector<12x7xf32>, vector<16x7xf32> -> vector<16x7xf32>
    %117 = arith.addf %114, %116 : vector<16x7xf32>
    %118 = vector.broadcast %0 : vector<16x1xf32> to vector<16x7xf32>
    %119 = arith.addf %117, %118 : vector<16x7xf32>
    %120 = vector.extract_strided_slice %119 {offsets = [0, 0], sizes = [8, 7], strides = [1, 1]} : vector<16x7xf32> to vector<8x7xf32>
    %121 = vector.extract_strided_slice %119 {offsets = [8, 0], sizes = [8, 7], strides = [1, 1]} : vector<16x7xf32> to vector<8x7xf32>
    %122 = math.absf %121 : vector<8x7xf32>
    %cst_72 = arith.constant 0.000000e+00 : f32
    %123 = vector.broadcast %cst_72 : f32 to vector<8x7xf32>
    %124 = arith.subf %123, %122 : vector<8x7xf32>
    %125 = math.exp %124 : vector<8x7xf32>
    %cst_73 = arith.constant 0.000000e+00 : f32
    %126 = vector.broadcast %cst_73 : f32 to vector<8x7xf32>
    %127 = arith.cmpf oge, %121, %126 : vector<8x7xf32>
    %cst_74 = arith.constant 1.000000e+00 : f32
    %128 = vector.broadcast %cst_74 : f32 to vector<8x7xf32>
    %129 = arith.select %127, %128, %125 : vector<8x7xi1>, vector<8x7xf32>
    %cst_75 = arith.constant 1.000000e+00 : f32
    %130 = vector.broadcast %cst_75 : f32 to vector<8x7xf32>
    %131 = arith.addf %130, %125 : vector<8x7xf32>
    %132 = arith.divf %129, %131 : vector<8x7xf32>
    %133 = arith.mulf %120, %132 : vector<8x7xf32>
    %c0_76 = arith.constant 0 : index
    %c0_77 = arith.constant 0 : index
    %c21 = arith.constant 21 : index
    %134 = vector.load %arg5[%c0_76, %c0_77, %c21] : memref<1x8x49xf32, #tpu.memory_space<vmem>>, vector<1x8x7xf32>
    %135 = vector.shape_cast %134 : vector<1x8x7xf32> to vector<8x7xf32>
    %136 = vector.shape_cast %133 : vector<8x7xf32> to vector<1x8x7xf32>
    tpu.vector_store %arg5[%c0_76, %c0_77, %c21], %136 {strides = array<i32>} : memref<1x8x49xf32, #tpu.memory_space<vmem>>, vector<1x8x7xf32>,
    %c0_78 = arith.constant 0 : index
    %c32 = arith.constant 32 : index
    %c0_79 = arith.constant 0 : index
    %137 = vector.load %arg1[%c0_78, %c32, %c0_79] : memref<1x64x16xf32, #tpu.memory_space<vmem>>, vector<1x12x16xf32>
    %138 = vector.shape_cast %137 : vector<1x12x16xf32> to vector<12x16xf32>
    %cst_80 = arith.constant 0.000000e+00 : f32
    %139 = vector.broadcast %cst_80 : f32 to vector<16x7xf32>
    %cst_81 = arith.constant dense<0.000000e+00> : vector<12x7xf32>
    %140 = tpu.matmul %138, %8, %cst_81 {dimension_numbers = #tpu.dot_dimension_numbers<[1], [0], [0], [1], [0, 0, 1, 1], [], []>} : vector<12x16xf32>, vector<16x7xf32>, vector<12x7xf32> -> vector<12x7xf32>
    %cst_82 = arith.constant dense<0.000000e+00> : vector<16x7xf32>
    %141 = tpu.matmul %2, %140, %cst_82 {dimension_numbers = #tpu.dot_dimension_numbers<[1], [0], [0], [1], [0, 0, 1, 1], [], []>} : vector<16x12xf32>, vector<12x7xf32>, vector<16x7xf32> -> vector<16x7xf32>
    %142 = arith.addf %139, %141 : vector<16x7xf32>
    %cst_83 = arith.constant dense<0.000000e+00> : vector<12x7xf32>
    %143 = tpu.matmul %138, %10, %cst_83 {dimension_numbers = #tpu.dot_dimension_numbers<[1], [0], [0], [1], [0, 0, 1, 1], [], []>} : vector<12x16xf32>, vector<16x7xf32>, vector<12x7xf32> -> vector<12x7xf32>
    %cst_84 = arith.constant dense<0.000000e+00> : vector<16x7xf32>
    %144 = tpu.matmul %4, %143, %cst_84 {dimension_numbers = #tpu.dot_dimension_numbers<[1], [0], [0], [1], [0, 0, 1, 1], [], []>} : vector<16x12xf32>, vector<12x7xf32>, vector<16x7xf32> -> vector<16x7xf32>
    %145 = arith.addf %142, %144 : vector<16x7xf32>
    %cst_85 = arith.constant dense<0.000000e+00> : vector<12x7xf32>
    %146 = tpu.matmul %138, %12, %cst_85 {dimension_numbers = #tpu.dot_dimension_numbers<[1], [0], [0], [1], [0, 0, 1, 1], [], []>} : vector<12x16xf32>, vector<16x7xf32>, vector<12x7xf32> -> vector<12x7xf32>
    %cst_86 = arith.constant dense<0.000000e+00> : vector<16x7xf32>
    %147 = tpu.matmul %6, %146, %cst_86 {dimension_numbers = #tpu.dot_dimension_numbers<[1], [0], [0], [1], [0, 0, 1, 1], [], []>} : vector<16x12xf32>, vector<12x7xf32>, vector<16x7xf32> -> vector<16x7xf32>
    %148 = arith.addf %145, %147 : vector<16x7xf32>
    %149 = vector.broadcast %0 : vector<16x1xf32> to vector<16x7xf32>
    %150 = arith.addf %148, %149 : vector<16x7xf32>
    %151 = vector.extract_strided_slice %150 {offsets = [0, 0], sizes = [8, 7], strides = [1, 1]} : vector<16x7xf32> to vector<8x7xf32>
    %152 = vector.extract_strided_slice %150 {offsets = [8, 0], sizes = [8, 7], strides = [1, 1]} : vector<16x7xf32> to vector<8x7xf32>
    %153 = math.absf %152 : vector<8x7xf32>
    %cst_87 = arith.constant 0.000000e+00 : f32
    %154 = vector.broadcast %cst_87 : f32 to vector<8x7xf32>
    %155 = arith.subf %154, %153 : vector<8x7xf32>
    %156 = math.exp %155 : vector<8x7xf32>
    %cst_88 = arith.constant 0.000000e+00 : f32
    %157 = vector.broadcast %cst_88 : f32 to vector<8x7xf32>
    %158 = arith.cmpf oge, %152, %157 : vector<8x7xf32>
    %cst_89 = arith.constant 1.000000e+00 : f32
    %159 = vector.broadcast %cst_89 : f32 to vector<8x7xf32>
    %160 = arith.select %158, %159, %156 : vector<8x7xi1>, vector<8x7xf32>
    %cst_90 = arith.constant 1.000000e+00 : f32
    %161 = vector.broadcast %cst_90 : f32 to vector<8x7xf32>
    %162 = arith.addf %161, %156 : vector<8x7xf32>
    %163 = arith.divf %160, %162 : vector<8x7xf32>
    %164 = arith.mulf %151, %163 : vector<8x7xf32>
    %c0_91 = arith.constant 0 : index
    %c0_92 = arith.constant 0 : index
    %c28 = arith.constant 28 : index
    %165 = vector.load %arg5[%c0_91, %c0_92, %c28] : memref<1x8x49xf32, #tpu.memory_space<vmem>>, vector<1x8x7xf32>
    %166 = vector.shape_cast %165 : vector<1x8x7xf32> to vector<8x7xf32>
    %167 = vector.shape_cast %164 : vector<8x7xf32> to vector<1x8x7xf32>
    tpu.vector_store %arg5[%c0_91, %c0_92, %c28], %167 {strides = array<i32>} : memref<1x8x49xf32, #tpu.memory_space<vmem>>, vector<1x8x7xf32>,
    %c0_93 = arith.constant 0 : index
    %c40 = arith.constant 40 : index
    %c0_94 = arith.constant 0 : index
    %168 = vector.load %arg1[%c0_93, %c40, %c0_94] : memref<1x64x16xf32, #tpu.memory_space<vmem>>, vector<1x12x16xf32>
    %169 = vector.shape_cast %168 : vector<1x12x16xf32> to vector<12x16xf32>
    %cst_95 = arith.constant 0.000000e+00 : f32
    %170 = vector.broadcast %cst_95 : f32 to vector<16x7xf32>
    %cst_96 = arith.constant dense<0.000000e+00> : vector<12x7xf32>
    %171 = tpu.matmul %169, %8, %cst_96 {dimension_numbers = #tpu.dot_dimension_numbers<[1], [0], [0], [1], [0, 0, 1, 1], [], []>} : vector<12x16xf32>, vector<16x7xf32>, vector<12x7xf32> -> vector<12x7xf32>
    %cst_97 = arith.constant dense<0.000000e+00> : vector<16x7xf32>
    %172 = tpu.matmul %2, %171, %cst_97 {dimension_numbers = #tpu.dot_dimension_numbers<[1], [0], [0], [1], [0, 0, 1, 1], [], []>} : vector<16x12xf32>, vector<12x7xf32>, vector<16x7xf32> -> vector<16x7xf32>
    %173 = arith.addf %170, %172 : vector<16x7xf32>
    %cst_98 = arith.constant dense<0.000000e+00> : vector<12x7xf32>
    %174 = tpu.matmul %169, %10, %cst_98 {dimension_numbers = #tpu.dot_dimension_numbers<[1], [0], [0], [1], [0, 0, 1, 1], [], []>} : vector<12x16xf32>, vector<16x7xf32>, vector<12x7xf32> -> vector<12x7xf32>
    %cst_99 = arith.constant dense<0.000000e+00> : vector<16x7xf32>
    %175 = tpu.matmul %4, %174, %cst_99 {dimension_numbers = #tpu.dot_dimension_numbers<[1], [0], [0], [1], [0, 0, 1, 1], [], []>} : vector<16x12xf32>, vector<12x7xf32>, vector<16x7xf32> -> vector<16x7xf32>
    %176 = arith.addf %173, %175 : vector<16x7xf32>
    %cst_100 = arith.constant dense<0.000000e+00> : vector<12x7xf32>
    %177 = tpu.matmul %169, %12, %cst_100 {dimension_numbers = #tpu.dot_dimension_numbers<[1], [0], [0], [1], [0, 0, 1, 1], [], []>} : vector<12x16xf32>, vector<16x7xf32>, vector<12x7xf32> -> vector<12x7xf32>
    %cst_101 = arith.constant dense<0.000000e+00> : vector<16x7xf32>
    %178 = tpu.matmul %6, %177, %cst_101 {dimension_numbers = #tpu.dot_dimension_numbers<[1], [0], [0], [1], [0, 0, 1, 1], [], []>} : vector<16x12xf32>, vector<12x7xf32>, vector<16x7xf32> -> vector<16x7xf32>
    %179 = arith.addf %176, %178 : vector<16x7xf32>
    %180 = vector.broadcast %0 : vector<16x1xf32> to vector<16x7xf32>
    %181 = arith.addf %179, %180 : vector<16x7xf32>
    %182 = vector.extract_strided_slice %181 {offsets = [0, 0], sizes = [8, 7], strides = [1, 1]} : vector<16x7xf32> to vector<8x7xf32>
    %183 = vector.extract_strided_slice %181 {offsets = [8, 0], sizes = [8, 7], strides = [1, 1]} : vector<16x7xf32> to vector<8x7xf32>
    %184 = math.absf %183 : vector<8x7xf32>
    %cst_102 = arith.constant 0.000000e+00 : f32
    %185 = vector.broadcast %cst_102 : f32 to vector<8x7xf32>
    %186 = arith.subf %185, %184 : vector<8x7xf32>
    %187 = math.exp %186 : vector<8x7xf32>
    %cst_103 = arith.constant 0.000000e+00 : f32
    %188 = vector.broadcast %cst_103 : f32 to vector<8x7xf32>
    %189 = arith.cmpf oge, %183, %188 : vector<8x7xf32>
    %cst_104 = arith.constant 1.000000e+00 : f32
    %190 = vector.broadcast %cst_104 : f32 to vector<8x7xf32>
    %191 = arith.select %189, %190, %187 : vector<8x7xi1>, vector<8x7xf32>
    %cst_105 = arith.constant 1.000000e+00 : f32
    %192 = vector.broadcast %cst_105 : f32 to vector<8x7xf32>
    %193 = arith.addf %192, %187 : vector<8x7xf32>
    %194 = arith.divf %191, %193 : vector<8x7xf32>
    %195 = arith.mulf %182, %194 : vector<8x7xf32>
    %c0_106 = arith.constant 0 : index
    %c0_107 = arith.constant 0 : index
    %c35 = arith.constant 35 : index
    %196 = vector.load %arg5[%c0_106, %c0_107, %c35] : memref<1x8x49xf32, #tpu.memory_space<vmem>>, vector<1x8x7xf32>
    %197 = vector.shape_cast %196 : vector<1x8x7xf32> to vector<8x7xf32>
    %198 = vector.shape_cast %195 : vector<8x7xf32> to vector<1x8x7xf32>
    tpu.vector_store %arg5[%c0_106, %c0_107, %c35], %198 {strides = array<i32>} : memref<1x8x49xf32, #tpu.memory_space<vmem>>, vector<1x8x7xf32>,
    %c0_108 = arith.constant 0 : index
    %c48 = arith.constant 48 : index
    %c0_109 = arith.constant 0 : index
    %199 = vector.load %arg1[%c0_108, %c48, %c0_109] : memref<1x64x16xf32, #tpu.memory_space<vmem>>, vector<1x12x16xf32>
    %200 = vector.shape_cast %199 : vector<1x12x16xf32> to vector<12x16xf32>
    %cst_110 = arith.constant 0.000000e+00 : f32
    %201 = vector.broadcast %cst_110 : f32 to vector<16x7xf32>
    %cst_111 = arith.constant dense<0.000000e+00> : vector<12x7xf32>
    %202 = tpu.matmul %200, %8, %cst_111 {dimension_numbers = #tpu.dot_dimension_numbers<[1], [0], [0], [1], [0, 0, 1, 1], [], []>} : vector<12x16xf32>, vector<16x7xf32>, vector<12x7xf32> -> vector<12x7xf32>
    %cst_112 = arith.constant dense<0.000000e+00> : vector<16x7xf32>
    %203 = tpu.matmul %2, %202, %cst_112 {dimension_numbers = #tpu.dot_dimension_numbers<[1], [0], [0], [1], [0, 0, 1, 1], [], []>} : vector<16x12xf32>, vector<12x7xf32>, vector<16x7xf32> -> vector<16x7xf32>
    %204 = arith.addf %201, %203 : vector<16x7xf32>
    %cst_113 = arith.constant dense<0.000000e+00> : vector<12x7xf32>
    %205 = tpu.matmul %200, %10, %cst_113 {dimension_numbers = #tpu.dot_dimension_numbers<[1], [0], [0], [1], [0, 0, 1, 1], [], []>} : vector<12x16xf32>, vector<16x7xf32>, vector<12x7xf32> -> vector<12x7xf32>
    %cst_114 = arith.constant dense<0.000000e+00> : vector<16x7xf32>
    %206 = tpu.matmul %4, %205, %cst_114 {dimension_numbers = #tpu.dot_dimension_numbers<[1], [0], [0], [1], [0, 0, 1, 1], [], []>} : vector<16x12xf32>, vector<12x7xf32>, vector<16x7xf32> -> vector<16x7xf32>
    %207 = arith.addf %204, %206 : vector<16x7xf32>
    %cst_115 = arith.constant dense<0.000000e+00> : vector<12x7xf32>
    %208 = tpu.matmul %200, %12, %cst_115 {dimension_numbers = #tpu.dot_dimension_numbers<[1], [0], [0], [1], [0, 0, 1, 1], [], []>} : vector<12x16xf32>, vector<16x7xf32>, vector<12x7xf32> -> vector<12x7xf32>
    %cst_116 = arith.constant dense<0.000000e+00> : vector<16x7xf32>
    %209 = tpu.matmul %6, %208, %cst_116 {dimension_numbers = #tpu.dot_dimension_numbers<[1], [0], [0], [1], [0, 0, 1, 1], [], []>} : vector<16x12xf32>, vector<12x7xf32>, vector<16x7xf32> -> vector<16x7xf32>
    %210 = arith.addf %207, %209 : vector<16x7xf32>
    %211 = vector.broadcast %0 : vector<16x1xf32> to vector<16x7xf32>
    %212 = arith.addf %210, %211 : vector<16x7xf32>
    %213 = vector.extract_strided_slice %212 {offsets = [0, 0], sizes = [8, 7], strides = [1, 1]} : vector<16x7xf32> to vector<8x7xf32>
    %214 = vector.extract_strided_slice %212 {offsets = [8, 0], sizes = [8, 7], strides = [1, 1]} : vector<16x7xf32> to vector<8x7xf32>
    %215 = math.absf %214 : vector<8x7xf32>
    %cst_117 = arith.constant 0.000000e+00 : f32
    %216 = vector.broadcast %cst_117 : f32 to vector<8x7xf32>
    %217 = arith.subf %216, %215 : vector<8x7xf32>
    %218 = math.exp %217 : vector<8x7xf32>
    %cst_118 = arith.constant 0.000000e+00 : f32
    %219 = vector.broadcast %cst_118 : f32 to vector<8x7xf32>
    %220 = arith.cmpf oge, %214, %219 : vector<8x7xf32>
    %cst_119 = arith.constant 1.000000e+00 : f32
    %221 = vector.broadcast %cst_119 : f32 to vector<8x7xf32>
    %222 = arith.select %220, %221, %218 : vector<8x7xi1>, vector<8x7xf32>
    %cst_120 = arith.constant 1.000000e+00 : f32
    %223 = vector.broadcast %cst_120 : f32 to vector<8x7xf32>
    %224 = arith.addf %223, %218 : vector<8x7xf32>
    %225 = arith.divf %222, %224 : vector<8x7xf32>
    %226 = arith.mulf %213, %225 : vector<8x7xf32>
    %c0_121 = arith.constant 0 : index
    %c0_122 = arith.constant 0 : index
    %c42 = arith.constant 42 : index
    %227 = vector.load %arg5[%c0_121, %c0_122, %c42] : memref<1x8x49xf32, #tpu.memory_space<vmem>>, vector<1x8x7xf32>
    %228 = vector.shape_cast %227 : vector<1x8x7xf32> to vector<8x7xf32>
    %229 = vector.shape_cast %226 : vector<8x7xf32> to vector<1x8x7xf32>
    tpu.vector_store %arg5[%c0_121, %c0_122, %c42], %229 {strides = array<i32>} : memref<1x8x49xf32, #tpu.memory_space<vmem>>, vector<1x8x7xf32>,
    return
  }
  func.func @transform_0(%arg0: i32) -> (i32, i32, i32) {
    %c0_i32 = arith.constant 0 : i32
    %c0_i32_0 = arith.constant 0 : i32
    %c0_i32_1 = arith.constant 0 : i32
    return %arg0, %c0_i32, %c0_i32_0 : i32, i32, i32
  }
  func.func @transform_1(%arg0: i32) -> (i32, i32, i32) {
    %c0_i32 = arith.constant 0 : i32
    %c0_i32_0 = arith.constant 0 : i32
    %c0_i32_1 = arith.constant 0 : i32
    %c0_i32_2 = arith.constant 0 : i32
    return %c0_i32, %c0_i32_0, %c0_i32_1 : i32, i32, i32
  }
  func.func @transform_2(%arg0: i32) -> (i32, i32, i32) {
    %c0_i32 = arith.constant 0 : i32
    %c0_i32_0 = arith.constant 0 : i32
    %c0_i32_1 = arith.constant 0 : i32
    %c0_i32_2 = arith.constant 0 : i32
    return %c0_i32, %c0_i32_0, %c0_i32_1 : i32, i32, i32
  }
  func.func @transform_3(%arg0: i32) -> (i32, i32) {
    %c0_i32 = arith.constant 0 : i32
    %c0_i32_0 = arith.constant 0 : i32
    %c0_i32_1 = arith.constant 0 : i32
    return %c0_i32, %c0_i32_0 : i32, i32
  }
  func.func @transform_4(%arg0: i32) -> (i32, i32, i32) {
    %c0_i32 = arith.constant 0 : i32
    %c0_i32_0 = arith.constant 0 : i32
    %c0_i32_1 = arith.constant 0 : i32
    return %arg0, %c0_i32, %c0_i32_0 : i32, i32, i32
  }
}

</mosaic_0001>

<llo_original>
// kernel: glu_conv2d.1
$region0: #{glu_conv2d.1}
  #allocation0 [shape = 'u32[]', space=smem, size = 0x4, offset = 0x4, fixed_abs, tag = 'smem constant byte address 0x4 - core index']
  #allocation1 [shape = 'u32[144,128]{1,0:T(1,128)}', space=vmem, size = 0x12000, scoped, tag = 'internal scratch']
  %s0 = inlined_call_operand.vmem [shape: f32[2,64,16], index: 0, kind: input, shape index: {}]
  %s1 = inlined_call_operand.vmem [shape: f32[3,16,12], index: 1, kind: input, shape index: {}]
  %s2 = inlined_call_operand.vmem [shape: f32[3,16,7], index: 2, kind: input, shape index: {}]
  %s3 = inlined_call_operand.vmem [shape: f32[16,1], index: 3, kind: input, shape index: {}]
  %s4 = inlined_call_operand.vmem [shape: f32[2,8,49], index: 4, kind: output, shape index: {}]
  %s5 = sld [smem:[#allocation0]]
  $region49: #{glu_conv2d.1} parent=0
    _
  %s7 = ssub.s32 1, %s5
  %s8 = scalar_select 0, %s7, %s5
  loop: start=0, step=1, limit=4
  $region2: #{glu_conv2d.1} parent=0 // loop_pre_header
    _
  $region3: #{glu_conv2d.1} parent=0 // loop_header
    %s10 = sphi 0, %s14
    %p11 = scmp.ge.s32.totalorder %s10, 4
    %s20 = sphi 0, %s22
    %s23 = sphi 0, %s20
    %s24 = sphi 0, %s23
    %s40 = sphi 0, %s24
    %s44 = sphi 0, %s44
    %s46 = sphi 0, %s44
    %s47 = sphi 0, %s46
    %s61 = sphi 0, %s47
    %s65 = sphi 0, %s65
    %s67 = sphi 0, %s65
    %s68 = sphi 0, %s67
    %s82 = sphi 0, %s68
    %s86 = sphi 0, %s86
    %s88 = sphi 0, %s86
    %s89 = sphi 0, %s88
    %s103 = sphi 0, %s89
    %s109 = sphi 0, %s111
    %s112 = sphi 0, %s109
    %s113 = sphi 0, %s112
    %s129 = sphi 0, %s113
  $region4: #{glu_conv2d.1} parent=0 // loop_header_branch
    %13 = sbr.rel (%p11) target = $region8
  $region5: #{glu_conv2d.1} parent=0 // loop_body
    %s15 = ssub.s32 %s10, 1
    %s16 = ssub.s32 %s10, 2
    %s17 = sadd.s32 %s10, 1
    %s18 = ssub.s32 %s10, %s17
    %p19 = scmp.eq.s32.totalorder %s18, 0
    %s21 = sadd.s32 %s20, 1
    %s22 = scalar_select %p19, %s20, %s21
    %p25 = pneg %p19
    %p26 = scmp.eq.s32.totalorder %s10, 1
    %p27 = por %p25, %p26
    %p28 = scmp.ne.s32.totalorder %s20, %s23
    %p29 = scmp.eq.s32.totalorder %s10, 0
    %p30 = por %p28, %p29
    %p31 = scmp.ne.s32.totalorder %s20, %s23
    %p32 = scmp.eq.s32.totalorder %s15, 1
    %p33 = por %p31, %p32
    %p34 = scmp.ne.s32.totalorder %s23, %s24
    %p35 = scmp.eq.s32.totalorder %s15, 0
    %p36 = por %p34, %p35
    %p37 = scmp.ne.s32.totalorder %s23, %s24
    %p38 = scmp.eq.s32.totalorder %s16, 1
    %p39 = por %p37, %p38
    %p41 = scmp.ne.s32.totalorder %s24, %s40
    %p42 = scmp.eq.s32.totalorder %s16, 0
    %p43 = por %p41, %p42
    %s45 = sadd.s32 %s44, 1
    %p48 = scmp.eq.s32.totalorder %s10, 1
    %p49 = scmp.ne.s32.totalorder %s44, %s46
    %p50 = scmp.eq.s32.totalorder %s10, 0
    %p51 = por %p49, %p50
    %p52 = scmp.ne.s32.totalorder %s44, %s46
    %p53 = scmp.eq.s32.totalorder %s15, 1
    %p54 = por %p52, %p53
    %p55 = scmp.ne.s32.totalorder %s46, %s47
    %p56 = scmp.eq.s32.totalorder %s15, 0
    %p57 = por %p55, %p56
    %p58 = scmp.ne.s32.totalorder %s46, %s47
    %p59 = scmp.eq.s32.totalorder %s16, 1
    %p60 = por %p58, %p59
    %p62 = scmp.ne.s32.totalorder %s47, %s61
    %p63 = scmp.eq.s32.totalorder %s16, 0
    %p64 = por %p62, %p63
    %s66 = sadd.s32 %s65, 1
    %p69 = scmp.eq.s32.totalorder %s10, 1
    %p70 = scmp.ne.s32.totalorder %s65, %s67
    %p71 = scmp.eq.s32.totalorder %s10, 0
    %p72 = por %p70, %p71
    %p73 = scmp.ne.s32.totalorder %s65, %s67
    %p74 = scmp.eq.s32.totalorder %s15, 1
    %p75 = por %p73, %p74
    %p76 = scmp.ne.s32.totalorder %s67, %s68
    %p77 = scmp.eq.s32.totalorder %s15, 0
    %p78 = por %p76, %p77
    %p79 = scmp.ne.s32.totalorder %s67, %s68
    %p80 = scmp.eq.s32.totalorder %s16, 1
    %p81 = por %p79, %p80
    %p83 = scmp.ne.s32.totalorder %s68, %s82
    %p84 = scmp.eq.s32.totalorder %s16, 0
    %p85 = por %p83, %p84
    %s87 = sadd.s32 %s86, 1
    %p90 = scmp.eq.s32.totalorder %s10, 1
    %p91 = scmp.ne.s32.totalorder %s86, %s88
    %p92 = scmp.eq.s32.totalorder %s10, 0
    %p93 = por %p91, %p92
    %p94 = scmp.ne.s32.totalorder %s86, %s88
    %p95 = scmp.eq.s32.totalorder %s15, 1
    %p96 = por %p94, %p95
    %p97 = scmp.ne.s32.totalorder %s88, %s89
    %p98 = scmp.eq.s32.totalorder %s15, 0
    %p99 = por %p97, %p98
    %p100 = scmp.ne.s32.totalorder %s88, %s89
    %p101 = scmp.eq.s32.totalorder %s16, 1
    %p102 = por %p100, %p101
    %p104 = scmp.ne.s32.totalorder %s89, %s103
    %p105 = scmp.eq.s32.totalorder %s16, 0
    %p106 = por %p104, %p105
    %s107 = ssub.s32 %s10, %s17
    %p108 = scmp.eq.s32.totalorder %s107, 0
    %s110 = sadd.s32 %s109, 1
    %s111 = scalar_select %p108, %s109, %s110
    %p114 = pneg %p108
    %p115 = scmp.eq.s32.totalorder %s10, 1
    %p116 = por %p114, %p115
    %p117 = scmp.ne.s32.totalorder %s109, %s112
    %p118 = scmp.eq.s32.totalorder %s10, 0
    %p119 = por %p117, %p118
    %p120 = scmp.ne.s32.totalorder %s109, %s112
    %p121 = scmp.eq.s32.totalorder %s15, 1
    %p122 = por %p120, %p121
    %p123 = scmp.ne.s32.totalorder %s112, %s113
    %p124 = scmp.eq.s32.totalorder %s15, 0
    %p125 = por %p123, %p124
    %p126 = scmp.ne.s32.totalorder %s112, %s113
    %p127 = scmp.eq.s32.totalorder %s16, 1
    %p128 = por %p126, %p127
    %p130 = scmp.ne.s32.totalorder %s113, %s129
    %p131 = scmp.eq.s32.totalorder %s16, 0
    %p132 = por %p130, %p131
    %p133 = scmp.le.s32.totalorder 1, %s10
    %p134 = scmp.lt.s32.totalorder %s10, 3
    %p135 = pnand %p133, %p134
    %p136 = pneg %p135
    // Predicated region
    $region9: #{glu_conv2d.1} parent=5 // pred_check
      _
    $region10: #{glu_conv2d.1} parent=5 // pred_check_branch
      %138 = sbr.rel (%p135) target = $region12
    $region11: #{glu_conv2d.1} parent=5 // pred_region
      %s139 = ssub.s32 %s10, 1
      // Predicated region
      $region13: #{glu_conv2d.1} parent=11 // pred_check
        %p140 = pneg %p57
      $region14: #{glu_conv2d.1} parent=11 // pred_check_branch
        %142 = sbr.rel (%p140) target = $region16
      $region15: #{glu_conv2d.1} parent=11 // pred_region
        _
      $region16: #{glu_conv2d.1} parent=11 // pred_fallthru
        _
      // Predicated region
      $region17: #{glu_conv2d.1} parent=11 // pred_check
        %p143 = pneg %p78
      $region18: #{glu_conv2d.1} parent=11 // pred_check_branch
        %145 = sbr.rel (%p143) target = $region20
      $region19: #{glu_conv2d.1} parent=11 // pred_region
        _
      $region20: #{glu_conv2d.1} parent=11 // pred_fallthru
        _
      // Predicated region
      $region21: #{glu_conv2d.1} parent=11 // pred_check
        %p146 = pneg %p99
      $region22: #{glu_conv2d.1} parent=11 // pred_check_branch
        %148 = sbr.rel (%p146) target = $region24
      $region23: #{glu_conv2d.1} parent=11 // pred_region
        _
      $region24: #{glu_conv2d.1} parent=11 // pred_fallthru
        _
    $region12: #{glu_conv2d.1} parent=5 // pred_fallthru
      _
    %p149 = scmp.lt.s32.totalorder %s10, 2
    // Predicated region
    $region25: #{glu_conv2d.1} parent=5 // pred_check
      %p150 = pneg %p149
    $region26: #{glu_conv2d.1} parent=5 // pred_check_branch
      %152 = sbr.rel (%p150) target = $region28
    $region27: #{glu_conv2d.1} parent=5 // pred_region
      // Predicated region
      $region29: #{glu_conv2d.1} parent=27 // pred_check
        %p153 = pneg %p30
      $region30: #{glu_conv2d.1} parent=27 // pred_check_branch
        %155 = sbr.rel (%p153) target = $region32
      $region31: #{glu_conv2d.1} parent=27 // pred_region
        %p156 = scmp.lt.s32.totalorder %s10, 1
        %s157 = scalar_select %p156, %s10, 1
        %s158 = smul.addr %s157, 8
        %s159 = smul.addr %s158, 8
        %s160 = scalar_lea.vmem %s0, %s159
      $region32: #{glu_conv2d.1} parent=27 // pred_fallthru
        _
    $region28: #{glu_conv2d.1} parent=5 // pred_fallthru
      _
    %p161 = scmp.le.s32.totalorder 1, %s10
    %p162 = scmp.lt.s32.totalorder %s10, 3
    %p163 = pnand %p161, %p162
    %p164 = pneg %p163
    // Predicated region
    $region33: #{glu_conv2d.1} parent=5 // pred_check
      _
    $region34: #{glu_conv2d.1} parent=5 // pred_check_branch
      %166 = sbr.rel (%p163) target = $region36
    $region35: #{glu_conv2d.1} parent=5 // pred_region
      %s167 = ssub.s32 %s10, 1
      %p168 = scmp.lt.s32.totalorder %s15, 1
      %s169 = scalar_select %p168, %s15, 1
      %s170 = smul.addr %s169, 8
      %s171 = smul.addr %s170, 8
      %s172 = scalar_lea.vmem %s0, %s171
      %p173 = pneg %p36
      %p174 = pneg %p33
      %p175 = pneg %p57
      %p176 = pneg %p54
      %p177 = pneg %p78
      %p178 = pneg %p75
      %p179 = pneg %p99
      %p180 = pneg %p96
      %p181 = pneg %p125
      %p182 = pneg %p122
      %p183 = scmp.lt.s32.totalorder %s15, 1
      %s184 = scalar_select %p183, %s15, 1
      %s185 = smul.addr %s184, 8
      %s186 = scalar_lea.vmem %s4, %s185
      %p187 = scmp.lt.s32.totalorder %s15, 1
      %s188 = scalar_select %p187, %s15, 1
      %s189 = smul.addr %s188, 8
      %s190 = smul.addr %s189, 8
      %s191 = scalar_lea.vmem %s0, %s190
      %p192 = scmp.lt.s32.totalorder %s15, 1
      %s193 = scalar_select %p192, %s15, 1
      %s194 = smul.addr %s193, 8
      %s195 = scalar_lea.vmem %s4, %s194
      %v196 = vld [vmem:[%s3] sm:$0xff]
      %v197 = vld [vmem:[%s3 + $0x8] sm:$0xff]
      %v198 = vld [vmem:[%s1] sm:$0xff]
      %v199 = vld [vmem:[%s1 + $0x8] sm:$0xff]
      %s200 = scalar_lea.vmem %s1, 16
      %v201 = vld [vmem:[%s200] sm:$0xff]
      %v202 = vld [vmem:[%s200 + $0x8] sm:$0xff]
      %s203 = scalar_lea.vmem %s1, 32
      %v204 = vld [vmem:[%s203] sm:$0xff]
      %v205 = vld [vmem:[%s203 + $0x8] sm:$0xff]
      %v206 = vld [vmem:[%s2] sm:$0xff]
      %v207 = vld [vmem:[%s2 + $0x8] sm:$0xff]
      %s208 = scalar_lea.vmem %s2, 16
      %v209 = vld [vmem:[%s208] sm:$0xff]
      %v210 = vld [vmem:[%s208 + $0x8] sm:$0xff]
      %s211 = scalar_lea.vmem %s2, 32
      %v212 = vld [vmem:[%s211] sm:$0xff]
      %v213 = vld [vmem:[%s211 + $0x8] sm:$0xff]
      %v214 = vld [vmem:[%s191] sm:$0xff]
      %v215 = vld [vmem:[%s191 + $0x8] sm:$0xf]
      %vm216 = vcmask 130048
      %v218 = vsel %vm216, %v214, 0
      %v221 = vsel %vm216, %v215, 0
      %223 = vmatprep.subr.mxu0 0.0
      %224 = vmatpush1.msra.mxu0 %v206
      %225 = vmatprep.subr.mxu0 0.0
      %226 = vmatpush1.msra.mxu0 %v207
      %227 = vmatprep.subr.mxu0 0.0
      %228 = vmatpush1.msra.mxu0 0.0
      %229 = vmatprep.subr.mxu0 0.0
      %230 = vmatpush1.msra.mxu0 0.0
      %231 = vmatprep.subr.mxu0 0.0
      %232 = vmatpush1.msra.mxu0 0.0
      %233 = vmatprep.subr.mxu0 0.0
      %234 = vmatpush1.msra.mxu0 0.0
      %235 = vmatprep.subr.mxu0 0.0
      %236 = vmatpush1.msra.mxu0 0.0
      %237 = vmatprep.subr.mxu0 0.0
      %238 = vmatpush1.msra.mxu0 0.0
      %239 = vmatprep.subr.mxu0 0.0
      %240 = vmatpush1.msra.mxu0 0.0
      %241 = vmatprep.subr.mxu0 0.0
      %242 = vmatpush1.msra.mxu0 0.0
      %243 = vmatprep.subr.mxu0 0.0
      %244 = vmatpush1.msra.mxu0 0.0
      %245 = vmatprep.subr.mxu0 0.0
      %246 = vmatpush1.msra.mxu0 0.0
      %247 = vmatprep.subr.mxu0 0.0
      %248 = vmatpush1.msra.mxu0 0.0
      %249 = vmatprep.subr.mxu0 0.0
      %250 = vmatpush1.msra.mxu0 0.0
      %251 = vmatprep.subr.mxu0 0.0
      %252 = vmatpush1.msra.mxu0 0.0
      %253 = vmatprep.subr.mxu0 0.0
      %254 = vmatpush1.msra.mxu0 0.0
      %255 = vmatprep.subr.mxu0 0.0
      %256 = vmatpush1.msra.mxu0 0.0
      %257 = vmatprep.subr.mxu0 0.0
      %258 = vmatpush1.msra.mxu0 0.0
      %259 = vmatprep.subr.mxu0 0.0
      %260 = vmatpush1.msra.mxu0 0.0
      %261 = vmatprep.subr.mxu0 0.0
      %262 = vmatpush1.msra.mxu0 0.0
      %263 = vmatprep.subr.mxu0 0.0
      %264 = vmatpush1.msra.mxu0 0.0
      %265 = vmatprep.subr.mxu0 0.0
      %266 = vmatpush1.msra.mxu0 0.0
      %267 = vmatprep.subr.mxu0 0.0
      %268 = vmatpush1.msra.mxu0 0.0
      %269 = vmatprep.subr.mxu0 0.0
      %270 = vmatpush1.msra.mxu0 0.0
      %271 = vmatprep.subr.mxu0 0.0
      %272 = vmatpush1.msra.mxu0 0.0
      %273 = vmatprep.subr.mxu0 0.0
      %274 = vmatpush1.msra.mxu0 0.0
      %275 = vmatprep.subr.mxu0 0.0
      %276 = vmatpush1.msra.mxu0 0.0
      %277 = vmatprep.subr.mxu0 0.0
      %278 = vmatpush1.msra.mxu0 0.0
      %279 = vmatprep.subr.mxu0 0.0
      %280 = vmatpush1.msra.mxu0 0.0
      %281 = vmatprep.subr.mxu0 0.0
      %282 = vmatpush1.msra.mxu0 0.0
      %283 = vmatprep.subr.mxu0 0.0
      %284 = vmatpush1.msra.mxu0 0.0
      %285 = vmatprep.subr.mxu0 0.0
      %286 = vmatpush1.msra.mxu0 0.0
      %287 = vmatprep.mubr.f32.mxu0 0.0
      %288 = vmatmul.mubr.f32.gmra.mrb[0].mxu0 %v218
      %v289 = vpop.f32.mrb[0].mxu0
      %v290 = vadd.f32 0.0, %v289
      %v291 = vpop.f32.mrb[0].mxu0
      %292 = vmatprep.mubr.f32.mxu0 0.0
      %293 = vmatmul.mubr.f32.gmra.mrb[0].mxu0 %v221
      %v294 = vpop.f32.mrb[0].mxu0
      %v295 = vadd.f32 0.0, %v294
      %v296 = vpop.f32.mrb[0].mxu0
      %297 = vdwg.mxu0
      %298 = vmatprep.subr.mxu0 0.0
      %299 = vmatpush1.msra.mxu0 %v209
      %300 = vmatprep.subr.mxu0 0.0
      %301 = vmatpush1.msra.mxu0 %v210
      %302 = vmatprep.subr.mxu0 0.0
      %303 = vmatpush1.msra.mxu0 0.0
      %304 = vmatprep.subr.mxu0 0.0
      %305 = vmatpush1.msra.mxu0 0.0
      %306 = vmatprep.subr.mxu0 0.0
      %307 = vmatpush1.msra.mxu0 0.0
      %308 = vmatprep.subr.mxu0 0.0
      %309 = vmatpush1.msra.mxu0 0.0
      %310 = vmatprep.subr.mxu0 0.0
      %311 = vmatpush1.msra.mxu0 0.0
      %312 = vmatprep.subr.mxu0 0.0
      %313 = vmatpush1.msra.mxu0 0.0
      %314 = vmatprep.subr.mxu0 0.0
      %315 = vmatpush1.msra.mxu0 0.0
      %316 = vmatprep.subr.mxu0 0.0
      %317 = vmatpush1.msra.mxu0 0.0
      %318 = vmatprep.subr.mxu0 0.0
      %319 = vmatpush1.msra.mxu0 0.0
      %320 = vmatprep.subr.mxu0 0.0
      %321 = vmatpush1.msra.mxu0 0.0
      %322 = vmatprep.subr.mxu0 0.0
      %323 = vmatpush1.msra.mxu0 0.0
      %324 = vmatprep.subr.mxu0 0.0
      %325 = vmatpush1.msra.mxu0 0.0
      %326 = vmatprep.subr.mxu0 0.0
      %327 = vmatpush1.msra.mxu0 0.0
      %328 = vmatprep.subr.mxu0 0.0
      %329 = vmatpush1.msra.mxu0 0.0
      %330 = vmatprep.subr.mxu0 0.0
      %331 = vmatpush1.msra.mxu0 0.0
      %332 = vmatprep.subr.mxu0 0.0
      %333 = vmatpush1.msra.mxu0 0.0
      %334 = vmatprep.subr.mxu0 0.0
      %335 = vmatpush1.msra.mxu0 0.0
      %336 = vmatprep.subr.mxu0 0.0
      %337 = vmatpush1.msra.mxu0 0.0
      %338 = vmatprep.subr.mxu0 0.0
      %339 = vmatpush1.msra.mxu0 0.0
      %340 = vmatprep.subr.mxu0 0.0
      %341 = vmatpush1.msra.mxu0 0.0
      %342 = vmatprep.subr.mxu0 0.0
      %343 = vmatpush1.msra.mxu0 0.0
      %344 = vmatprep.subr.mxu0 0.0
      %345 = vmatpush1.msra.mxu0 0.0
      %346 = vmatprep.subr.mxu0 0.0
      %347 = vmatpush1.msra.mxu0 0.0
      %348 = vmatprep.subr.mxu0 0.0
      %349 = vmatpush1.msra.mxu0 0.0
      %350 = vmatprep.subr.mxu0 0.0
      %351 = vmatpush1.msra.mxu0 0.0
      %352 = vmatprep.subr.mxu0 0.0
      %353 = vmatpush1.msra.mxu0 0.0
      %354 = vmatprep.subr.mxu0 0.0
      %355 = vmatpush1.msra.mxu0 0.0
      %356 = vmatprep.subr.mxu0 0.0
      %357 = vmatpush1.msra.mxu0 0.0
      %358 = vmatprep.subr.mxu0 0.0
      %359 = vmatpush1.msra.mxu0 0.0
      %360 = vmatprep.subr.mxu0 0.0
      %361 = vmatpush1.msra.mxu0 0.0
      %362 = vmatprep.mubr.f32.mxu0 0.0
      %363 = vmatmul.mubr.f32.gmra.mrb[0].mxu0 %v218
      %v364 = vpop.f32.mrb[0].mxu0
      %v365 = vadd.f32 0.0, %v364
      %v366 = vpop.f32.mrb[0].mxu0
      %367 = vmatprep.mubr.f32.mxu0 0.0
      %368 = vmatmul.mubr.f32.gmra.mrb[0].mxu0 %v221
      %v369 = vpop.f32.mrb[0].mxu0
      %v370 = vadd.f32 0.0, %v369
      %v371 = vpop.f32.mrb[0].mxu0
      %372 = vdwg.mxu0
      %vm373 = vcmask 97280
      %v375 = vsel %vm373, %v201, 0
      %v378 = vsel %vm373, %v202, 0
      %vm380 = vcmask 1043456
      %v382 = vsel %vm380, %v370, 0
      %384 = vmatprep.subr.mxu0 0.0
      %385 = vmatpush1.msra.mxu0 %v365
      %386 = vmatprep.subr.mxu0 0.0
      %387 = vmatpush1.msra.mxu0 %v382
      %388 = vmatprep.subr.mxu0 0.0
      %389 = vmatpush1.msra.mxu0 0.0
      %390 = vmatprep.subr.mxu0 0.0
      %391 = vmatpush1.msra.mxu0 0.0
      %392 = vmatprep.subr.mxu0 0.0
      %393 = vmatpush1.msra.mxu0 0.0
      %394 = vmatprep.subr.mxu0 0.0
      %395 = vmatpush1.msra.mxu0 0.0
      %396 = vmatprep.subr.mxu0 0.0
      %397 = vmatpush1.msra.mxu0 0.0
      %398 = vmatprep.subr.mxu0 0.0
      %399 = vmatpush1.msra.mxu0 0.0
      %400 = vmatprep.subr.mxu0 0.0
      %401 = vmatpush1.msra.mxu0 0.0
      %402 = vmatprep.subr.mxu0 0.0
      %403 = vmatpush1.msra.mxu0 0.0
      %404 = vmatprep.subr.mxu0 0.0
      %405 = vmatpush1.msra.mxu0 0.0
      %406 = vmatprep.subr.mxu0 0.0
      %407 = vmatpush1.msra.mxu0 0.0
      %408 = vmatprep.subr.mxu0 0.0
      %409 = vmatpush1.msra.mxu0 0.0
      %410 = vmatprep.subr.mxu0 0.0
      %411 = vmatpush1.msra.mxu0 0.0
      %412 = vmatprep.subr.mxu0 0.0
      %413 = vmatpush1.msra.mxu0 0.0
      %414 = vmatprep.subr.mxu0 0.0
      %415 = vmatpush1.msra.mxu0 0.0
      %416 = vmatprep.subr.mxu0 0.0
      %417 = vmatpush1.msra.mxu0 0.0
      %418 = vmatprep.subr.mxu0 0.0
      %419 = vmatpush1.msra.mxu0 0.0
      %420 = vmatprep.subr.mxu0 0.0
      %421 = vmatpush1.msra.mxu0 0.0
      %422 = vmatprep.subr.mxu0 0.0
      %423 = vmatpush1.msra.mxu0 0.0
      %424 = vmatprep.subr.mxu0 0.0
      %425 = vmatpush1.msra.mxu0 0.0
      %426 = vmatprep.subr.mxu0 0.0
      %427 = vmatpush1.msra.mxu0 0.0
      %428 = vmatprep.subr.mxu0 0.0
      %429 = vmatpush1.msra.mxu0 0.0
      %430 = vmatprep.subr.mxu0 0.0
      %431 = vmatpush1.msra.mxu0 0.0
      %432 = vmatprep.subr.mxu0 0.0
      %433 = vmatpush1.msra.mxu0 0.0
      %434 = vmatprep.subr.mxu0 0.0
      %435 = vmatpush1.msra.mxu0 0.0
      %436 = vmatprep.subr.mxu0 0.0
      %437 = vmatpush1.msra.mxu0 0.0
      %438 = vmatprep.subr.mxu0 0.0
      %439 = vmatpush1.msra.mxu0 0.0
      %440 = vmatprep.subr.mxu0 0.0
      %441 = vmatpush1.msra.mxu0 0.0
      %442 = vmatprep.subr.mxu0 0.0
      %443 = vmatpush1.msra.mxu0 0.0
      %444 = vmatprep.subr.mxu0 0.0
      %445 = vmatpush1.msra.mxu0 0.0
      %446 = vmatprep.subr.mxu0 0.0
      %447 = vmatpush1.msra.mxu0 0.0
      %448 = vmatprep.mubr.f32.mxu0 0.0
      %449 = vmatmul.mubr.f32.gmra.mrb[0].mxu0 %v375
      %v450 = vpop.f32.mrb[0].mxu0
      %v451 = vadd.f32 0.0, %v450
      %v452 = vpop.f32.mrb[0].mxu0
      %453 = vmatprep.mubr.f32.mxu0 0.0
      %454 = vmatmul.mubr.f32.gmra.mrb[0].mxu0 %v378
      %v455 = vpop.f32.mrb[0].mxu0
      %v456 = vadd.f32 0.0, %v455
      %v457 = vpop.f32.mrb[0].mxu0
      %458 = vdwg.mxu0
      %v460 = vsel %vm373, %v198, 0
      %v463 = vsel %vm373, %v199, 0
      %v466 = vsel %vm380, %v295, 0
      %468 = vmatprep.subr.mxu0 0.0
      %469 = vmatpush1.msra.mxu0 %v290
      %470 = vmatprep.subr.mxu0 0.0
      %471 = vmatpush1.msra.mxu0 %v466
      %472 = vmatprep.subr.mxu0 0.0
      %473 = vmatpush1.msra.mxu0 0.0
      %474 = vmatprep.subr.mxu0 0.0
      %475 = vmatpush1.msra.mxu0 0.0
      %476 = vmatprep.subr.mxu0 0.0
      %477 = vmatpush1.msra.mxu0 0.0
      %478 = vmatprep.subr.mxu0 0.0
      %479 = vmatpush1.msra.mxu0 0.0
      %480 = vmatprep.subr.mxu0 0.0
      %481 = vmatpush1.msra.mxu0 0.0
      %482 = vmatprep.subr.mxu0 0.0
      %483 = vmatpush1.msra.mxu0 0.0
      %484 = vmatprep.subr.mxu0 0.0
      %485 = vmatpush1.msra.mxu0 0.0
      %486 = vmatprep.subr.mxu0 0.0
      %487 = vmatpush1.msra.mxu0 0.0
      %488 = vmatprep.subr.mxu0 0.0
      %489 = vmatpush1.msra.mxu0 0.0
      %490 = vmatprep.subr.mxu0 0.0
      %491 = vmatpush1.msra.mxu0 0.0
      %492 = vmatprep.subr.mxu0 0.0
      %493 = vmatpush1.msra.mxu0 0.0
      %494 = vmatprep.subr.mxu0 0.0
      %495 = vmatpush1.msra.mxu0 0.0
      %496 = vmatprep.subr.mxu0 0.0
      %497 = vmatpush1.msra.mxu0 0.0
      %498 = vmatprep.subr.mxu0 0.0
      %499 = vmatpush1.msra.mxu0 0.0
      %500 = vmatprep.subr.mxu0 0.0
      %501 = vmatpush1.msra.mxu0 0.0
      %502 = vmatprep.subr.mxu0 0.0
      %503 = vmatpush1.msra.mxu0 0.0
      %504 = vmatprep.subr.mxu0 0.0
      %505 = vmatpush1.msra.mxu0 0.0
      %506 = vmatprep.subr.mxu0 0.0
      %507 = vmatpush1.msra.mxu0 0.0
      %508 = vmatprep.subr.mxu0 0.0
      %509 = vmatpush1.msra.mxu0 0.0
      %510 = vmatprep.subr.mxu0 0.0
      %511 = vmatpush1.msra.mxu0 0.0
      %512 = vmatprep.subr.mxu0 0.0
      %513 = vmatpush1.msra.mxu0 0.0
      %514 = vmatprep.subr.mxu0 0.0
      %515 = vmatpush1.msra.mxu0 0.0
      %516 = vmatprep.subr.mxu0 0.0
      %517 = vmatpush1.msra.mxu0 0.0
      %518 = vmatprep.subr.mxu0 0.0
      %519 = vmatpush1.msra.mxu0 0.0
      %520 = vmatprep.subr.mxu0 0.0
      %521 = vmatpush1.msra.mxu0 0.0
      %522 = vmatprep.subr.mxu0 0.0
      %523 = vmatpush1.msra.mxu0 0.0
      %524 = vmatprep.subr.mxu0 0.0
      %525 = vmatpush1.msra.mxu0 0.0
      %526 = vmatprep.subr.mxu0 0.0
      %527 = vmatpush1.msra.mxu0 0.0
      %528 = vmatprep.subr.mxu0 0.0
      %529 = vmatpush1.msra.mxu0 0.0
      %530 = vmatprep.subr.mxu0 0.0
      %531 = vmatpush1.msra.mxu0 0.0
      %532 = vmatprep.mubr.f32.mxu0 0.0
      %533 = vmatmul.mubr.f32.gmra.mrb[0].mxu0 %v460
      %v534 = vpop.f32.mrb[0].mxu0
      %v535 = vadd.f32 %v451, %v534
      %v536 = vpop.f32.mrb[0].mxu0
      %537 = vmatprep.mubr.f32.mxu0 0.0
      %538 = vmatmul.mubr.f32.gmra.mrb[0].mxu0 %v463
      %v539 = vpop.f32.mrb[0].mxu0
      %v540 = vadd.f32 %v456, %v539
      %v541 = vpop.f32.mrb[0].mxu0
      %542 = vdwg.mxu0
      %543 = vmatprep.subr.mxu0 0.0
      %544 = vmatpush1.msra.mxu0 %v212
      %545 = vmatprep.subr.mxu0 0.0
      %546 = vmatpush1.msra.mxu0 %v213
      %547 = vmatprep.subr.mxu0 0.0
      %548 = vmatpush1.msra.mxu0 0.0
      %549 = vmatprep.subr.mxu0 0.0
      %550 = vmatpush1.msra.mxu0 0.0
      %551 = vmatprep.subr.mxu0 0.0
      %552 = vmatpush1.msra.mxu0 0.0
      %553 = vmatprep.subr.mxu0 0.0
      %554 = vmatpush1.msra.mxu0 0.0
      %555 = vmatprep.subr.mxu0 0.0
      %556 = vmatpush1.msra.mxu0 0.0
      %557 = vmatprep.subr.mxu0 0.0
      %558 = vmatpush1.msra.mxu0 0.0
      %559 = vmatprep.subr.mxu0 0.0
      %560 = vmatpush1.msra.mxu0 0.0
      %561 = vmatprep.subr.mxu0 0.0
      %562 = vmatpush1.msra.mxu0 0.0
      %563 = vmatprep.subr.mxu0 0.0
      %564 = vmatpush1.msra.mxu0 0.0
      %565 = vmatprep.subr.mxu0 0.0
      %566 = vmatpush1.msra.mxu0 0.0
      %567 = vmatprep.subr.mxu0 0.0
      %568 = vmatpush1.msra.mxu0 0.0
      %569 = vmatprep.subr.mxu0 0.0
      %570 = vmatpush1.msra.mxu0 0.0
      %571 = vmatprep.subr.mxu0 0.0
      %572 = vmatpush1.msra.mxu0 0.0
      %573 = vmatprep.subr.mxu0 0.0
      %574 = vmatpush1.msra.mxu0 0.0
      %575 = vmatprep.subr.mxu0 0.0
      %576 = vmatpush1.msra.mxu0 0.0
      %577 = vmatprep.subr.mxu0 0.0
      %578 = vmatpush1.msra.mxu0 0.0
      %579 = vmatprep.subr.mxu0 0.0
      %580 = vmatpush1.msra.mxu0 0.0
      %581 = vmatprep.subr.mxu0 0.0
      %582 = vmatpush1.msra.mxu0 0.0
      %583 = vmatprep.subr.mxu0 0.0
      %584 = vmatpush1.msra.mxu0 0.0
      %585 = vmatprep.subr.mxu0 0.0
      %586 = vmatpush1.msra.mxu0 0.0
      %587 = vmatprep.subr.mxu0 0.0
      %588 = vmatpush1.msra.mxu0 0.0
      %589 = vmatprep.subr.mxu0 0.0
      %590 = vmatpush1.msra.mxu0 0.0
      %591 = vmatprep.subr.mxu0 0.0
      %592 = vmatpush1.msra.mxu0 0.0
      %593 = vmatprep.subr.mxu0 0.0
      %594 = vmatpush1.msra.mxu0 0.0
      %595 = vmatprep.subr.mxu0 0.0
      %596 = vmatpush1.msra.mxu0 0.0
      %597 = vmatprep.subr.mxu0 0.0
      %598 = vmatpush1.msra.mxu0 0.0
      %599 = vmatprep.subr.mxu0 0.0
      %600 = vmatpush1.msra.mxu0 0.0
      %601 = vmatprep.subr.mxu0 0.0
      %602 = vmatpush1.msra.mxu0 0.0
      %603 = vmatprep.subr.mxu0 0.0
      %604 = vmatpush1.msra.mxu0 0.0
      %605 = vmatprep.subr.mxu0 0.0
      %606 = vmatpush1.msra.mxu0 0.0
      %607 = vmatprep.mubr.f32.mxu0 0.0
      %608 = vmatmul.mubr.f32.gmra.mrb[0].mxu0 %v218
      %v609 = vpop.f32.mrb[0].mxu0
      %v610 = vadd.f32 0.0, %v609
      %v611 = vpop.f32.mrb[0].mxu0
      %612 = vmatprep.mubr.f32.mxu0 0.0
      %613 = vmatmul.mubr.f32.gmra.mrb[0].mxu0 %v221
      %v614 = vpop.f32.mrb[0].mxu0
      %v615 = vadd.f32 0.0, %v614
      %v616 = vpop.f32.mrb[0].mxu0
      %617 = vdwg.mxu0
      %v619 = vsel %vm373, %v204, 0
      %v622 = vsel %vm373, %v205, 0
      %v625 = vsel %vm380, %v615, 0
      %627 = vmatprep.subr.mxu0 0.0
      %628 = vmatpush1.msra.mxu0 %v610
      %629 = vmatprep.subr.mxu0 0.0
      %630 = vmatpush1.msra.mxu0 %v625
      %631 = vmatprep.subr.mxu0 0.0
      %632 = vmatpush1.msra.mxu0 0.0
      %633 = vmatprep.subr.mxu0 0.0
      %634 = vmatpush1.msra.mxu0 0.0
      %635 = vmatprep.subr.mxu0 0.0
      %636 = vmatpush1.msra.mxu0 0.0
      %637 = vmatprep.subr.mxu0 0.0
      %638 = vmatpush1.msra.mxu0 0.0
      %639 = vmatprep.subr.mxu0 0.0
      %640 = vmatpush1.msra.mxu0 0.0
      %641 = vmatprep.subr.mxu0 0.0
      %642 = vmatpush1.msra.mxu0 0.0
      %643 = vmatprep.subr.mxu0 0.0
      %644 = vmatpush1.msra.mxu0 0.0
      %645 = vmatprep.subr.mxu0 0.0
      %646 = vmatpush1.msra.mxu0 0.0
      %647 = vmatprep.subr.mxu0 0.0
      %648 = vmatpush1.msra.mxu0 0.0
      %649 = vmatprep.subr.mxu0 0.0
      %650 = vmatpush1.msra.mxu0 0.0
      %651 = vmatprep.subr.mxu0 0.0
      %652 = vmatpush1.msra.mxu0 0.0
      %653 = vmatprep.subr.mxu0 0.0
      %654 = vmatpush1.msra.mxu0 0.0
      %655 = vmatprep.subr.mxu0 0.0
      %656 = vmatpush1.msra.mxu0 0.0
      %657 = vmatprep.subr.mxu0 0.0
      %658 = vmatpush1.msra.mxu0 0.0
      %659 = vmatprep.subr.mxu0 0.0
      %660 = vmatpush1.msra.mxu0 0.0
      %661 = vmatprep.subr.mxu0 0.0
      %662 = vmatpush1.msra.mxu0 0.0
      %663 = vmatprep.subr.mxu0 0.0
      %664 = vmatpush1.msra.mxu0 0.0
      %665 = vmatprep.subr.mxu0 0.0
      %666 = vmatpush1.msra.mxu0 0.0
      %667 = vmatprep.subr.mxu0 0.0
      %668 = vmatpush1.msra.mxu0 0.0
      %669 = vmatprep.subr.mxu0 0.0
      %670 = vmatpush1.msra.mxu0 0.0
      %671 = vmatprep.subr.mxu0 0.0
      %672 = vmatpush1.msra.mxu0 0.0
      %673 = vmatprep.subr.mxu0 0.0
      %674 = vmatpush1.msra.mxu0 0.0
      %675 = vmatprep.subr.mxu0 0.0
      %676 = vmatpush1.msra.mxu0 0.0
      %677 = vmatprep.subr.mxu0 0.0
      %678 = vmatpush1.msra.mxu0 0.0
      %679 = vmatprep.subr.mxu0 0.0
      %680 = vmatpush1.msra.mxu0 0.0
      %681 = vmatprep.subr.mxu0 0.0
      %682 = vmatpush1.msra.mxu0 0.0
      %683 = vmatprep.subr.mxu0 0.0
      %684 = vmatpush1.msra.mxu0 0.0
      %685 = vmatprep.subr.mxu0 0.0
      %686 = vmatpush1.msra.mxu0 0.0
      %687 = vmatprep.subr.mxu0 0.0
      %688 = vmatpush1.msra.mxu0 0.0
      %689 = vmatprep.subr.mxu0 0.0
      %690 = vmatpush1.msra.mxu0 0.0
      %691 = vmatprep.mubr.f32.mxu0 0.0
      %692 = vmatmul.mubr.f32.gmra.mrb[0].mxu0 %v619
      %v693 = vpop.f32.mrb[0].mxu0
      %v694 = vadd.f32 0.0, %v693
      %v695 = vpop.f32.mrb[0].mxu0
      %696 = vmatprep.mubr.f32.mxu0 0.0
      %697 = vmatmul.mubr.f32.gmra.mrb[0].mxu0 %v622
      %v698 = vpop.f32.mrb[0].mxu0
      %v699 = vadd.f32 0.0, %v698
      %v700 = vpop.f32.mrb[0].mxu0
      %701 = vdwg.mxu0
      %v702 = vadd.f32 %v535, %v694
      %v703 = vadd.f32 %v540, %v699
      %705 = vset.pattern.permute.xlu0 0
      %706 = vperm.xlu0 %705, %v196
      %v707 = vpop.permute.xlu0 %706
      %710 = vset.pattern.permute.xlu0 0
      %711 = vperm.xlu0 %710, %v197
      %v712 = vpop.permute.xlu0 %711
      %v714 = vadd.f32 %v702, %v707
      %v715 = vadd.f32 %v703, %v712
      %v716 = vand.u32 2147483647, %v715
      %v717 = vsub.f32 0.0, %v716
      %v718 = vmul.f32 %v717, 1.442695
      %v719 = vpow.pop %v718
      %vm720 = vcmp.ge.f32.partialorder %v715, 0.0
      %v721 = vsel %vm720, 1.0, %v719
      %v722 = vadd.f32 %v719, 1.0
      %v723 = vrcp.pop %v722
      %v724 = vmul.f32 %v721, %v723
      %v725 = vmul.f32 %v714, %v724
      %vm726 = vcmask 56320
      %727 = vst.msk [vmem:[%s195] sm:$0xff] %vm726, %v725
      %v728 = vld [vmem:[%s191 + $0x8] sm:$0xff]
      %v729 = vld [vmem:[%s191 + $0x10] sm:$0xf]
      %v731 = vsel %vm216, %v728, 0
      %v734 = vsel %vm216, %v729, 0
      %736 = vmatprep.subr.mxu0 0.0
      %737 = vmatpush1.msra.mxu0 %v206
      %738 = vmatprep.subr.mxu0 0.0
      %739 = vmatpush1.msra.mxu0 %v207
      %740 = vmatprep.subr.mxu0 0.0
      %741 = vmatpush1.msra.mxu0 0.0
      %742 = vmatprep.subr.mxu0 0.0
      %743 = vmatpush1.msra.mxu0 0.0
      %744 = vmatprep.subr.mxu0 0.0
      %745 = vmatpush1.msra.mxu0 0.0
      %746 = vmatprep.subr.mxu0 0.0
      %747 = vmatpush1.msra.mxu0 0.0
      %748 = vmatprep.subr.mxu0 0.0
      %749 = vmatpush1.msra.mxu0 0.0
      %750 = vmatprep.subr.mxu0 0.0
      %751 = vmatpush1.msra.mxu0 0.0
      %752 = vmatprep.subr.mxu0 0.0
      %753 = vmatpush1.msra.mxu0 0.0
      %754 = vmatprep.subr.mxu0 0.0
      %755 = vmatpush1.msra.mxu0 0.0
      %756 = vmatprep.subr.mxu0 0.0
      %757 = vmatpush1.msra.mxu0 0.0
      %758 = vmatprep.subr.mxu0 0.0
      %759 = vmatpush1.msra.mxu0 0.0
      %760 = vmatprep.subr.mxu0 0.0
      %761 = vmatpush1.msra.mxu0 0.0
      %762 = vmatprep.subr.mxu0 0.0
      %763 = vmatpush1.msra.mxu0 0.0
      %764 = vmatprep.subr.mxu0 0.0
      %765 = vmatpush1.msra.mxu0 0.0
      %766 = vmatprep.subr.mxu0 0.0
      %767 = vmatpush1.msra.mxu0 0.0
      %768 = vmatprep.subr.mxu0 0.0
      %769 = vmatpush1.msra.mxu0 0.0
      %770 = vmatprep.subr.mxu0 0.0
      %771 = vmatpush1.msra.mxu0 0.0
      %772 = vmatprep.subr.mxu0 0.0
      %773 = vmatpush1.msra.mxu0 0.0
      %774 = vmatprep.subr.mxu0 0.0
      %775 = vmatpush1.msra.mxu0 0.0
      %776 = vmatprep.subr.mxu0 0.0
      %777 = vmatpush1.msra.mxu0 0.0
      %778 = vmatprep.subr.mxu0 0.0
      %779 = vmatpush1.msra.mxu0 0.0
      %780 = vmatprep.subr.mxu0 0.0
      %781 = vmatpush1.msra.mxu0 0.0
      %782 = vmatprep.subr.mxu0 0.0
      %783 = vmatpush1.msra.mxu0 0.0
      %784 = vmatprep.subr.mxu0 0.0
      %785 = vmatpush1.msra.mxu0 0.0
      %786 = vmatprep.subr.mxu0 0.0
      %787 = vmatpush1.msra.mxu0 0.0
      %788 = vmatprep.subr.mxu0 0.0
      %789 = vmatpush1.msra.mxu0 0.0
      %790 = vmatprep.subr.mxu0 0.0
      %791 = vmatpush1.msra.mxu0 0.0
      %792 = vmatprep.subr.mxu0 0.0
      %793 = vmatpush1.msra.mxu0 0.0
      %794 = vmatprep.subr.mxu0 0.0
      %795 = vmatpush1.msra.mxu0 0.0
      %796 = vmatprep.subr.mxu0 0.0
      %797 = vmatpush1.msra.mxu0 0.0
      %798 = vmatprep.subr.mxu0 0.0
      %799 = vmatpush1.msra.mxu0 0.0
      %800 = vmatprep.mubr.f32.mxu0 0.0
      %801 = vmatmul.mubr.f32.gmra.mrb[0].mxu0 %v731
      %v802 = vpop.f32.mrb[0].mxu0
      %v803 = vadd.f32 0.0, %v802
      %v804 = vpop.f32.mrb[0].mxu0
      %805 = vmatprep.mubr.f32.mxu0 0.0
      %806 = vmatmul.mubr.f32.gmra.mrb[0].mxu0 %v734
      %v807 = vpop.f32.mrb[0].mxu0
      %v808 = vadd.f32 0.0, %v807
      %v809 = vpop.f32.mrb[0].mxu0
      %810 = vdwg.mxu0
      %811 = vmatprep.subr.mxu0 0.0
      %812 = vmatpush1.msra.mxu0 %v209
      %813 = vmatprep.subr.mxu0 0.0
      %814 = vmatpush1.msra.mxu0 %v210
      %815 = vmatprep.subr.mxu0 0.0
      %816 = vmatpush1.msra.mxu0 0.0
      %817 = vmatprep.subr.mxu0 0.0
      %818 = vmatpush1.msra.mxu0 0.0
      %819 = vmatprep.subr.mxu0 0.0
      %820 = vmatpush1.msra.mxu0 0.0
      %821 = vmatprep.subr.mxu0 0.0
      %822 = vmatpush1.msra.mxu0 0.0
      %823 = vmatprep.subr.mxu0 0.0
      %824 = vmatpush1.msra.mxu0 0.0
      %825 = vmatprep.subr.mxu0 0.0
      %826 = vmatpush1.msra.mxu0 0.0
      %827 = vmatprep.subr.mxu0 0.0
      %828 = vmatpush1.msra.mxu0 0.0
      %829 = vmatprep.subr.mxu0 0.0
      %830 = vmatpush1.msra.mxu0 0.0
      %831 = vmatprep.subr.mxu0 0.0
      %832 = vmatpush1.msra.mxu0 0.0
      %833 = vmatprep.subr.mxu0 0.0
      %834 = vmatpush1.msra.mxu0 0.0
      %835 = vmatprep.subr.mxu0 0.0
      %836 = vmatpush1.msra.mxu0 0.0
      %837 = vmatprep.subr.mxu0 0.0
      %838 = vmatpush1.msra.mxu0 0.0
      %839 = vmatprep.subr.mxu0 0.0
      %840 = vmatpush1.msra.mxu0 0.0
      %841 = vmatprep.subr.mxu0 0.0
      %842 = vmatpush1.msra.mxu0 0.0
      %843 = vmatprep.subr.mxu0 0.0
      %844 = vmatpush1.msra.mxu0 0.0
      %845 = vmatprep.subr.mxu0 0.0
      %846 = vmatpush1.msra.mxu0 0.0
      %847 = vmatprep.subr.mxu0 0.0
      %848 = vmatpush1.msra.mxu0 0.0
      %849 = vmatprep.subr.mxu0 0.0
      %850 = vmatpush1.msra.mxu0 0.0
      %851 = vmatprep.subr.mxu0 0.0
      %852 = vmatpush1.msra.mxu0 0.0
      %853 = vmatprep.subr.mxu0 0.0
      %854 = vmatpush1.msra.mxu0 0.0
      %855 = vmatprep.subr.mxu0 0.0
      %856 = vmatpush1.msra.mxu0 0.0
      %857 = vmatprep.subr.mxu0 0.0
      %858 = vmatpush1.msra.mxu0 0.0
      %859 = vmatprep.subr.mxu0 0.0
      %860 = vmatpush1.msra.mxu0 0.0
      %861 = vmatprep.subr.mxu0 0.0
      %862 = vmatpush1.msra.mxu0 0.0
      %863 = vmatprep.subr.mxu0 0.0
      %864 = vmatpush1.msra.mxu0 0.0
      %865 = vmatprep.subr.mxu0 0.0
      %866 = vmatpush1.msra.mxu0 0.0
      %867 = vmatprep.subr.mxu0 0.0
      %868 = vmatpush1.msra.mxu0 0.0
      %869 = vmatprep.subr.mxu0 0.0
      %870 = vmatpush1.msra.mxu0 0.0
      %871 = vmatprep.subr.mxu0 0.0
      %872 = vmatpush1.msra.mxu0 0.0
      %873 = vmatprep.subr.mxu0 0.0
      %874 = vmatpush1.msra.mxu0 0.0
      %875 = vmatprep.mubr.f32.mxu0 0.0
      %876 = vmatmul.mubr.f32.gmra.mrb[0].mxu0 %v731
      %v877 = vpop.f32.mrb[0].mxu0
      %v878 = vadd.f32 0.0, %v877
      %v879 = vpop.f32.mrb[0].mxu0
      %880 = vmatprep.mubr.f32.mxu0 0.0
      %881 = vmatmul.mubr.f32.gmra.mrb[0].mxu0 %v734
      %v882 = vpop.f32.mrb[0].mxu0
      %v883 = vadd.f32 0.0, %v882
      %v884 = vpop.f32.mrb[0].mxu0
      %885 = vdwg.mxu0
      %v887 = vsel %vm380, %v883, 0
      %889 = vmatprep.subr.mxu0 0.0
      %890 = vmatpush1.msra.mxu0 %v878
      %891 = vmatprep.subr.mxu0 0.0
      %892 = vmatpush1.msra.mxu0 %v887
      %893 = vmatprep.subr.mxu0 0.0
      %894 = vmatpush1.msra.mxu0 0.0
      %895 = vmatprep.subr.mxu0 0.0
      %896 = vmatpush1.msra.mxu0 0.0
      %897 = vmatprep.subr.mxu0 0.0
      %898 = vmatpush1.msra.mxu0 0.0
      %899 = vmatprep.subr.mxu0 0.0
      %900 = vmatpush1.msra.mxu0 0.0
      %901 = vmatprep.subr.mxu0 0.0
      %902 = vmatpush1.msra.mxu0 0.0
      %903 = vmatprep.subr.mxu0 0.0
      %904 = vmatpush1.msra.mxu0 0.0
      %905 = vmatprep.subr.mxu0 0.0
      %906 = vmatpush1.msra.mxu0 0.0
      %907 = vmatprep.subr.mxu0 0.0
      %908 = vmatpush1.msra.mxu0 0.0
      %909 = vmatprep.subr.mxu0 0.0
      %910 = vmatpush1.msra.mxu0 0.0
      %911 = vmatprep.subr.mxu0 0.0
      %912 = vmatpush1.msra.mxu0 0.0
      %913 = vmatprep.subr.mxu0 0.0
      %914 = vmatpush1.msra.mxu0 0.0
      %915 = vmatprep.subr.mxu0 0.0
      %916 = vmatpush1.msra.mxu0 0.0
      %917 = vmatprep.subr.mxu0 0.0
      %918 = vmatpush1.msra.mxu0 0.0
      %919 = vmatprep.subr.mxu0 0.0
      %920 = vmatpush1.msra.mxu0 0.0
      %921 = vmatprep.subr.mxu0 0.0
      %922 = vmatpush1.msra.mxu0 0.0
      %923 = vmatprep.subr.mxu0 0.0
      %924 = vmatpush1.msra.mxu0 0.0
      %925 = vmatprep.subr.mxu0 0.0
      %926 = vmatpush1.msra.mxu0 0.0
      %927 = vmatprep.subr.mxu0 0.0
      %928 = vmatpush1.msra.mxu0 0.0
      %929 = vmatprep.subr.mxu0 0.0
      %930 = vmatpush1.msra.mxu0 0.0
      %931 = vmatprep.subr.mxu0 0.0
      %932 = vmatpush1.msra.mxu0 0.0
      %933 = vmatprep.subr.mxu0 0.0
      %934 = vmatpush1.msra.mxu0 0.0
      %935 = vmatprep.subr.mxu0 0.0
      %936 = vmatpush1.msra.mxu0 0.0
      %937 = vmatprep.subr.mxu0 0.0
      %938 = vmatpush1.msra.mxu0 0.0
      %939 = vmatprep.subr.mxu0 0.0
      %940 = vmatpush1.msra.mxu0 0.0
      %941 = vmatprep.subr.mxu0 0.0
      %942 = vmatpush1.msra.mxu0 0.0
      %943 = vmatprep.subr.mxu0 0.0
      %944 = vmatpush1.msra.mxu0 0.0
      %945 = vmatprep.subr.mxu0 0.0
      %946 = vmatpush1.msra.mxu0 0.0
      %947 = vmatprep.subr.mxu0 0.0
      %948 = vmatpush1.msra.mxu0 0.0
      %949 = vmatprep.subr.mxu0 0.0
      %950 = vmatpush1.msra.mxu0 0.0
      %951 = vmatprep.subr.mxu0 0.0
      %952 = vmatpush1.msra.mxu0 0.0
      %953 = vmatprep.mubr.f32.mxu0 0.0
      %954 = vmatmul.mubr.f32.gmra.mrb[0].mxu0 %v375
      %v955 = vpop.f32.mrb[0].mxu0
      %v956 = vadd.f32 0.0, %v955
      %v957 = vpop.f32.mrb[0].mxu0
      %958 = vmatprep.mubr.f32.mxu0 0.0
      %959 = vmatmul.mubr.f32.gmra.mrb[0].mxu0 %v378
      %v960 = vpop.f32.mrb[0].mxu0
      %v961 = vadd.f32 0.0, %v960
      %v962 = vpop.f32.mrb[0].mxu0
      %963 = vdwg.mxu0
      %v965 = vsel %vm380, %v808, 0
      %967 = vmatprep.subr.mxu0 0.0
      %968 = vmatpush1.msra.mxu0 %v803
      %969 = vmatprep.subr.mxu0 0.0
      %970 = vmatpush1.msra.mxu0 %v965
      %971 = vmatprep.subr.mxu0 0.0
      %972 = vmatpush1.msra.mxu0 0.0
      %973 = vmatprep.subr.mxu0 0.0
      %974 = vmatpush1.msra.mxu0 0.0
      %975 = vmatprep.subr.mxu0 0.0
      %976 = vmatpush1.msra.mxu0 0.0
      %977 = vmatprep.subr.mxu0 0.0
      %978 = vmatpush1.msra.mxu0 0.0
      %979 = vmatprep.subr.mxu0 0.0
      %980 = vmatpush1.msra.mxu0 0.0
      %981 = vmatprep.subr.mxu0 0.0
      %982 = vmatpush1.msra.mxu0 0.0
      %983 = vmatprep.subr.mxu0 0.0
      %984 = vmatpush1.msra.mxu0 0.0
      %985 = vmatprep.subr.mxu0 0.0
      %986 = vmatpush1.msra.mxu0 0.0
      %987 = vmatprep.subr.mxu0 0.0
      %988 = vmatpush1.msra.mxu0 0.0
      %989 = vmatprep.subr.mxu0 0.0
      %990 = vmatpush1.msra.mxu0 0.0
      %991 = vmatprep.subr.mxu0 0.0
      %992 = vmatpush1.msra.mxu0 0.0
      %993 = vmatprep.subr.mxu0 0.0
      %994 = vmatpush1.msra.mxu0 0.0
      %995 = vmatprep.subr.mxu0 0.0
      %996 = vmatpush1.msra.mxu0 0.0
      %997 = vmatprep.subr.mxu0 0.0
      %998 = vmatpush1.msra.mxu0 0.0
      %999 = vmatprep.subr.mxu0 0.0
      %1000 = vmatpush1.msra.mxu0 0.0
      %1001 = vmatprep.subr.mxu0 0.0
      %1002 = vmatpush1.msra.mxu0 0.0
      %1003 = vmatprep.subr.mxu0 0.0
      %1004 = vmatpush1.msra.mxu0 0.0
      %1005 = vmatprep.subr.mxu0 0.0
      %1006 = vmatpush1.msra.mxu0 0.0
      %1007 = vmatprep.subr.mxu0 0.0
      %1008 = vmatpush1.msra.mxu0 0.0
      %1009 = vmatprep.subr.mxu0 0.0
      %1010 = vmatpush1.msra.mxu0 0.0
      %1011 = vmatprep.subr.mxu0 0.0
      %1012 = vmatpush1.msra.mxu0 0.0
      %1013 = vmatprep.subr.mxu0 0.0
      %1014 = vmatpush1.msra.mxu0 0.0
      %1015 = vmatprep.subr.mxu0 0.0
      %1016 = vmatpush1.msra.mxu0 0.0
      %1017 = vmatprep.subr.mxu0 0.0
      %1018 = vmatpush1.msra.mxu0 0.0
      %1019 = vmatprep.subr.mxu0 0.0
      %1020 = vmatpush1.msra.mxu0 0.0
      %1021 = vmatprep.subr.mxu0 0.0
      %1022 = vmatpush1.msra.mxu0 0.0
      %1023 = vmatprep.subr.mxu0 0.0
      %1024 = vmatpush1.msra.mxu0 0.0
      %1025 = vmatprep.subr.mxu0 0.0
      %1026 = vmatpush1.msra.mxu0 0.0
      %1027 = vmatprep.subr.mxu0 0.0
      %1028 = vmatpush1.msra.mxu0 0.0
      %1029 = vmatprep.subr.mxu0 0.0
      %1030 = vmatpush1.msra.mxu0 0.0
      %1031 = vmatprep.mubr.f32.mxu0 0.0
      %1032 = vmatmul.mubr.f32.gmra.mrb[0].mxu0 %v460
      %v1033 = vpop.f32.mrb[0].mxu0
      %v1034 = vadd.f32 %v956, %v1033
      %v1035 = vpop.f32.mrb[0].mxu0
      %1036 = vmatprep.mubr.f32.mxu0 0.0
      %1037 = vmatmul.mubr.f32.gmra.mrb[0].mxu0 %v463
      %v1038 = vpop.f32.mrb[0].mxu0
      %v1039 = vadd.f32 %v961, %v1038
      %v1040 = vpop.f32.mrb[0].mxu0
      %1041 = vdwg.mxu0
      %1042 = vmatprep.subr.mxu0 0.0
      %1043 = vmatpush1.msra.mxu0 %v212
      %1044 = vmatprep.subr.mxu0 0.0
      %1045 = vmatpush1.msra.mxu0 %v213
      %1046 = vmatprep.subr.mxu0 0.0
      %1047 = vmatpush1.msra.mxu0 0.0
      %1048 = vmatprep.subr.mxu0 0.0
      %1049 = vmatpush1.msra.mxu0 0.0
      %1050 = vmatprep.subr.mxu0 0.0
      %1051 = vmatpush1.msra.mxu0 0.0
      %1052 = vmatprep.subr.mxu0 0.0
      %1053 = vmatpush1.msra.mxu0 0.0
      %1054 = vmatprep.subr.mxu0 0.0
      %1055 = vmatpush1.msra.mxu0 0.0
      %1056 = vmatprep.subr.mxu0 0.0
      %1057 = vmatpush1.msra.mxu0 0.0
      %1058 = vmatprep.subr.mxu0 0.0
      %1059 = vmatpush1.msra.mxu0 0.0
      %1060 = vmatprep.subr.mxu0 0.0
      %1061 = vmatpush1.msra.mxu0 0.0
      %1062 = vmatprep.subr.mxu0 0.0
      %1063 = vmatpush1.msra.mxu0 0.0
      %1064 = vmatprep.subr.mxu0 0.0
      %1065 = vmatpush1.msra.mxu0 0.0
      %1066 = vmatprep.subr.mxu0 0.0
      %1067 = vmatpush1.msra.mxu0 0.0
      %1068 = vmatprep.subr.mxu0 0.0
      %1069 = vmatpush1.msra.mxu0 0.0
      %1070 = vmatprep.subr.mxu0 0.0
      %1071 = vmatpush1.msra.mxu0 0.0
      %1072 = vmatprep.subr.mxu0 0.0
      %1073 = vmatpush1.msra.mxu0 0.0
      %1074 = vmatprep.subr.mxu0 0.0
      %1075 = vmatpush1.msra.mxu0 0.0
      %1076 = vmatprep.subr.mxu0 0.0
      %1077 = vmatpush1.msra.mxu0 0.0
      %1078 = vmatprep.subr.mxu0 0.0
      %1079 = vmatpush1.msra.mxu0 0.0
      %1080 = vmatprep.subr.mxu0 0.0
      %1081 = vmatpush1.msra.mxu0 0.0
      %1082 = vmatprep.subr.mxu0 0.0
      %1083 = vmatpush1.msra.mxu0 0.0
      %1084 = vmatprep.subr.mxu0 0.0
      %1085 = vmatpush1.msra.mxu0 0.0
      %1086 = vmatprep.subr.mxu0 0.0
      %1087 = vmatpush1.msra.mxu0 0.0
      %1088 = vmatprep.subr.mxu0 0.0
      %1089 = vmatpush1.msra.mxu0 0.0
      %1090 = vmatprep.subr.mxu0 0.0
      %1091 = vmatpush1.msra.mxu0 0.0
      %1092 = vmatprep.subr.mxu0 0.0
      %1093 = vmatpush1.msra.mxu0 0.0
      %1094 = vmatprep.subr.mxu0 0.0
      %1095 = vmatpush1.msra.mxu0 0.0
      %1096 = vmatprep.subr.mxu0 0.0
      %1097 = vmatpush1.msra.mxu0 0.0
      %1098 = vmatprep.subr.mxu0 0.0
      %1099 = vmatpush1.msra.mxu0 0.0
      %1100 = vmatprep.subr.mxu0 0.0
      %1101 = vmatpush1.msra.mxu0 0.0
      %1102 = vmatprep.subr.mxu0 0.0
      %1103 = vmatpush1.msra.mxu0 0.0
      %1104 = vmatprep.subr.mxu0 0.0
      %1105 = vmatpush1.msra.mxu0 0.0
      %1106 = vmatprep.mubr.f32.mxu0 0.0
      %1107 = vmatmul.mubr.f32.gmra.mrb[0].mxu0 %v731
      %v1108 = vpop.f32.mrb[0].mxu0
      %v1109 = vadd.f32 0.0, %v1108
      %v1110 = vpop.f32.mrb[0].mxu0
      %1111 = vmatprep.mubr.f32.mxu0 0.0
      %1112 = vmatmul.mubr.f32.gmra.mrb[0].mxu0 %v734
      %v1113 = vpop.f32.mrb[0].mxu0
      %v1114 = vadd.f32 0.0, %v1113
      %v1115 = vpop.f32.mrb[0].mxu0
      %1116 = vdwg.mxu0
      %v1118 = vsel %vm380, %v1114, 0
      %1120 = vmatprep.subr.mxu0 0.0
      %1121 = vmatpush1.msra.mxu0 %v1109
      %1122 = vmatprep.subr.mxu0 0.0
      %1123 = vmatpush1.msra.mxu0 %v1118
      %1124 = vmatprep.subr.mxu0 0.0
      %1125 = vmatpush1.msra.mxu0 0.0
      %1126 = vmatprep.subr.mxu0 0.0
      %1127 = vmatpush1.msra.mxu0 0.0
      %1128 = vmatprep.subr.mxu0 0.0
      %1129 = vmatpush1.msra.mxu0 0.0
      %1130 = vmatprep.subr.mxu0 0.0
      %1131 = vmatpush1.msra.mxu0 0.0
      %1132 = vmatprep.subr.mxu0 0.0
      %1133 = vmatpush1.msra.mxu0 0.0
      %1134 = vmatprep.subr.mxu0 0.0
      %1135 = vmatpush1.msra.mxu0 0.0
      %1136 = vmatprep.subr.mxu0 0.0
      %1137 = vmatpush1.msra.mxu0 0.0
      %1138 = vmatprep.subr.mxu0 0.0
      %1139 = vmatpush1.msra.mxu0 0.0
      %1140 = vmatprep.subr.mxu0 0.0
      %1141 = vmatpush1.msra.mxu0 0.0
      %1142 = vmatprep.subr.mxu0 0.0
      %1143 = vmatpush1.msra.mxu0 0.0
      %1144 = vmatprep.subr.mxu0 0.0
      %1145 = vmatpush1.msra.mxu0 0.0
      %1146 = vmatprep.subr.mxu0 0.0
      %1147 = vmatpush1.msra.mxu0 0.0
      %1148 = vmatprep.subr.mxu0 0.0
      %1149 = vmatpush1.msra.mxu0 0.0
      %1150 = vmatprep.subr.mxu0 0.0
      %1151 = vmatpush1.msra.mxu0 0.0
      %1152 = vmatprep.subr.mxu0 0.0
      %1153 = vmatpush1.msra.mxu0 0.0
      %1154 = vmatprep.subr.mxu0 0.0
      %1155 = vmatpush1.msra.mxu0 0.0
      %1156 = vmatprep.subr.mxu0 0.0
      %1157 = vmatpush1.msra.mxu0 0.0
      %1158 = vmatprep.subr.mxu0 0.0
      %1159 = vmatpush1.msra.mxu0 0.0
      %1160 = vmatprep.subr.mxu0 0.0
      %1161 = vmatpush1.msra.mxu0 0.0
      %1162 = vmatprep.subr.mxu0 0.0
      %1163 = vmatpush1.msra.mxu0 0.0
      %1164 = vmatprep.subr.mxu0 0.0
      %1165 = vmatpush1.msra.mxu0 0.0
      %1166 = vmatprep.subr.mxu0 0.0
      %1167 = vmatpush1.msra.mxu0 0.0
      %1168 = vmatprep.subr.mxu0 0.0
      %1169 = vmatpush1.msra.mxu0 0.0
      %1170 = vmatprep.subr.mxu0 0.0
      %1171 = vmatpush1.msra.mxu0 0.0
      %1172 = vmatprep.subr.mxu0 0.0
      %1173 = vmatpush1.msra.mxu0 0.0
      %1174 = vmatprep.subr.mxu0 0.0
      %1175 = vmatpush1.msra.mxu0 0.0
      %1176 = vmatprep.subr.mxu0 0.0
      %1177 = vmatpush1.msra.mxu0 0.0
      %1178 = vmatprep.subr.mxu0 0.0
      %1179 = vmatpush1.msra.mxu0 0.0
      %1180 = vmatprep.subr.mxu0 0.0
      %1181 = vmatpush1.msra.mxu0 0.0
      %1182 = vmatprep.subr.mxu0 0.0
      %1183 = vmatpush1.msra.mxu0 0.0
      %1184 = vmatprep.mubr.f32.mxu0 0.0
      %1185 = vmatmul.mubr.f32.gmra.mrb[0].mxu0 %v619
      %v1186 = vpop.f32.mrb[0].mxu0
      %v1187 = vadd.f32 0.0, %v1186
      %v1188 = vpop.f32.mrb[0].mxu0
      %1189 = vmatprep.mubr.f32.mxu0 0.0
      %1190 = vmatmul.mubr.f32.gmra.mrb[0].mxu0 %v622
      %v1191 = vpop.f32.mrb[0].mxu0
      %v1192 = vadd.f32 0.0, %v1191
      %v1193 = vpop.f32.mrb[0].mxu0
      %1194 = vdwg.mxu0
      %v1195 = vadd.f32 %v1034, %v1187
      %v1196 = vadd.f32 %v1039, %v1192
      %v1197 = vadd.f32 %v1195, %v707
      %v1198 = vadd.f32 %v1196, %v712
      %v1199 = vand.u32 2147483647, %v1198
      %v1200 = vsub.f32 0.0, %v1199
      %v1201 = vmul.f32 %v1200, 1.442695
      %v1202 = vpow.pop %v1201
      %vm1203 = vcmp.ge.f32.partialorder %v1198, 0.0
      %v1204 = vsel %vm1203, 1.0, %v1202
      %v1205 = vadd.f32 %v1202, 1.0
      %v1206 = vrcp.pop %v1205
      %v1207 = vmul.f32 %v1204, %v1206
      %v1208 = vmul.f32 %v1197, %v1207
      %1210 = vrot.lane.b32.xlu0 %v1208, 7
      %v1211 = vpop.permute.xlu0 %1210
      %vm1213 = vcmask 113720
      %1214 = vst.msk [vmem:[%s195] sm:$0xff] %vm1213, %v1211
      %v1215 = vld [vmem:[%s191 + $0x10] sm:$0xff]
      %v1216 = vld [vmem:[%s191 + $0x18] sm:$0xf]
      %v1218 = vsel %vm216, %v1215, 0
      %v1221 = vsel %vm216, %v1216, 0
      %1223 = vmatprep.subr.mxu0 0.0
      %1224 = vmatpush1.msra.mxu0 %v206
      %1225 = vmatprep.subr.mxu0 0.0
      %1226 = vmatpush1.msra.mxu0 %v207
      %1227 = vmatprep.subr.mxu0 0.0
      %1228 = vmatpush1.msra.mxu0 0.0
      %1229 = vmatprep.subr.mxu0 0.0
      %1230 = vmatpush1.msra.mxu0 0.0
      %1231 = vmatprep.subr.mxu0 0.0
      %1232 = vmatpush1.msra.mxu0 0.0
      %1233 = vmatprep.subr.mxu0 0.0
      %1234 = vmatpush1.msra.mxu0 0.0
      %1235 = vmatprep.subr.mxu0 0.0
      %1236 = vmatpush1.msra.mxu0 0.0
      %1237 = vmatprep.subr.mxu0 0.0
      %1238 = vmatpush1.msra.mxu0 0.0
      %1239 = vmatprep.subr.mxu0 0.0
      %1240 = vmatpush1.msra.mxu0 0.0
      %1241 = vmatprep.subr.mxu0 0.0
      %1242 = vmatpush1.msra.mxu0 0.0
      %1243 = vmatprep.subr.mxu0 0.0
      %1244 = vmatpush1.msra.mxu0 0.0
      %1245 = vmatprep.subr.mxu0 0.0
      %1246 = vmatpush1.msra.mxu0 0.0
      %1247 = vmatprep.subr.mxu0 0.0
      %1248 = vmatpush1.msra.mxu0 0.0
      %1249 = vmatprep.subr.mxu0 0.0
      %1250 = vmatpush1.msra.mxu0 0.0
      %1251 = vmatprep.subr.mxu0 0.0
      %1252 = vmatpush1.msra.mxu0 0.0
      %1253 = vmatprep.subr.mxu0 0.0
      %1254 = vmatpush1.msra.mxu0 0.0
      %1255 = vmatprep.subr.mxu0 0.0
      %1256 = vmatpush1.msra.mxu0 0.0
      %1257 = vmatprep.subr.mxu0 0.0
      %1258 = vmatpush1.msra.mxu0 0.0
      %1259 = vmatprep.subr.mxu0 0.0
      %1260 = vmatpush1.msra.mxu0 0.0
      %1261 = vmatprep.subr.mxu0 0.0
      %1262 = vmatpush1.msra.mxu0 0.0
      %1263 = vmatprep.subr.mxu0 0.0
      %1264 = vmatpush1.msra.mxu0 0.0
      %1265 = vmatprep.subr.mxu0 0.0
      %1266 = vmatpush1.msra.mxu0 0.0
      %1267 = vmatprep.subr.mxu0 0.0
      %1268 = vmatpush1.msra.mxu0 0.0
      %1269 = vmatprep.subr.mxu0 0.0
      %1270 = vmatpush1.msra.mxu0 0.0
      %1271 = vmatprep.subr.mxu0 0.0
      %1272 = vmatpush1.msra.mxu0 0.0
      %1273 = vmatprep.subr.mxu0 0.0
      %1274 = vmatpush1.msra.mxu0 0.0
      %1275 = vmatprep.subr.mxu0 0.0
      %1276 = vmatpush1.msra.mxu0 0.0
      %1277 = vmatprep.subr.mxu0 0.0
      %1278 = vmatpush1.msra.mxu0 0.0
      %1279 = vmatprep.subr.mxu0 0.0
      %1280 = vmatpush1.msra.mxu0 0.0
      %1281 = vmatprep.subr.mxu0 0.0
      %1282 = vmatpush1.msra.mxu0 0.0
      %1283 = vmatprep.subr.mxu0 0.0
      %1284 = vmatpush1.msra.mxu0 0.0
      %1285 = vmatprep.subr.mxu0 0.0
      %1286 = vmatpush1.msra.mxu0 0.0
      %1287 = vmatprep.mubr.f32.mxu0 0.0
      %1288 = vmatmul.mubr.f32.gmra.mrb[0].mxu0 %v1218
      %v1289 = vpop.f32.mrb[0].mxu0
      %v1290 = vadd.f32 0.0, %v1289
      %v1291 = vpop.f32.mrb[0].mxu0
      %1292 = vmatprep.mubr.f32.mxu0 0.0
      %1293 = vmatmul.mubr.f32.gmra.mrb[0].mxu0 %v1221
      %v1294 = vpop.f32.mrb[0].mxu0
      %v1295 = vadd.f32 0.0, %v1294
      %v1296 = vpop.f32.mrb[0].mxu0
      %1297 = vdwg.mxu0
      %1298 = vmatprep.subr.mxu0 0.0
      %1299 = vmatpush1.msra.mxu0 %v209
      %1300 = vmatprep.subr.mxu0 0.0
      %1301 = vmatpush1.msra.mxu0 %v210
      %1302 = vmatprep.subr.mxu0 0.0
      %1303 = vmatpush1.msra.mxu0 0.0
      %1304 = vmatprep.subr.mxu0 0.0
      %1305 = vmatpush1.msra.mxu0 0.0
      %1306 = vmatprep.subr.mxu0 0.0
      %1307 = vmatpush1.msra.mxu0 0.0
      %1308 = vmatprep.subr.mxu0 0.0
      %1309 = vmatpush1.msra.mxu0 0.0
      %1310 = vmatprep.subr.mxu0 0.0
      %1311 = vmatpush1.msra.mxu0 0.0
      %1312 = vmatprep.subr.mxu0 0.0
      %1313 = vmatpush1.msra.mxu0 0.0
      %1314 = vmatprep.subr.mxu0 0.0
      %1315 = vmatpush1.msra.mxu0 0.0
      %1316 = vmatprep.subr.mxu0 0.0
      %1317 = vmatpush1.msra.mxu0 0.0
      %1318 = vmatprep.subr.mxu0 0.0
      %1319 = vmatpush1.msra.mxu0 0.0
      %1320 = vmatprep.subr.mxu0 0.0
      %1321 = vmatpush1.msra.mxu0 0.0
      %1322 = vmatprep.subr.mxu0 0.0
      %1323 = vmatpush1.msra.mxu0 0.0
      %1324 = vmatprep.subr.mxu0 0.0
      %1325 = vmatpush1.msra.mxu0 0.0
      %1326 = vmatprep.subr.mxu0 0.0
      %1327 = vmatpush1.msra.mxu0 0.0
      %1328 = vmatprep.subr.mxu0 0.0
      %1329 = vmatpush1.msra.mxu0 0.0
      %1330 = vmatprep.subr.mxu0 0.0
      %1331 = vmatpush1.msra.mxu0 0.0
      %1332 = vmatprep.subr.mxu0 0.0
      %1333 = vmatpush1.msra.mxu0 0.0
      %1334 = vmatprep.subr.mxu0 0.0
      %1335 = vmatpush1.msra.mxu0 0.0
      %1336 = vmatprep.subr.mxu0 0.0
      %1337 = vmatpush1.msra.mxu0 0.0
      %1338 = vmatprep.subr.mxu0 0.0
      %1339 = vmatpush1.msra.mxu0 0.0
      %1340 = vmatprep.subr.mxu0 0.0
      %1341 = vmatpush1.msra.mxu0 0.0
      %1342 = vmatprep.subr.mxu0 0.0
      %1343 = vmatpush1.msra.mxu0 0.0
      %1344 = vmatprep.subr.mxu0 0.0
      %1345 = vmatpush1.msra.mxu0 0.0
      %1346 = vmatprep.subr.mxu0 0.0
      %1347 = vmatpush1.msra.mxu0 0.0
      %1348 = vmatprep.subr.mxu0 0.0
      %1349 = vmatpush1.msra.mxu0 0.0
      %1350 = vmatprep.subr.mxu0 0.0
      %1351 = vmatpush1.msra.mxu0 0.0
      %1352 = vmatprep.subr.mxu0 0.0
      %1353 = vmatpush1.msra.mxu0 0.0
      %1354 = vmatprep.subr.mxu0 0.0
      %1355 = vmatpush1.msra.mxu0 0.0
      %1356 = vmatprep.subr.mxu0 0.0
      %1357 = vmatpush1.msra.mxu0 0.0
      %1358 = vmatprep.subr.mxu0 0.0
      %1359 = vmatpush1.msra.mxu0 0.0
      %1360 = vmatprep.subr.mxu0 0.0
      %1361 = vmatpush1.msra.mxu0 0.0
      %1362 = vmatprep.mubr.f32.mxu0 0.0
      %1363 = vmatmul.mubr.f32.gmra.mrb[0].mxu0 %v1218
      %v1364 = vpop.f32.mrb[0].mxu0
      %v1365 = vadd.f32 0.0, %v1364
      %v1366 = vpop.f32.mrb[0].mxu0
      %1367 = vmatprep.mubr.f32.mxu0 0.0
      %1368 = vmatmul.mubr.f32.gmra.mrb[0].mxu0 %v1221
      %v1369 = vpop.f32.mrb[0].mxu0
      %v1370 = vadd.f32 0.0, %v1369
      %v1371 = vpop.f32.mrb[0].mxu0
      %1372 = vdwg.mxu0
      %v1374 = vsel %vm380, %v1370, 0
      %1376 = vmatprep.subr.mxu0 0.0
      %1377 = vmatpush1.msra.mxu0 %v1365
      %1378 = vmatprep.subr.mxu0 0.0
      %1379 = vmatpush1.msra.mxu0 %v1374
      %1380 = vmatprep.subr.mxu0 0.0
      %1381 = vmatpush1.msra.mxu0 0.0
      %1382 = vmatprep.subr.mxu0 0.0
      %1383 = vmatpush1.msra.mxu0 0.0
      %1384 = vmatprep.subr.mxu0 0.0
      %1385 = vmatpush1.msra.mxu0 0.0
      %1386 = vmatprep.subr.mxu0 0.0
      %1387 = vmatpush1.msra.mxu0 0.0
      %1388 = vmatprep.subr.mxu0 0.0
      %1389 = vmatpush1.msra.mxu0 0.0
      %1390 = vmatprep.subr.mxu0 0.0
      %1391 = vmatpush1.msra.mxu0 0.0
      %1392 = vmatprep.subr.mxu0 0.0
      %1393 = vmatpush1.msra.mxu0 0.0
      %1394 = vmatprep.subr.mxu0 0.0
      %1395 = vmatpush1.msra.mxu0 0.0
      %1396 = vmatprep.subr.mxu0 0.0
      %1397 = vmatpush1.msra.mxu0 0.0
      %1398 = vmatprep.subr.mxu0 0.0
      %1399 = vmatpush1.msra.mxu0 0.0
      %1400 = vmatprep.subr.mxu0 0.0
      %1401 = vmatpush1.msra.mxu0 0.0
      %1402 = vmatprep.subr.mxu0 0.0
      %1403 = vmatpush1.msra.mxu0 0.0
      %1404 = vmatprep.subr.mxu0 0.0
      %1405 = vmatpush1.msra.mxu0 0.0
      %1406 = vmatprep.subr.mxu0 0.0
      %1407 = vmatpush1.msra.mxu0 0.0
      %1408 = vmatprep.subr.mxu0 0.0
      %1409 = vmatpush1.msra.mxu0 0.0
      %1410 = vmatprep.subr.mxu0 0.0
      %1411 = vmatpush1.msra.mxu0 0.0
      %1412 = vmatprep.subr.mxu0 0.0
      %1413 = vmatpush1.msra.mxu0 0.0
      %1414 = vmatprep.subr.mxu0 0.0
      %1415 = vmatpush1.msra.mxu0 0.0
      %1416 = vmatprep.subr.mxu0 0.0
      %1417 = vmatpush1.msra.mxu0 0.0
      %1418 = vmatprep.subr.mxu0 0.0
      %1419 = vmatpush1.msra.mxu0 0.0
      %1420 = vmatprep.subr.mxu0 0.0
      %1421 = vmatpush1.msra.mxu0 0.0
      %1422 = vmatprep.subr.mxu0 0.0
      %1423 = vmatpush1.msra.mxu0 0.0
      %1424 = vmatprep.subr.mxu0 0.0
      %1425 = vmatpush1.msra.mxu0 0.0
      %1426 = vmatprep.subr.mxu0 0.0
      %1427 = vmatpush1.msra.mxu0 0.0
      %1428 = vmatprep.subr.mxu0 0.0
      %1429 = vmatpush1.msra.mxu0 0.0
      %1430 = vmatprep.subr.mxu0 0.0
      %1431 = vmatpush1.msra.mxu0 0.0
      %1432 = vmatprep.subr.mxu0 0.0
      %1433 = vmatpush1.msra.mxu0 0.0
      %1434 = vmatprep.subr.mxu0 0.0
      %1435 = vmatpush1.msra.mxu0 0.0
      %1436 = vmatprep.subr.mxu0 0.0
      %1437 = vmatpush1.msra.mxu0 0.0
      %1438 = vmatprep.subr.mxu0 0.0
      %1439 = vmatpush1.msra.mxu0 0.0
      %1440 = vmatprep.mubr.f32.mxu0 0.0
      %1441 = vmatmul.mubr.f32.gmra.mrb[0].mxu0 %v375
      %v1442 = vpop.f32.mrb[0].mxu0
      %v1443 = vadd.f32 0.0, %v1442
      %v1444 = vpop.f32.mrb[0].mxu0
      %1445 = vmatprep.mubr.f32.mxu0 0.0
      %1446 = vmatmul.mubr.f32.gmra.mrb[0].mxu0 %v378
      %v1447 = vpop.f32.mrb[0].mxu0
      %v1448 = vadd.f32 0.0, %v1447
      %v1449 = vpop.f32.mrb[0].mxu0
      %1450 = vdwg.mxu0
      %v1452 = vsel %vm380, %v1295, 0
      %1454 = vmatprep.subr.mxu0 0.0
      %1455 = vmatpush1.msra.mxu0 %v1290
      %1456 = vmatprep.subr.mxu0 0.0
      %1457 = vmatpush1.msra.mxu0 %v1452
      %1458 = vmatprep.subr.mxu0 0.0
      %1459 = vmatpush1.msra.mxu0 0.0
      %1460 = vmatprep.subr.mxu0 0.0
      %1461 = vmatpush1.msra.mxu0 0.0
      %1462 = vmatprep.subr.mxu0 0.0
      %1463 = vmatpush1.msra.mxu0 0.0
      %1464 = vmatprep.subr.mxu0 0.0
      %1465 = vmatpush1.msra.mxu0 0.0
      %1466 = vmatprep.subr.mxu0 0.0
      %1467 = vmatpush1.msra.mxu0 0.0
      %1468 = vmatprep.subr.mxu0 0.0
      %1469 = vmatpush1.msra.mxu0 0.0
      %1470 = vmatprep.subr.mxu0 0.0
      %1471 = vmatpush1.msra.mxu0 0.0
      %1472 = vmatprep.subr.mxu0 0.0
      %1473 = vmatpush1.msra.mxu0 0.0
      %1474 = vmatprep.subr.mxu0 0.0
      %1475 = vmatpush1.msra.mxu0 0.0
      %1476 = vmatprep.subr.mxu0 0.0
      %1477 = vmatpush1.msra.mxu0 0.0
      %1478 = vmatprep.subr.mxu0 0.0
      %1479 = vmatpush1.msra.mxu0 0.0
      %1480 = vmatprep.subr.mxu0 0.0
      %1481 = vmatpush1.msra.mxu0 0.0
      %1482 = vmatprep.subr.mxu0 0.0
      %1483 = vmatpush1.msra.mxu0 0.0
      %1484 = vmatprep.subr.mxu0 0.0
      %1485 = vmatpush1.msra.mxu0 0.0
      %1486 = vmatprep.subr.mxu0 0.0
      %1487 = vmatpush1.msra.mxu0 0.0
      %1488 = vmatprep.subr.mxu0 0.0
      %1489 = vmatpush1.msra.mxu0 0.0
      %1490 = vmatprep.subr.mxu0 0.0
      %1491 = vmatpush1.msra.mxu0 0.0
      %1492 = vmatprep.subr.mxu0 0.0
      %1493 = vmatpush1.msra.mxu0 0.0
      %1494 = vmatprep.subr.mxu0 0.0
      %1495 = vmatpush1.msra.mxu0 0.0
      %1496 = vmatprep.subr.mxu0 0.0
      %1497 = vmatpush1.msra.mxu0 0.0
      %1498 = vmatprep.subr.mxu0 0.0
      %1499 = vmatpush1.msra.mxu0 0.0
      %1500 = vmatprep.subr.mxu0 0.0
      %1501 = vmatpush1.msra.mxu0 0.0
      %1502 = vmatprep.subr.mxu0 0.0
      %1503 = vmatpush1.msra.mxu0 0.0
      %1504 = vmatprep.subr.mxu0 0.0
      %1505 = vmatpush1.msra.mxu0 0.0
      %1506 = vmatprep.subr.mxu0 0.0
      %1507 = vmatpush1.msra.mxu0 0.0
      %1508 = vmatprep.subr.mxu0 0.0
      %1509 = vmatpush1.msra.mxu0 0.0
      %1510 = vmatprep.subr.mxu0 0.0
      %1511 = vmatpush1.msra.mxu0 0.0
      %1512 = vmatprep.subr.mxu0 0.0
      %1513 = vmatpush1.msra.mxu0 0.0
      %1514 = vmatprep.subr.mxu0 0.0
      %1515 = vmatpush1.msra.mxu0 0.0
      %1516 = vmatprep.subr.mxu0 0.0
      %1517 = vmatpush1.msra.mxu0 0.0
      %1518 = vmatprep.mubr.f32.mxu0 0.0
      %1519 = vmatmul.mubr.f32.gmra.mrb[0].mxu0 %v460
      %v1520 = vpop.f32.mrb[0].mxu0
      %v1521 = vadd.f32 %v1443, %v1520
      %v1522 = vpop.f32.mrb[0].mxu0
      %1523 = vmatprep.mubr.f32.mxu0 0.0
      %1524 = vmatmul.mubr.f32.gmra.mrb[0].mxu0 %v463
      %v1525 = vpop.f32.mrb[0].mxu0
      %v1526 = vadd.f32 %v1448, %v1525
      %v1527 = vpop.f32.mrb[0].mxu0
      %1528 = vdwg.mxu0
      %1529 = vmatprep.subr.mxu0 0.0
      %1530 = vmatpush1.msra.mxu0 %v212
      %1531 = vmatprep.subr.mxu0 0.0
      %1532 = vmatpush1.msra.mxu0 %v213
      %1533 = vmatprep.subr.mxu0 0.0
      %1534 = vmatpush1.msra.mxu0 0.0
      %1535 = vmatprep.subr.mxu0 0.0
      %1536 = vmatpush1.msra.mxu0 0.0
      %1537 = vmatprep.subr.mxu0 0.0
      %1538 = vmatpush1.msra.mxu0 0.0
      %1539 = vmatprep.subr.mxu0 0.0
      %1540 = vmatpush1.msra.mxu0 0.0
      %1541 = vmatprep.subr.mxu0 0.0
      %1542 = vmatpush1.msra.mxu0 0.0
      %1543 = vmatprep.subr.mxu0 0.0
      %1544 = vmatpush1.msra.mxu0 0.0
      %1545 = vmatprep.subr.mxu0 0.0
      %1546 = vmatpush1.msra.mxu0 0.0
      %1547 = vmatprep.subr.mxu0 0.0
      %1548 = vmatpush1.msra.mxu0 0.0
      %1549 = vmatprep.subr.mxu0 0.0
      %1550 = vmatpush1.msra.mxu0 0.0
      %1551 = vmatprep.subr.mxu0 0.0
      %1552 = vmatpush1.msra.mxu0 0.0
      %1553 = vmatprep.subr.mxu0 0.0
      %1554 = vmatpush1.msra.mxu0 0.0
      %1555 = vmatprep.subr.mxu0 0.0
      %1556 = vmatpush1.msra.mxu0 0.0
      %1557 = vmatprep.subr.mxu0 0.0
      %1558 = vmatpush1.msra.mxu0 0.0
      %1559 = vmatprep.subr.mxu0 0.0
      %1560 = vmatpush1.msra.mxu0 0.0
      %1561 = vmatprep.subr.mxu0 0.0
      %1562 = vmatpush1.msra.mxu0 0.0
      %1563 = vmatprep.subr.mxu0 0.0
      %1564 = vmatpush1.msra.mxu0 0.0
      %1565 = vmatprep.subr.mxu0 0.0
      %1566 = vmatpush1.msra.mxu0 0.0
      %1567 = vmatprep.subr.mxu0 0.0
      %1568 = vmatpush1.msra.mxu0 0.0
      %1569 = vmatprep.subr.mxu0 0.0
      %1570 = vmatpush1.msra.mxu0 0.0
      %1571 = vmatprep.subr.mxu0 0.0
      %1572 = vmatpush1.msra.mxu0 0.0
      %1573 = vmatprep.subr.mxu0 0.0
      %1574 = vmatpush1.msra.mxu0 0.0
      %1575 = vmatprep.subr.mxu0 0.0
      %1576 = vmatpush1.msra.mxu0 0.0
      %1577 = vmatprep.subr.mxu0 0.0
      %1578 = vmatpush1.msra.mxu0 0.0
      %1579 = vmatprep.subr.mxu0 0.0
      %1580 = vmatpush1.msra.mxu0 0.0
      %1581 = vmatprep.subr.mxu0 0.0
      %1582 = vmatpush1.msra.mxu0 0.0
      %1583 = vmatprep.subr.mxu0 0.0
      %1584 = vmatpush1.msra.mxu0 0.0
      %1585 = vmatprep.subr.mxu0 0.0
      %1586 = vmatpush1.msra.mxu0 0.0
      %1587 = vmatprep.subr.mxu0 0.0
      %1588 = vmatpush1.msra.mxu0 0.0
      %1589 = vmatprep.subr.mxu0 0.0
      %1590 = vmatpush1.msra.mxu0 0.0
      %1591 = vmatprep.subr.mxu0 0.0
      %1592 = vmatpush1.msra.mxu0 0.0
      %1593 = vmatprep.mubr.f32.mxu0 0.0
      %1594 = vmatmul.mubr.f32.gmra.mrb[0].mxu0 %v1218
      %v1595 = vpop.f32.mrb[0].mxu0
      %v1596 = vadd.f32 0.0, %v1595
      %v1597 = vpop.f32.mrb[0].mxu0
      %1598 = vmatprep.mubr.f32.mxu0 0.0
      %1599 = vmatmul.mubr.f32.gmra.mrb[0].mxu0 %v1221
      %v1600 = vpop.f32.mrb[0].mxu0
      %v1601 = vadd.f32 0.0, %v1600
      %v1602 = vpop.f32.mrb[0].mxu0
      %1603 = vdwg.mxu0
      %v1605 = vsel %vm380, %v1601, 0
      %1607 = vmatprep.subr.mxu0 0.0
      %1608 = vmatpush1.msra.mxu0 %v1596
      %1609 = vmatprep.subr.mxu0 0.0
      %1610 = vmatpush1.msra.mxu0 %v1605
      %1611 = vmatprep.subr.mxu0 0.0
      %1612 = vmatpush1.msra.mxu0 0.0
      %1613 = vmatprep.subr.mxu0 0.0
      %1614 = vmatpush1.msra.mxu0 0.0
      %1615 = vmatprep.subr.mxu0 0.0
      %1616 = vmatpush1.msra.mxu0 0.0
      %1617 = vmatprep.subr.mxu0 0.0
      %1618 = vmatpush1.msra.mxu0 0.0
      %1619 = vmatprep.subr.mxu0 0.0
      %1620 = vmatpush1.msra.mxu0 0.0
      %1621 = vmatprep.subr.mxu0 0.0
      %1622 = vmatpush1.msra.mxu0 0.0
      %1623 = vmatprep.subr.mxu0 0.0
      %1624 = vmatpush1.msra.mxu0 0.0
      %1625 = vmatprep.subr.mxu0 0.0
      %1626 = vmatpush1.msra.mxu0 0.0
      %1627 = vmatprep.subr.mxu0 0.0
      %1628 = vmatpush1.msra.mxu0 0.0
      %1629 = vmatprep.subr.mxu0 0.0
      %1630 = vmatpush1.msra.mxu0 0.0
      %1631 = vmatprep.subr.mxu0 0.0
      %1632 = vmatpush1.msra.mxu0 0.0
      %1633 = vmatprep.subr.mxu0 0.0
      %1634 = vmatpush1.msra.mxu0 0.0
      %1635 = vmatprep.subr.mxu0 0.0
      %1636 = vmatpush1.msra.mxu0 0.0
      %1637 = vmatprep.subr.mxu0 0.0
      %1638 = vmatpush1.msra.mxu0 0.0
      %1639 = vmatprep.subr.mxu0 0.0
      %1640 = vmatpush1.msra.mxu0 0.0
      %1641 = vmatprep.subr.mxu0 0.0
      %1642 = vmatpush1.msra.mxu0 0.0
      %1643 = vmatprep.subr.mxu0 0.0
      %1644 = vmatpush1.msra.mxu0 0.0
      %1645 = vmatprep.subr.mxu0 0.0
      %1646 = vmatpush1.msra.mxu0 0.0
      %1647 = vmatprep.subr.mxu0 0.0
      %1648 = vmatpush1.msra.mxu0 0.0
      %1649 = vmatprep.subr.mxu0 0.0
      %1650 = vmatpush1.msra.mxu0 0.0
      %1651 = vmatprep.subr.mxu0 0.0
      %1652 = vmatpush1.msra.mxu0 0.0
      %1653 = vmatprep.subr.mxu0 0.0
      %1654 = vmatpush1.msra.mxu0 0.0
      %1655 = vmatprep.subr.mxu0 0.0
      %1656 = vmatpush1.msra.mxu0 0.0
      %1657 = vmatprep.subr.mxu0 0.0
      %1658 = vmatpush1.msra.mxu0 0.0
      %1659 = vmatprep.subr.mxu0 0.0
      %1660 = vmatpush1.msra.mxu0 0.0
      %1661 = vmatprep.subr.mxu0 0.0
      %1662 = vmatpush1.msra.mxu0 0.0
      %1663 = vmatprep.subr.mxu0 0.0
      %1664 = vmatpush1.msra.mxu0 0.0
      %1665 = vmatprep.subr.mxu0 0.0
      %1666 = vmatpush1.msra.mxu0 0.0
      %1667 = vmatprep.subr.mxu0 0.0
      %1668 = vmatpush1.msra.mxu0 0.0
      %1669 = vmatprep.subr.mxu0 0.0
      %1670 = vmatpush1.msra.mxu0 0.0
      %1671 = vmatprep.mubr.f32.mxu0 0.0
      %1672 = vmatmul.mubr.f32.gmra.mrb[0].mxu0 %v619
      %v1673 = vpop.f32.mrb[0].mxu0
      %v1674 = vadd.f32 0.0, %v1673
      %v1675 = vpop.f32.mrb[0].mxu0
      %1676 = vmatprep.mubr.f32.mxu0 0.0
      %1677 = vmatmul.mubr.f32.gmra.mrb[0].mxu0 %v622
      %v1678 = vpop.f32.mrb[0].mxu0
      %v1679 = vadd.f32 0.0, %v1678
      %v1680 = vpop.f32.mrb[0].mxu0
      %1681 = vdwg.mxu0
      %v1682 = vadd.f32 %v1521, %v1674
      %v1683 = vadd.f32 %v1526, %v1679
      %v1684 = vadd.f32 %v1682, %v707
      %v1685 = vadd.f32 %v1683, %v712
      %v1686 = vand.u32 2147483647, %v1685
      %v1687 = vsub.f32 0.0, %v1686
      %v1688 = vmul.f32 %v1687, 1.442695
      %v1689 = vpow.pop %v1688
      %vm1690 = vcmp.ge.f32.partialorder %v1685, 0.0
      %v1691 = vsel %vm1690, 1.0, %v1689
      %v1692 = vadd.f32 %v1689, 1.0
      %v1693 = vrcp.pop %v1692
      %v1694 = vmul.f32 %v1691, %v1693
      %v1695 = vmul.f32 %v1684, %v1694
      %1697 = vrot.lane.b32.xlu0 %v1695, 14
      %v1698 = vpop.permute.xlu0 %1697
      %vm1700 = vcmask 171120
      %1701 = vst.msk [vmem:[%s195] sm:$0xff] %vm1700, %v1698
      %v1702 = vld [vmem:[%s191 + $0x18] sm:$0xff]
      %v1703 = vld [vmem:[%s191 + $0x20] sm:$0xf]
      %v1705 = vsel %vm216, %v1702, 0
      %v1708 = vsel %vm216, %v1703, 0
      %1710 = vmatprep.subr.mxu0 0.0
      %1711 = vmatpush1.msra.mxu0 %v206
      %1712 = vmatprep.subr.mxu0 0.0
      %1713 = vmatpush1.msra.mxu0 %v207
      %1714 = vmatprep.subr.mxu0 0.0
      %1715 = vmatpush1.msra.mxu0 0.0
      %1716 = vmatprep.subr.mxu0 0.0
      %1717 = vmatpush1.msra.mxu0 0.0
      %1718 = vmatprep.subr.mxu0 0.0
      %1719 = vmatpush1.msra.mxu0 0.0
      %1720 = vmatprep.subr.mxu0 0.0
      %1721 = vmatpush1.msra.mxu0 0.0
      %1722 = vmatprep.subr.mxu0 0.0
      %1723 = vmatpush1.msra.mxu0 0.0
      %1724 = vmatprep.subr.mxu0 0.0
      %1725 = vmatpush1.msra.mxu0 0.0
      %1726 = vmatprep.subr.mxu0 0.0
      %1727 = vmatpush1.msra.mxu0 0.0
      %1728 = vmatprep.subr.mxu0 0.0
      %1729 = vmatpush1.msra.mxu0 0.0
      %1730 = vmatprep.subr.mxu0 0.0
      %1731 = vmatpush1.msra.mxu0 0.0
      %1732 = vmatprep.subr.mxu0 0.0
      %1733 = vmatpush1.msra.mxu0 0.0
      %1734 = vmatprep.subr.mxu0 0.0
      %1735 = vmatpush1.msra.mxu0 0.0
      %1736 = vmatprep.subr.mxu0 0.0
      %1737 = vmatpush1.msra.mxu0 0.0
      %1738 = vmatprep.subr.mxu0 0.0
      %1739 = vmatpush1.msra.mxu0 0.0
      %1740 = vmatprep.subr.mxu0 0.0
      %1741 = vmatpush1.msra.mxu0 0.0
      %1742 = vmatprep.subr.mxu0 0.0
      %1743 = vmatpush1.msra.mxu0 0.0
      %1744 = vmatprep.subr.mxu0 0.0
      %1745 = vmatpush1.msra.mxu0 0.0
      %1746 = vmatprep.subr.mxu0 0.0
      %1747 = vmatpush1.msra.mxu0 0.0
      %1748 = vmatprep.subr.mxu0 0.0
      %1749 = vmatpush1.msra.mxu0 0.0
      %1750 = vmatprep.subr.mxu0 0.0
      %1751 = vmatpush1.msra.mxu0 0.0
      %1752 = vmatprep.subr.mxu0 0.0
      %1753 = vmatpush1.msra.mxu0 0.0
      %1754 = vmatprep.subr.mxu0 0.0
      %1755 = vmatpush1.msra.mxu0 0.0
      %1756 = vmatprep.subr.mxu0 0.0
      %1757 = vmatpush1.msra.mxu0 0.0
      %1758 = vmatprep.subr.mxu0 0.0
      %1759 = vmatpush1.msra.mxu0 0.0
      %1760 = vmatprep.subr.mxu0 0.0
      %1761 = vmatpush1.msra.mxu0 0.0
      %1762 = vmatprep.subr.mxu0 0.0
      %1763 = vmatpush1.msra.mxu0 0.0
      %1764 = vmatprep.subr.mxu0 0.0
      %1765 = vmatpush1.msra.mxu0 0.0
      %1766 = vmatprep.subr.mxu0 0.0
      %1767 = vmatpush1.msra.mxu0 0.0
      %1768 = vmatprep.subr.mxu0 0.0
      %1769 = vmatpush1.msra.mxu0 0.0
      %1770 = vmatprep.subr.mxu0 0.0
      %1771 = vmatpush1.msra.mxu0 0.0
      %1772 = vmatprep.subr.mxu0 0.0
      %1773 = vmatpush1.msra.mxu0 0.0
      %1774 = vmatprep.mubr.f32.mxu0 0.0
      %1775 = vmatmul.mubr.f32.gmra.mrb[0].mxu0 %v1705
      %v1776 = vpop.f32.mrb[0].mxu0
      %v1777 = vadd.f32 0.0, %v1776
      %v1778 = vpop.f32.mrb[0].mxu0
      %1779 = vmatprep.mubr.f32.mxu0 0.0
      %1780 = vmatmul.mubr.f32.gmra.mrb[0].mxu0 %v1708
      %v1781 = vpop.f32.mrb[0].mxu0
      %v1782 = vadd.f32 0.0, %v1781
      %v1783 = vpop.f32.mrb[0].mxu0
      %1784 = vdwg.mxu0
      %1785 = vmatprep.subr.mxu0 0.0
      %1786 = vmatpush1.msra.mxu0 %v209
      %1787 = vmatprep.subr.mxu0 0.0
      %1788 = vmatpush1.msra.mxu0 %v210
      %1789 = vmatprep.subr.mxu0 0.0
      %1790 = vmatpush1.msra.mxu0 0.0
      %1791 = vmatprep.subr.mxu0 0.0
      %1792 = vmatpush1.msra.mxu0 0.0
      %1793 = vmatprep.subr.mxu0 0.0
      %1794 = vmatpush1.msra.mxu0 0.0
      %1795 = vmatprep.subr.mxu0 0.0
      %1796 = vmatpush1.msra.mxu0 0.0
      %1797 = vmatprep.subr.mxu0 0.0
      %1798 = vmatpush1.msra.mxu0 0.0
      %1799 = vmatprep.subr.mxu0 0.0
      %1800 = vmatpush1.msra.mxu0 0.0
      %1801 = vmatprep.subr.mxu0 0.0
      %1802 = vmatpush1.msra.mxu0 0.0
      %1803 = vmatprep.subr.mxu0 0.0
      %1804 = vmatpush1.msra.mxu0 0.0
      %1805 = vmatprep.subr.mxu0 0.0
      %1806 = vmatpush1.msra.mxu0 0.0
      %1807 = vmatprep.subr.mxu0 0.0
      %1808 = vmatpush1.msra.mxu0 0.0
      %1809 = vmatprep.subr.mxu0 0.0
      %1810 = vmatpush1.msra.mxu0 0.0
      %1811 = vmatprep.subr.mxu0 0.0
      %1812 = vmatpush1.msra.mxu0 0.0
      %1813 = vmatprep.subr.mxu0 0.0
      %1814 = vmatpush1.msra.mxu0 0.0
      %1815 = vmatprep.subr.mxu0 0.0
      %1816 = vmatpush1.msra.mxu0 0.0
      %1817 = vmatprep.subr.mxu0 0.0
      %1818 = vmatpush1.msra.mxu0 0.0
      %1819 = vmatprep.subr.mxu0 0.0
      %1820 = vmatpush1.msra.mxu0 0.0
      %1821 = vmatprep.subr.mxu0 0.0
      %1822 = vmatpush1.msra.mxu0 0.0
      %1823 = vmatprep.subr.mxu0 0.0
      %1824 = vmatpush1.msra.mxu0 0.0
      %1825 = vmatprep.subr.mxu0 0.0
      %1826 = vmatpush1.msra.mxu0 0.0
      %1827 = vmatprep.subr.mxu0 0.0
      %1828 = vmatpush1.msra.mxu0 0.0
      %1829 = vmatprep.subr.mxu0 0.0
      %1830 = vmatpush1.msra.mxu0 0.0
      %1831 = vmatprep.subr.mxu0 0.0
      %1832 = vmatpush1.msra.mxu0 0.0
      %1833 = vmatprep.subr.mxu0 0.0
      %1834 = vmatpush1.msra.mxu0 0.0
      %1835 = vmatprep.subr.mxu0 0.0
      %1836 = vmatpush1.msra.mxu0 0.0
      %1837 = vmatprep.subr.mxu0 0.0
      %1838 = vmatpush1.msra.mxu0 0.0
      %1839 = vmatprep.subr.mxu0 0.0
      %1840 = vmatpush1.msra.mxu0 0.0
      %1841 = vmatprep.subr.mxu0 0.0
      %1842 = vmatpush1.msra.mxu0 0.0
      %1843 = vmatprep.subr.mxu0 0.0
      %1844 = vmatpush1.msra.mxu0 0.0
      %1845 = vmatprep.subr.mxu0 0.0
      %1846 = vmatpush1.msra.mxu0 0.0
      %1847 = vmatprep.subr.mxu0 0.0
      %1848 = vmatpush1.msra.mxu0 0.0
      %1849 = vmatprep.mubr.f32.mxu0 0.0
      %1850 = vmatmul.mubr.f32.gmra.mrb[0].mxu0 %v1705
      %v1851 = vpop.f32.mrb[0].mxu0
      %v1852 = vadd.f32 0.0, %v1851
      %v1853 = vpop.f32.mrb[0].mxu0
      %1854 = vmatprep.mubr.f32.mxu0 0.0
      %1855 = vmatmul.mubr.f32.gmra.mrb[0].mxu0 %v1708
      %v1856 = vpop.f32.mrb[0].mxu0
      %v1857 = vadd.f32 0.0, %v1856
      %v1858 = vpop.f32.mrb[0].mxu0
      %1859 = vdwg.mxu0
      %v1861 = vsel %vm380, %v1857, 0
      %1863 = vmatprep.subr.mxu0 0.0
      %1864 = vmatpush1.msra.mxu0 %v1852
      %1865 = vmatprep.subr.mxu0 0.0
      %1866 = vmatpush1.msra.mxu0 %v1861
      %1867 = vmatprep.subr.mxu0 0.0
      %1868 = vmatpush1.msra.mxu0 0.0
      %1869 = vmatprep.subr.mxu0 0.0
      %1870 = vmatpush1.msra.mxu0 0.0
      %1871 = vmatprep.subr.mxu0 0.0
      %1872 = vmatpush1.msra.mxu0 0.0
      %1873 = vmatprep.subr.mxu0 0.0
      %1874 = vmatpush1.msra.mxu0 0.0
      %1875 = vmatprep.subr.mxu0 0.0
      %1876 = vmatpush1.msra.mxu0 0.0
      %1877 = vmatprep.subr.mxu0 0.0
      %1878 = vmatpush1.msra.mxu0 0.0
      %1879 = vmatprep.subr.mxu0 0.0
      %1880 = vmatpush1.msra.mxu0 0.0
      %1881 = vmatprep.subr.mxu0 0.0
      %1882 = vmatpush1.msra.mxu0 0.0
      %1883 = vmatprep.subr.mxu0 0.0
      %1884 = vmatpush1.msra.mxu0 0.0
      %1885 = vmatprep.subr.mxu0 0.0
      %1886 = vmatpush1.msra.mxu0 0.0
      %1887 = vmatprep.subr.mxu0 0.0
      %1888 = vmatpush1.msra.mxu0 0.0
      %1889 = vmatprep.subr.mxu0 0.0
      %1890 = vmatpush1.msra.mxu0 0.0
      %1891 = vmatprep.subr.mxu0 0.0
      %1892 = vmatpush1.msra.mxu0 0.0
      %1893 = vmatprep.subr.mxu0 0.0
      %1894 = vmatpush1.msra.mxu0 0.0
      %1895 = vmatprep.subr.mxu0 0.0
      %1896 = vmatpush1.msra.mxu0 0.0
      %1897 = vmatprep.subr.mxu0 0.0
      %1898 = vmatpush1.msra.mxu0 0.0
      %1899 = vmatprep.subr.mxu0 0.0
      %1900 = vmatpush1.msra.mxu0 0.0
      %1901 = vmatprep.subr.mxu0 0.0
      %1902 = vmatpush1.msra.mxu0 0.0
      %1903 = vmatprep.subr.mxu0 0.0
      %1904 = vmatpush1.msra.mxu0 0.0
      %1905 = vmatprep.subr.mxu0 0.0
      %1906 = vmatpush1.msra.mxu0 0.0
      %1907 = vmatprep.subr.mxu0 0.0
      %1908 = vmatpush1.msra.mxu0 0.0
      %1909 = vmatprep.subr.mxu0 0.0
      %1910 = vmatpush1.msra.mxu0 0.0
      %1911 = vmatprep.subr.mxu0 0.0
      %1912 = vmatpush1.msra.mxu0 0.0
      %1913 = vmatprep.subr.mxu0 0.0
      %1914 = vmatpush1.msra.mxu0 0.0
      %1915 = vmatprep.subr.mxu0 0.0
      %1916 = vmatpush1.msra.mxu0 0.0
      %1917 = vmatprep.subr.mxu0 0.0
      %1918 = vmatpush1.msra.mxu0 0.0
      %1919 = vmatprep.subr.mxu0 0.0
      %1920 = vmatpush1.msra.mxu0 0.0
      %1921 = vmatprep.subr.mxu0 0.0
      %1922 = vmatpush1.msra.mxu0 0.0
      %1923 = vmatprep.subr.mxu0 0.0
      %1924 = vmatpush1.msra.mxu0 0.0
      %1925 = vmatprep.subr.mxu0 0.0
      %1926 = vmatpush1.msra.mxu0 0.0
      %1927 = vmatprep.mubr.f32.mxu0 0.0
      %1928 = vmatmul.mubr.f32.gmra.mrb[0].mxu0 %v375
      %v1929 = vpop.f32.mrb[0].mxu0
      %v1930 = vadd.f32 0.0, %v1929
      %v1931 = vpop.f32.mrb[0].mxu0
      %1932 = vmatprep.mubr.f32.mxu0 0.0
      %1933 = vmatmul.mubr.f32.gmra.mrb[0].mxu0 %v378
      %v1934 = vpop.f32.mrb[0].mxu0
      %v1935 = vadd.f32 0.0, %v1934
      %v1936 = vpop.f32.mrb[0].mxu0
      %1937 = vdwg.mxu0
      %v1939 = vsel %vm380, %v1782, 0
      %1941 = vmatprep.subr.mxu0 0.0
      %1942 = vmatpush1.msra.mxu0 %v1777
      %1943 = vmatprep.subr.mxu0 0.0
      %1944 = vmatpush1.msra.mxu0 %v1939
      %1945 = vmatprep.subr.mxu0 0.0
      %1946 = vmatpush1.msra.mxu0 0.0
      %1947 = vmatprep.subr.mxu0 0.0
      %1948 = vmatpush1.msra.mxu0 0.0
      %1949 = vmatprep.subr.mxu0 0.0
      %1950 = vmatpush1.msra.mxu0 0.0
      %1951 = vmatprep.subr.mxu0 0.0
      %1952 = vmatpush1.msra.mxu0 0.0
      %1953 = vmatprep.subr.mxu0 0.0
      %1954 = vmatpush1.msra.mxu0 0.0
      %1955 = vmatprep.subr.mxu0 0.0
      %1956 = vmatpush1.msra.mxu0 0.0
      %1957 = vmatprep.subr.mxu0 0.0
      %1958 = vmatpush1.msra.mxu0 0.0
      %1959 = vmatprep.subr.mxu0 0.0
      %1960 = vmatpush1.msra.mxu0 0.0
      %1961 = vmatprep.subr.mxu0 0.0
      %1962 = vmatpush1.msra.mxu0 0.0
      %1963 = vmatprep.subr.mxu0 0.0
      %1964 = vmatpush1.msra.mxu0 0.0
      %1965 = vmatprep.subr.mxu0 0.0
      %1966 = vmatpush1.msra.mxu0 0.0
      %1967 = vmatprep.subr.mxu0 0.0
      %1968 = vmatpush1.msra.mxu0 0.0
      %1969 = vmatprep.subr.mxu0 0.0
      %1970 = vmatpush1.msra.mxu0 0.0
      %1971 = vmatprep.subr.mxu0 0.0
      %1972 = vmatpush1.msra.mxu0 0.0
      %1973 = vmatprep.subr.mxu0 0.0
      %1974 = vmatpush1.msra.mxu0 0.0
      %1975 = vmatprep.subr.mxu0 0.0
      %1976 = vmatpush1.msra.mxu0 0.0
      %1977 = vmatprep.subr.mxu0 0.0
      %1978 = vmatpush1.msra.mxu0 0.0
      %1979 = vmatprep.subr.mxu0 0.0
      %1980 = vmatpush1.msra.mxu0 0.0
      %1981 = vmatprep.subr.mxu0 0.0
      %1982 = vmatpush1.msra.mxu0 0.0
      %1983 = vmatprep.subr.mxu0 0.0
      %1984 = vmatpush1.msra.mxu0 0.0
      %1985 = vmatprep.subr.mxu0 0.0
      %1986 = vmatpush1.msra.mxu0 0.0
      %1987 = vmatprep.subr.mxu0 0.0
      %1988 = vmatpush1.msra.mxu0 0.0
      %1989 = vmatprep.subr.mxu0 0.0
      %1990 = vmatpush1.msra.mxu0 0.0
      %1991 = vmatprep.subr.mxu0 0.0
      %1992 = vmatpush1.msra.mxu0 0.0
      %1993 = vmatprep.subr.mxu0 0.0
      %1994 = vmatpush1.msra.mxu0 0.0
      %1995 = vmatprep.subr.mxu0 0.0
      %1996 = vmatpush1.msra.mxu0 0.0
      %1997 = vmatprep.subr.mxu0 0.0
      %1998 = vmatpush1.msra.mxu0 0.0
      %1999 = vmatprep.subr.mxu0 0.0
      %2000 = vmatpush1.msra.mxu0 0.0
      %2001 = vmatprep.subr.mxu0 0.0
      %2002 = vmatpush1.msra.mxu0 0.0
      %2003 = vmatprep.subr.mxu0 0.0
      %2004 = vmatpush1.msra.mxu0 0.0
      %2005 = vmatprep.mubr.f32.mxu0 0.0
      %2006 = vmatmul.mubr.f32.gmra.mrb[0].mxu0 %v460
      %v2007 = vpop.f32.mrb[0].mxu0
      %v2008 = vadd.f32 %v1930, %v2007
      %v2009 = vpop.f32.mrb[0].mxu0
      %2010 = vmatprep.mubr.f32.mxu0 0.0
      %2011 = vmatmul.mubr.f32.gmra.mrb[0].mxu0 %v463
      %v2012 = vpop.f32.mrb[0].mxu0
      %v2013 = vadd.f32 %v1935, %v2012
      %v2014 = vpop.f32.mrb[0].mxu0
      %2015 = vdwg.mxu0
      %2016 = vmatprep.subr.mxu0 0.0
      %2017 = vmatpush1.msra.mxu0 %v212
      %2018 = vmatprep.subr.mxu0 0.0
      %2019 = vmatpush1.msra.mxu0 %v213
      %2020 = vmatprep.subr.mxu0 0.0
      %2021 = vmatpush1.msra.mxu0 0.0
      %2022 = vmatprep.subr.mxu0 0.0
      %2023 = vmatpush1.msra.mxu0 0.0
      %2024 = vmatprep.subr.mxu0 0.0
      %2025 = vmatpush1.msra.mxu0 0.0
      %2026 = vmatprep.subr.mxu0 0.0
      %2027 = vmatpush1.msra.mxu0 0.0
      %2028 = vmatprep.subr.mxu0 0.0
      %2029 = vmatpush1.msra.mxu0 0.0
      %2030 = vmatprep.subr.mxu0 0.0
      %2031 = vmatpush1.msra.mxu0 0.0
      %2032 = vmatprep.subr.mxu0 0.0
      %2033 = vmatpush1.msra.mxu0 0.0
      %2034 = vmatprep.subr.mxu0 0.0
      %2035 = vmatpush1.msra.mxu0 0.0
      %2036 = vmatprep.subr.mxu0 0.0
      %2037 = vmatpush1.msra.mxu0 0.0
      %2038 = vmatprep.subr.mxu0 0.0
      %2039 = vmatpush1.msra.mxu0 0.0
      %2040 = vmatprep.subr.mxu0 0.0
      %2041 = vmatpush1.msra.mxu0 0.0
      %2042 = vmatprep.subr.mxu0 0.0
      %2043 = vmatpush1.msra.mxu0 0.0
      %2044 = vmatprep.subr.mxu0 0.0
      %2045 = vmatpush1.msra.mxu0 0.0
      %2046 = vmatprep.subr.mxu0 0.0
      %2047 = vmatpush1.msra.mxu0 0.0
      %2048 = vmatprep.subr.mxu0 0.0
      %2049 = vmatpush1.msra.mxu0 0.0
      %2050 = vmatprep.subr.mxu0 0.0
      %2051 = vmatpush1.msra.mxu0 0.0
      %2052 = vmatprep.subr.mxu0 0.0
      %2053 = vmatpush1.msra.mxu0 0.0
      %2054 = vmatprep.subr.mxu0 0.0
      %2055 = vmatpush1.msra.mxu0 0.0
      %2056 = vmatprep.subr.mxu0 0.0
      %2057 = vmatpush1.msra.mxu0 0.0
      %2058 = vmatprep.subr.mxu0 0.0
      %2059 = vmatpush1.msra.mxu0 0.0
      %2060 = vmatprep.subr.mxu0 0.0
      %2061 = vmatpush1.msra.mxu0 0.0
      %2062 = vmatprep.subr.mxu0 0.0
      %2063 = vmatpush1.msra.mxu0 0.0
      %2064 = vmatprep.subr.mxu0 0.0
      %2065 = vmatpush1.msra.mxu0 0.0
      %2066 = vmatprep.subr.mxu0 0.0
      %2067 = vmatpush1.msra.mxu0 0.0
      %2068 = vmatprep.subr.mxu0 0.0
      %2069 = vmatpush1.msra.mxu0 0.0
      %2070 = vmatprep.subr.mxu0 0.0
      %2071 = vmatpush1.msra.mxu0 0.0
      %2072 = vmatprep.subr.mxu0 0.0
      %2073 = vmatpush1.msra.mxu0 0.0
      %2074 = vmatprep.subr.mxu0 0.0
      %2075 = vmatpush1.msra.mxu0 0.0
      %2076 = vmatprep.subr.mxu0 0.0
      %2077 = vmatpush1.msra.mxu0 0.0
      %2078 = vmatprep.subr.mxu0 0.0
      %2079 = vmatpush1.msra.mxu0 0.0
      %2080 = vmatprep.mubr.f32.mxu0 0.0
      %2081 = vmatmul.mubr.f32.gmra.mrb[0].mxu0 %v1705
      %v2082 = vpop.f32.mrb[0].mxu0
      %v2083 = vadd.f32 0.0, %v2082
      %v2084 = vpop.f32.mrb[0].mxu0
      %2085 = vmatprep.mubr.f32.mxu0 0.0
      %2086 = vmatmul.mubr.f32.gmra.mrb[0].mxu0 %v1708
      %v2087 = vpop.f32.mrb[0].mxu0
      %v2088 = vadd.f32 0.0, %v2087
      %v2089 = vpop.f32.mrb[0].mxu0
      %2090 = vdwg.mxu0
      %v2092 = vsel %vm380, %v2088, 0
      %2094 = vmatprep.subr.mxu0 0.0
      %2095 = vmatpush1.msra.mxu0 %v2083
      %2096 = vmatprep.subr.mxu0 0.0
      %2097 = vmatpush1.msra.mxu0 %v2092
      %2098 = vmatprep.subr.mxu0 0.0
      %2099 = vmatpush1.msra.mxu0 0.0
      %2100 = vmatprep.subr.mxu0 0.0
      %2101 = vmatpush1.msra.mxu0 0.0
      %2102 = vmatprep.subr.mxu0 0.0
      %2103 = vmatpush1.msra.mxu0 0.0
      %2104 = vmatprep.subr.mxu0 0.0
      %2105 = vmatpush1.msra.mxu0 0.0
      %2106 = vmatprep.subr.mxu0 0.0
      %2107 = vmatpush1.msra.mxu0 0.0
      %2108 = vmatprep.subr.mxu0 0.0
      %2109 = vmatpush1.msra.mxu0 0.0
      %2110 = vmatprep.subr.mxu0 0.0
      %2111 = vmatpush1.msra.mxu0 0.0
      %2112 = vmatprep.subr.mxu0 0.0
      %2113 = vmatpush1.msra.mxu0 0.0
      %2114 = vmatprep.subr.mxu0 0.0
      %2115 = vmatpush1.msra.mxu0 0.0
      %2116 = vmatprep.subr.mxu0 0.0
      %2117 = vmatpush1.msra.mxu0 0.0
      %2118 = vmatprep.subr.mxu0 0.0
      %2119 = vmatpush1.msra.mxu0 0.0
      %2120 = vmatprep.subr.mxu0 0.0
      %2121 = vmatpush1.msra.mxu0 0.0
      %2122 = vmatprep.subr.mxu0 0.0
      %2123 = vmatpush1.msra.mxu0 0.0
      %2124 = vmatprep.subr.mxu0 0.0
      %2125 = vmatpush1.msra.mxu0 0.0
      %2126 = vmatprep.subr.mxu0 0.0
      %2127 = vmatpush1.msra.mxu0 0.0
      %2128 = vmatprep.subr.mxu0 0.0
      %2129 = vmatpush1.msra.mxu0 0.0
      %2130 = vmatprep.subr.mxu0 0.0
      %2131 = vmatpush1.msra.mxu0 0.0
      %2132 = vmatprep.subr.mxu0 0.0
      %2133 = vmatpush1.msra.mxu0 0.0
      %2134 = vmatprep.subr.mxu0 0.0
      %2135 = vmatpush1.msra.mxu0 0.0
      %2136 = vmatprep.subr.mxu0 0.0
      %2137 = vmatpush1.msra.mxu0 0.0
      %2138 = vmatprep.subr.mxu0 0.0
      %2139 = vmatpush1.msra.mxu0 0.0
      %2140 = vmatprep.subr.mxu0 0.0
      %2141 = vmatpush1.msra.mxu0 0.0
      %2142 = vmatprep.subr.mxu0 0.0
      %2143 = vmatpush1.msra.mxu0 0.0
      %2144 = vmatprep.subr.mxu0 0.0
      %2145 = vmatpush1.msra.mxu0 0.0
      %2146 = vmatprep.subr.mxu0 0.0
      %2147 = vmatpush1.msra.mxu0 0.0
      %2148 = vmatprep.subr.mxu0 0.0
      %2149 = vmatpush1.msra.mxu0 0.0
      %2150 = vmatprep.subr.mxu0 0.0
      %2151 = vmatpush1.msra.mxu0 0.0
      %2152 = vmatprep.subr.mxu0 0.0
      %2153 = vmatpush1.msra.mxu0 0.0
      %2154 = vmatprep.subr.mxu0 0.0
      %2155 = vmatpush1.msra.mxu0 0.0
      %2156 = vmatprep.subr.mxu0 0.0
      %2157 = vmatpush1.msra.mxu0 0.0
      %2158 = vmatprep.mubr.f32.mxu0 0.0
      %2159 = vmatmul.mubr.f32.gmra.mrb[0].mxu0 %v619
      %v2160 = vpop.f32.mrb[0].mxu0
      %v2161 = vadd.f32 0.0, %v2160
      %v2162 = vpop.f32.mrb[0].mxu0
      %2163 = vmatprep.mubr.f32.mxu0 0.0
      %2164 = vmatmul.mubr.f32.gmra.mrb[0].mxu0 %v622
      %v2165 = vpop.f32.mrb[0].mxu0
      %v2166 = vadd.f32 0.0, %v2165
      %v2167 = vpop.f32.mrb[0].mxu0
      %2168 = vdwg.mxu0
      %v2169 = vadd.f32 %v2008, %v2161
      %v2170 = vadd.f32 %v2013, %v2166
      %v2171 = vadd.f32 %v2169, %v707
      %v2172 = vadd.f32 %v2170, %v712
      %v2173 = vand.u32 2147483647, %v2172
      %v2174 = vsub.f32 0.0, %v2173
      %v2175 = vmul.f32 %v2174, 1.442695
      %v2176 = vpow.pop %v2175
      %vm2177 = vcmp.ge.f32.partialorder %v2172, 0.0
      %v2178 = vsel %vm2177, 1.0, %v2176
      %v2179 = vadd.f32 %v2176, 1.0
      %v2180 = vrcp.pop %v2179
      %v2181 = vmul.f32 %v2178, %v2180
      %v2182 = vmul.f32 %v2171, %v2181
      %2184 = vrot.lane.b32.xlu0 %v2182, 21
      %v2185 = vpop.permute.xlu0 %2184
      %vm2187 = vcmask 228520
      %2188 = vst.msk [vmem:[%s195] sm:$0xff] %vm2187, %v2185
      %v2189 = vld [vmem:[%s191 + $0x20] sm:$0xff]
      %v2190 = vld [vmem:[%s191 + $0x28] sm:$0xf]
      %v2192 = vsel %vm216, %v2189, 0
      %v2195 = vsel %vm216, %v2190, 0
      %2197 = vmatprep.subr.mxu0 0.0
      %2198 = vmatpush1.msra.mxu0 %v206
      %2199 = vmatprep.subr.mxu0 0.0
      %2200 = vmatpush1.msra.mxu0 %v207
      %2201 = vmatprep.subr.mxu0 0.0
      %2202 = vmatpush1.msra.mxu0 0.0
      %2203 = vmatprep.subr.mxu0 0.0
      %2204 = vmatpush1.msra.mxu0 0.0
      %2205 = vmatprep.subr.mxu0 0.0
      %2206 = vmatpush1.msra.mxu0 0.0
      %2207 = vmatprep.subr.mxu0 0.0
      %2208 = vmatpush1.msra.mxu0 0.0
      %2209 = vmatprep.subr.mxu0 0.0
      %2210 = vmatpush1.msra.mxu0 0.0
      %2211 = vmatprep.subr.mxu0 0.0
      %2212 = vmatpush1.msra.mxu0 0.0
      %2213 = vmatprep.subr.mxu0 0.0
      %2214 = vmatpush1.msra.mxu0 0.0
      %2215 = vmatprep.subr.mxu0 0.0
      %2216 = vmatpush1.msra.mxu0 0.0
      %2217 = vmatprep.subr.mxu0 0.0
      %2218 = vmatpush1.msra.mxu0 0.0
      %2219 = vmatprep.subr.mxu0 0.0
      %2220 = vmatpush1.msra.mxu0 0.0
      %2221 = vmatprep.subr.mxu0 0.0
      %2222 = vmatpush1.msra.mxu0 0.0
      %2223 = vmatprep.subr.mxu0 0.0
      %2224 = vmatpush1.msra.mxu0 0.0
      %2225 = vmatprep.subr.mxu0 0.0
      %2226 = vmatpush1.msra.mxu0 0.0
      %2227 = vmatprep.subr.mxu0 0.0
      %2228 = vmatpush1.msra.mxu0 0.0
      %2229 = vmatprep.subr.mxu0 0.0
      %2230 = vmatpush1.msra.mxu0 0.0
      %2231 = vmatprep.subr.mxu0 0.0
      %2232 = vmatpush1.msra.mxu0 0.0
      %2233 = vmatprep.subr.mxu0 0.0
      %2234 = vmatpush1.msra.mxu0 0.0
      %2235 = vmatprep.subr.mxu0 0.0
      %2236 = vmatpush1.msra.mxu0 0.0
      %2237 = vmatprep.subr.mxu0 0.0
      %2238 = vmatpush1.msra.mxu0 0.0
      %2239 = vmatprep.subr.mxu0 0.0
      %2240 = vmatpush1.msra.mxu0 0.0
      %2241 = vmatprep.subr.mxu0 0.0
      %2242 = vmatpush1.msra.mxu0 0.0
      %2243 = vmatprep.subr.mxu0 0.0
      %2244 = vmatpush1.msra.mxu0 0.0
      %2245 = vmatprep.subr.mxu0 0.0
      %2246 = vmatpush1.msra.mxu0 0.0
      %2247 = vmatprep.subr.mxu0 0.0
      %2248 = vmatpush1.msra.mxu0 0.0
      %2249 = vmatprep.subr.mxu0 0.0
      %2250 = vmatpush1.msra.mxu0 0.0
      %2251 = vmatprep.subr.mxu0 0.0
      %2252 = vmatpush1.msra.mxu0 0.0
      %2253 = vmatprep.subr.mxu0 0.0
      %2254 = vmatpush1.msra.mxu0 0.0
      %2255 = vmatprep.subr.mxu0 0.0
      %2256 = vmatpush1.msra.mxu0 0.0
      %2257 = vmatprep.subr.mxu0 0.0
      %2258 = vmatpush1.msra.mxu0 0.0
      %2259 = vmatprep.subr.mxu0 0.0
      %2260 = vmatpush1.msra.mxu0 0.0
      %2261 = vmatprep.mubr.f32.mxu0 0.0
      %2262 = vmatmul.mubr.f32.gmra.mrb[0].mxu0 %v2192
      %v2263 = vpop.f32.mrb[0].mxu0
      %v2264 = vadd.f32 0.0, %v2263
      %v2265 = vpop.f32.mrb[0].mxu0
      %2266 = vmatprep.mubr.f32.mxu0 0.0
      %2267 = vmatmul.mubr.f32.gmra.mrb[0].mxu0 %v2195
      %v2268 = vpop.f32.mrb[0].mxu0
      %v2269 = vadd.f32 0.0, %v2268
      %v2270 = vpop.f32.mrb[0].mxu0
      %2271 = vdwg.mxu0
      %2272 = vmatprep.subr.mxu0 0.0
      %2273 = vmatpush1.msra.mxu0 %v209
      %2274 = vmatprep.subr.mxu0 0.0
      %2275 = vmatpush1.msra.mxu0 %v210
      %2276 = vmatprep.subr.mxu0 0.0
      %2277 = vmatpush1.msra.mxu0 0.0
      %2278 = vmatprep.subr.mxu0 0.0
      %2279 = vmatpush1.msra.mxu0 0.0
      %2280 = vmatprep.subr.mxu0 0.0
      %2281 = vmatpush1.msra.mxu0 0.0
      %2282 = vmatprep.subr.mxu0 0.0
      %2283 = vmatpush1.msra.mxu0 0.0
      %2284 = vmatprep.subr.mxu0 0.0
      %2285 = vmatpush1.msra.mxu0 0.0
      %2286 = vmatprep.subr.mxu0 0.0
      %2287 = vmatpush1.msra.mxu0 0.0
      %2288 = vmatprep.subr.mxu0 0.0
      %2289 = vmatpush1.msra.mxu0 0.0
      %2290 = vmatprep.subr.mxu0 0.0
      %2291 = vmatpush1.msra.mxu0 0.0
      %2292 = vmatprep.subr.mxu0 0.0
      %2293 = vmatpush1.msra.mxu0 0.0
      %2294 = vmatprep.subr.mxu0 0.0
      %2295 = vmatpush1.msra.mxu0 0.0
      %2296 = vmatprep.subr.mxu0 0.0
      %2297 = vmatpush1.msra.mxu0 0.0
      %2298 = vmatprep.subr.mxu0 0.0
      %2299 = vmatpush1.msra.mxu0 0.0
      %2300 = vmatprep.subr.mxu0 0.0
      %2301 = vmatpush1.msra.mxu0 0.0
      %2302 = vmatprep.subr.mxu0 0.0
      %2303 = vmatpush1.msra.mxu0 0.0
      %2304 = vmatprep.subr.mxu0 0.0
      %2305 = vmatpush1.msra.mxu0 0.0
      %2306 = vmatprep.subr.mxu0 0.0
      %2307 = vmatpush1.msra.mxu0 0.0
      %2308 = vmatprep.subr.mxu0 0.0
      %2309 = vmatpush1.msra.mxu0 0.0
      %2310 = vmatprep.subr.mxu0 0.0
      %2311 = vmatpush1.msra.mxu0 0.0
      %2312 = vmatprep.subr.mxu0 0.0
      %2313 = vmatpush1.msra.mxu0 0.0
      %2314 = vmatprep.subr.mxu0 0.0
      %2315 = vmatpush1.msra.mxu0 0.0
      %2316 = vmatprep.subr.mxu0 0.0
      %2317 = vmatpush1.msra.mxu0 0.0
      %2318 = vmatprep.subr.mxu0 0.0
      %2319 = vmatpush1.msra.mxu0 0.0
      %2320 = vmatprep.subr.mxu0 0.0
      %2321 = vmatpush1.msra.mxu0 0.0
      %2322 = vmatprep.subr.mxu0 0.0
      %2323 = vmatpush1.msra.mxu0 0.0
      %2324 = vmatprep.subr.mxu0 0.0
      %2325 = vmatpush1.msra.mxu0 0.0
      %2326 = vmatprep.subr.mxu0 0.0
      %2327 = vmatpush1.msra.mxu0 0.0
      %2328 = vmatprep.subr.mxu0 0.0
      %2329 = vmatpush1.msra.mxu0 0.0
      %2330 = vmatprep.subr.mxu0 0.0
      %2331 = vmatpush1.msra.mxu0 0.0
      %2332 = vmatprep.subr.mxu0 0.0
      %2333 = vmatpush1.msra.mxu0 0.0
      %2334 = vmatprep.subr.mxu0 0.0
      %2335 = vmatpush1.msra.mxu0 0.0
      %2336 = vmatprep.mubr.f32.mxu0 0.0
      %2337 = vmatmul.mubr.f32.gmra.mrb[0].mxu0 %v2192
      %v2338 = vpop.f32.mrb[0].mxu0
      %v2339 = vadd.f32 0.0, %v2338
      %v2340 = vpop.f32.mrb[0].mxu0
      %2341 = vmatprep.mubr.f32.mxu0 0.0
      %2342 = vmatmul.mubr.f32.gmra.mrb[0].mxu0 %v2195
      %v2343 = vpop.f32.mrb[0].mxu0
      %v2344 = vadd.f32 0.0, %v2343
      %v2345 = vpop.f32.mrb[0].mxu0
      %2346 = vdwg.mxu0
      %v2348 = vsel %vm380, %v2344, 0
      %2350 = vmatprep.subr.mxu0 0.0
      %2351 = vmatpush1.msra.mxu0 %v2339
      %2352 = vmatprep.subr.mxu0 0.0
      %2353 = vmatpush1.msra.mxu0 %v2348
      %2354 = vmatprep.subr.mxu0 0.0
      %2355 = vmatpush1.msra.mxu0 0.0
      %2356 = vmatprep.subr.mxu0 0.0
      %2357 = vmatpush1.msra.mxu0 0.0
      %2358 = vmatprep.subr.mxu0 0.0
      %2359 = vmatpush1.msra.mxu0 0.0
      %2360 = vmatprep.subr.mxu0 0.0
      %2361 = vmatpush1.msra.mxu0 0.0
      %2362 = vmatprep.subr.mxu0 0.0
      %2363 = vmatpush1.msra.mxu0 0.0
      %2364 = vmatprep.subr.mxu0 0.0
      %2365 = vmatpush1.msra.mxu0 0.0
      %2366 = vmatprep.subr.mxu0 0.0
      %2367 = vmatpush1.msra.mxu0 0.0
      %2368 = vmatprep.subr.mxu0 0.0
      %2369 = vmatpush1.msra.mxu0 0.0
      %2370 = vmatprep.subr.mxu0 0.0
      %2371 = vmatpush1.msra.mxu0 0.0
      %2372 = vmatprep.subr.mxu0 0.0
      %2373 = vmatpush1.msra.mxu0 0.0
      %2374 = vmatprep.subr.mxu0 0.0
      %2375 = vmatpush1.msra.mxu0 0.0
      %2376 = vmatprep.subr.mxu0 0.0
      %2377 = vmatpush1.msra.mxu0 0.0
      %2378 = vmatprep.subr.mxu0 0.0
      %2379 = vmatpush1.msra.mxu0 0.0
      %2380 = vmatprep.subr.mxu0 0.0
      %2381 = vmatpush1.msra.mxu0 0.0
      %2382 = vmatprep.subr.mxu0 0.0
      %2383 = vmatpush1.msra.mxu0 0.0
      %2384 = vmatprep.subr.mxu0 0.0
      %2385 = vmatpush1.msra.mxu0 0.0
      %2386 = vmatprep.subr.mxu0 0.0
      %2387 = vmatpush1.msra.mxu0 0.0
      %2388 = vmatprep.subr.mxu0 0.0
      %2389 = vmatpush1.msra.mxu0 0.0
      %2390 = vmatprep.subr.mxu0 0.0
      %2391 = vmatpush1.msra.mxu0 0.0
      %2392 = vmatprep.subr.mxu0 0.0
      %2393 = vmatpush1.msra.mxu0 0.0
      %2394 = vmatprep.subr.mxu0 0.0
      %2395 = vmatpush1.msra.mxu0 0.0
      %2396 = vmatprep.subr.mxu0 0.0
      %2397 = vmatpush1.msra.mxu0 0.0
      %2398 = vmatprep.subr.mxu0 0.0
      %2399 = vmatpush1.msra.mxu0 0.0
      %2400 = vmatprep.subr.mxu0 0.0
      %2401 = vmatpush1.msra.mxu0 0.0
      %2402 = vmatprep.subr.mxu0 0.0
      %2403 = vmatpush1.msra.mxu0 0.0
      %2404 = vmatprep.subr.mxu0 0.0
      %2405 = vmatpush1.msra.mxu0 0.0
      %2406 = vmatprep.subr.mxu0 0.0
      %2407 = vmatpush1.msra.mxu0 0.0
      %2408 = vmatprep.subr.mxu0 0.0
      %2409 = vmatpush1.msra.mxu0 0.0
      %2410 = vmatprep.subr.mxu0 0.0
      %2411 = vmatpush1.msra.mxu0 0.0
      %2412 = vmatprep.subr.mxu0 0.0
      %2413 = vmatpush1.msra.mxu0 0.0
      %2414 = vmatprep.mubr.f32.mxu0 0.0
      %2415 = vmatmul.mubr.f32.gmra.mrb[0].mxu0 %v375
      %v2416 = vpop.f32.mrb[0].mxu0
      %v2417 = vadd.f32 0.0, %v2416
      %v2418 = vpop.f32.mrb[0].mxu0
      %2419 = vmatprep.mubr.f32.mxu0 0.0
      %2420 = vmatmul.mubr.f32.gmra.mrb[0].mxu0 %v378
      %v2421 = vpop.f32.mrb[0].mxu0
      %v2422 = vadd.f32 0.0, %v2421
      %v2423 = vpop.f32.mrb[0].mxu0
      %2424 = vdwg.mxu0
      %v2426 = vsel %vm380, %v2269, 0
      %2428 = vmatprep.subr.mxu0 0.0
      %2429 = vmatpush1.msra.mxu0 %v2264
      %2430 = vmatprep.subr.mxu0 0.0
      %2431 = vmatpush1.msra.mxu0 %v2426
      %2432 = vmatprep.subr.mxu0 0.0
      %2433 = vmatpush1.msra.mxu0 0.0
      %2434 = vmatprep.subr.mxu0 0.0
      %2435 = vmatpush1.msra.mxu0 0.0
      %2436 = vmatprep.subr.mxu0 0.0
      %2437 = vmatpush1.msra.mxu0 0.0
      %2438 = vmatprep.subr.mxu0 0.0
      %2439 = vmatpush1.msra.mxu0 0.0
      %2440 = vmatprep.subr.mxu0 0.0
      %2441 = vmatpush1.msra.mxu0 0.0
      %2442 = vmatprep.subr.mxu0 0.0
      %2443 = vmatpush1.msra.mxu0 0.0
      %2444 = vmatprep.subr.mxu0 0.0
      %2445 = vmatpush1.msra.mxu0 0.0
      %2446 = vmatprep.subr.mxu0 0.0
      %2447 = vmatpush1.msra.mxu0 0.0
      %2448 = vmatprep.subr.mxu0 0.0
      %2449 = vmatpush1.msra.mxu0 0.0
      %2450 = vmatprep.subr.mxu0 0.0
      %2451 = vmatpush1.msra.mxu0 0.0
      %2452 = vmatprep.subr.mxu0 0.0
      %2453 = vmatpush1.msra.mxu0 0.0
      %2454 = vmatprep.subr.mxu0 0.0
      %2455 = vmatpush1.msra.mxu0 0.0
      %2456 = vmatprep.subr.mxu0 0.0
      %2457 = vmatpush1.msra.mxu0 0.0
      %2458 = vmatprep.subr.mxu0 0.0
      %2459 = vmatpush1.msra.mxu0 0.0
      %2460 = vmatprep.subr.mxu0 0.0
      %2461 = vmatpush1.msra.mxu0 0.0
      %2462 = vmatprep.subr.mxu0 0.0
      %2463 = vmatpush1.msra.mxu0 0.0
      %2464 = vmatprep.subr.mxu0 0.0
      %2465 = vmatpush1.msra.mxu0 0.0
      %2466 = vmatprep.subr.mxu0 0.0
      %2467 = vmatpush1.msra.mxu0 0.0
      %2468 = vmatprep.subr.mxu0 0.0
      %2469 = vmatpush1.msra.mxu0 0.0
      %2470 = vmatprep.subr.mxu0 0.0
      %2471 = vmatpush1.msra.mxu0 0.0
      %2472 = vmatprep.subr.mxu0 0.0
      %2473 = vmatpush1.msra.mxu0 0.0
      %2474 = vmatprep.subr.mxu0 0.0
      %2475 = vmatpush1.msra.mxu0 0.0
      %2476 = vmatprep.subr.mxu0 0.0
      %2477 = vmatpush1.msra.mxu0 0.0
      %2478 = vmatprep.subr.mxu0 0.0
      %2479 = vmatpush1.msra.mxu0 0.0
      %2480 = vmatprep.subr.mxu0 0.0
      %2481 = vmatpush1.msra.mxu0 0.0
      %2482 = vmatprep.subr.mxu0 0.0
      %2483 = vmatpush1.msra.mxu0 0.0
      %2484 = vmatprep.subr.mxu0 0.0
      %2485 = vmatpush1.msra.mxu0 0.0
      %2486 = vmatprep.subr.mxu0 0.0
      %2487 = vmatpush1.msra.mxu0 0.0
      %2488 = vmatprep.subr.mxu0 0.0
      %2489 = vmatpush1.msra.mxu0 0.0
      %2490 = vmatprep.subr.mxu0 0.0
      %2491 = vmatpush1.msra.mxu0 0.0
      %2492 = vmatprep.mubr.f32.mxu0 0.0
      %2493 = vmatmul.mubr.f32.gmra.mrb[0].mxu0 %v460
      %v2494 = vpop.f32.mrb[0].mxu0
      %v2495 = vadd.f32 %v2417, %v2494
      %v2496 = vpop.f32.mrb[0].mxu0
      %2497 = vmatprep.mubr.f32.mxu0 0.0
      %2498 = vmatmul.mubr.f32.gmra.mrb[0].mxu0 %v463
      %v2499 = vpop.f32.mrb[0].mxu0
      %v2500 = vadd.f32 %v2422, %v2499
      %v2501 = vpop.f32.mrb[0].mxu0
      %2502 = vdwg.mxu0
      %2503 = vmatprep.subr.mxu0 0.0
      %2504 = vmatpush1.msra.mxu0 %v212
      %2505 = vmatprep.subr.mxu0 0.0
      %2506 = vmatpush1.msra.mxu0 %v213
      %2507 = vmatprep.subr.mxu0 0.0
      %2508 = vmatpush1.msra.mxu0 0.0
      %2509 = vmatprep.subr.mxu0 0.0
      %2510 = vmatpush1.msra.mxu0 0.0
      %2511 = vmatprep.subr.mxu0 0.0
      %2512 = vmatpush1.msra.mxu0 0.0
      %2513 = vmatprep.subr.mxu0 0.0
      %2514 = vmatpush1.msra.mxu0 0.0
      %2515 = vmatprep.subr.mxu0 0.0
      %2516 = vmatpush1.msra.mxu0 0.0
      %2517 = vmatprep.subr.mxu0 0.0
      %2518 = vmatpush1.msra.mxu0 0.0
      %2519 = vmatprep.subr.mxu0 0.0
      %2520 = vmatpush1.msra.mxu0 0.0
      %2521 = vmatprep.subr.mxu0 0.0
      %2522 = vmatpush1.msra.mxu0 0.0
      %2523 = vmatprep.subr.mxu0 0.0
      %2524 = vmatpush1.msra.mxu0 0.0
      %2525 = vmatprep.subr.mxu0 0.0
      %2526 = vmatpush1.msra.mxu0 0.0
      %2527 = vmatprep.subr.mxu0 0.0
      %2528 = vmatpush1.msra.mxu0 0.0
      %2529 = vmatprep.subr.mxu0 0.0
      %2530 = vmatpush1.msra.mxu0 0.0
      %2531 = vmatprep.subr.mxu0 0.0
      %2532 = vmatpush1.msra.mxu0 0.0
      %2533 = vmatprep.subr.mxu0 0.0
      %2534 = vmatpush1.msra.mxu0 0.0
      %2535 = vmatprep.subr.mxu0 0.0
      %2536 = vmatpush1.msra.mxu0 0.0
      %2537 = vmatprep.subr.mxu0 0.0
      %2538 = vmatpush1.msra.mxu0 0.0
      %2539 = vmatprep.subr.mxu0 0.0
      %2540 = vmatpush1.msra.mxu0 0.0
      %2541 = vmatprep.subr.mxu0 0.0
      %2542 = vmatpush1.msra.mxu0 0.0
      %2543 = vmatprep.subr.mxu0 0.0
      %2544 = vmatpush1.msra.mxu0 0.0
      %2545 = vmatprep.subr.mxu0 0.0
      %2546 = vmatpush1.msra.mxu0 0.0
      %2547 = vmatprep.subr.mxu0 0.0
      %2548 = vmatpush1.msra.mxu0 0.0
      %2549 = vmatprep.subr.mxu0 0.0
      %2550 = vmatpush1.msra.mxu0 0.0
      %2551 = vmatprep.subr.mxu0 0.0
      %2552 = vmatpush1.msra.mxu0 0.0
      %2553 = vmatprep.subr.mxu0 0.0
      %2554 = vmatpush1.msra.mxu0 0.0
      %2555 = vmatprep.subr.mxu0 0.0
      %2556 = vmatpush1.msra.mxu0 0.0
      %2557 = vmatprep.subr.mxu0 0.0
      %2558 = vmatpush1.msra.mxu0 0.0
      %2559 = vmatprep.subr.mxu0 0.0
      %2560 = vmatpush1.msra.mxu0 0.0
      %2561 = vmatprep.subr.mxu0 0.0
      %2562 = vmatpush1.msra.mxu0 0.0
      %2563 = vmatprep.subr.mxu0 0.0
      %2564 = vmatpush1.msra.mxu0 0.0
      %2565 = vmatprep.subr.mxu0 0.0
      %2566 = vmatpush1.msra.mxu0 0.0
      %2567 = vmatprep.mubr.f32.mxu0 0.0
      %2568 = vmatmul.mubr.f32.gmra.mrb[0].mxu0 %v2192
      %v2569 = vpop.f32.mrb[0].mxu0
      %v2570 = vadd.f32 0.0, %v2569
      %v2571 = vpop.f32.mrb[0].mxu0
      %2572 = vmatprep.mubr.f32.mxu0 0.0
      %2573 = vmatmul.mubr.f32.gmra.mrb[0].mxu0 %v2195
      %v2574 = vpop.f32.mrb[0].mxu0
      %v2575 = vadd.f32 0.0, %v2574
      %v2576 = vpop.f32.mrb[0].mxu0
      %2577 = vdwg.mxu0
      %v2579 = vsel %vm380, %v2575, 0
      %2581 = vmatprep.subr.mxu0 0.0
      %2582 = vmatpush1.msra.mxu0 %v2570
      %2583 = vmatprep.subr.mxu0 0.0
      %2584 = vmatpush1.msra.mxu0 %v2579
      %2585 = vmatprep.subr.mxu0 0.0
      %2586 = vmatpush1.msra.mxu0 0.0
      %2587 = vmatprep.subr.mxu0 0.0
      %2588 = vmatpush1.msra.mxu0 0.0
      %2589 = vmatprep.subr.mxu0 0.0
      %2590 = vmatpush1.msra.mxu0 0.0
      %2591 = vmatprep.subr.mxu0 0.0
      %2592 = vmatpush1.msra.mxu0 0.0
      %2593 = vmatprep.subr.mxu0 0.0
      %2594 = vmatpush1.msra.mxu0 0.0
      %2595 = vmatprep.subr.mxu0 0.0
      %2596 = vmatpush1.msra.mxu0 0.0
      %2597 = vmatprep.subr.mxu0 0.0
      %2598 = vmatpush1.msra.mxu0 0.0
      %2599 = vmatprep.subr.mxu0 0.0
      %2600 = vmatpush1.msra.mxu0 0.0
      %2601 = vmatprep.subr.mxu0 0.0
      %2602 = vmatpush1.msra.mxu0 0.0
      %2603 = vmatprep.subr.mxu0 0.0
      %2604 = vmatpush1.msra.mxu0 0.0
      %2605 = vmatprep.subr.mxu0 0.0
      %2606 = vmatpush1.msra.mxu0 0.0
      %2607 = vmatprep.subr.mxu0 0.0
      %2608 = vmatpush1.msra.mxu0 0.0
      %2609 = vmatprep.subr.mxu0 0.0
      %2610 = vmatpush1.msra.mxu0 0.0
      %2611 = vmatprep.subr.mxu0 0.0
      %2612 = vmatpush1.msra.mxu0 0.0
      %2613 = vmatprep.subr.mxu0 0.0
      %2614 = vmatpush1.msra.mxu0 0.0
      %2615 = vmatprep.subr.mxu0 0.0
      %2616 = vmatpush1.msra.mxu0 0.0
      %2617 = vmatprep.subr.mxu0 0.0
      %2618 = vmatpush1.msra.mxu0 0.0
      %2619 = vmatprep.subr.mxu0 0.0
      %2620 = vmatpush1.msra.mxu0 0.0
      %2621 = vmatprep.subr.mxu0 0.0
      %2622 = vmatpush1.msra.mxu0 0.0
      %2623 = vmatprep.subr.mxu0 0.0
      %2624 = vmatpush1.msra.mxu0 0.0
      %2625 = vmatprep.subr.mxu0 0.0
      %2626 = vmatpush1.msra.mxu0 0.0
      %2627 = vmatprep.subr.mxu0 0.0
      %2628 = vmatpush1.msra.mxu0 0.0
      %2629 = vmatprep.subr.mxu0 0.0
      %2630 = vmatpush1.msra.mxu0 0.0
      %2631 = vmatprep.subr.mxu0 0.0
      %2632 = vmatpush1.msra.mxu0 0.0
      %2633 = vmatprep.subr.mxu0 0.0
      %2634 = vmatpush1.msra.mxu0 0.0
      %2635 = vmatprep.subr.mxu0 0.0
      %2636 = vmatpush1.msra.mxu0 0.0
      %2637 = vmatprep.subr.mxu0 0.0
      %2638 = vmatpush1.msra.mxu0 0.0
      %2639 = vmatprep.subr.mxu0 0.0
      %2640 = vmatpush1.msra.mxu0 0.0
      %2641 = vmatprep.subr.mxu0 0.0
      %2642 = vmatpush1.msra.mxu0 0.0
      %2643 = vmatprep.subr.mxu0 0.0
      %2644 = vmatpush1.msra.mxu0 0.0
      %2645 = vmatprep.mubr.f32.mxu0 0.0
      %2646 = vmatmul.mubr.f32.gmra.mrb[0].mxu0 %v619
      %v2647 = vpop.f32.mrb[0].mxu0
      %v2648 = vadd.f32 0.0, %v2647
      %v2649 = vpop.f32.mrb[0].mxu0
      %2650 = vmatprep.mubr.f32.mxu0 0.0
      %2651 = vmatmul.mubr.f32.gmra.mrb[0].mxu0 %v622
      %v2652 = vpop.f32.mrb[0].mxu0
      %v2653 = vadd.f32 0.0, %v2652
      %v2654 = vpop.f32.mrb[0].mxu0
      %2655 = vdwg.mxu0
      %v2656 = vadd.f32 %v2495, %v2648
      %v2657 = vadd.f32 %v2500, %v2653
      %v2658 = vadd.f32 %v2656, %v707
      %v2659 = vadd.f32 %v2657, %v712
      %v2660 = vand.u32 2147483647, %v2659
      %v2661 = vsub.f32 0.0, %v2660
      %v2662 = vmul.f32 %v2661, 1.442695
      %v2663 = vpow.pop %v2662
      %vm2664 = vcmp.ge.f32.partialorder %v2659, 0.0
      %v2665 = vsel %vm2664, 1.0, %v2663
      %v2666 = vadd.f32 %v2663, 1.0
      %v2667 = vrcp.pop %v2666
      %v2668 = vmul.f32 %v2665, %v2667
      %v2669 = vmul.f32 %v2658, %v2668
      %2671 = vrot.lane.b32.xlu0 %v2669, 28
      %v2672 = vpop.permute.xlu0 %2671
      %vm2674 = vcmask 285920
      %2675 = vst.msk [vmem:[%s195] sm:$0xff] %vm2674, %v2672
      %v2676 = vld [vmem:[%s191 + $0x28] sm:$0xff]
      %v2677 = vld [vmem:[%s191 + $0x30] sm:$0xf]
      %v2679 = vsel %vm216, %v2676, 0
      %v2682 = vsel %vm216, %v2677, 0
      %2684 = vmatprep.subr.mxu0 0.0
      %2685 = vmatpush1.msra.mxu0 %v206
      %2686 = vmatprep.subr.mxu0 0.0
      %2687 = vmatpush1.msra.mxu0 %v207
      %2688 = vmatprep.subr.mxu0 0.0
      %2689 = vmatpush1.msra.mxu0 0.0
      %2690 = vmatprep.subr.mxu0 0.0
      %2691 = vmatpush1.msra.mxu0 0.0
      %2692 = vmatprep.subr.mxu0 0.0
      %2693 = vmatpush1.msra.mxu0 0.0
      %2694 = vmatprep.subr.mxu0 0.0
      %2695 = vmatpush1.msra.mxu0 0.0
      %2696 = vmatprep.subr.mxu0 0.0
      %2697 = vmatpush1.msra.mxu0 0.0
      %2698 = vmatprep.subr.mxu0 0.0
      %2699 = vmatpush1.msra.mxu0 0.0
      %2700 = vmatprep.subr.mxu0 0.0
      %2701 = vmatpush1.msra.mxu0 0.0
      %2702 = vmatprep.subr.mxu0 0.0
      %2703 = vmatpush1.msra.mxu0 0.0
      %2704 = vmatprep.subr.mxu0 0.0
      %2705 = vmatpush1.msra.mxu0 0.0
      %2706 = vmatprep.subr.mxu0 0.0
      %2707 = vmatpush1.msra.mxu0 0.0
      %2708 = vmatprep.subr.mxu0 0.0
      %2709 = vmatpush1.msra.mxu0 0.0
      %2710 = vmatprep.subr.mxu0 0.0
      %2711 = vmatpush1.msra.mxu0 0.0
      %2712 = vmatprep.subr.mxu0 0.0
      %2713 = vmatpush1.msra.mxu0 0.0
      %2714 = vmatprep.subr.mxu0 0.0
      %2715 = vmatpush1.msra.mxu0 0.0
      %2716 = vmatprep.subr.mxu0 0.0
      %2717 = vmatpush1.msra.mxu0 0.0
      %2718 = vmatprep.subr.mxu0 0.0
      %2719 = vmatpush1.msra.mxu0 0.0
      %2720 = vmatprep.subr.mxu0 0.0
      %2721 = vmatpush1.msra.mxu0 0.0
      %2722 = vmatprep.subr.mxu0 0.0
      %2723 = vmatpush1.msra.mxu0 0.0
      %2724 = vmatprep.subr.mxu0 0.0
      %2725 = vmatpush1.msra.mxu0 0.0
      %2726 = vmatprep.subr.mxu0 0.0
      %2727 = vmatpush1.msra.mxu0 0.0
      %2728 = vmatprep.subr.mxu0 0.0
      %2729 = vmatpush1.msra.mxu0 0.0
      %2730 = vmatprep.subr.mxu0 0.0
      %2731 = vmatpush1.msra.mxu0 0.0
      %2732 = vmatprep.subr.mxu0 0.0
      %2733 = vmatpush1.msra.mxu0 0.0
      %2734 = vmatprep.subr.mxu0 0.0
      %2735 = vmatpush1.msra.mxu0 0.0
      %2736 = vmatprep.subr.mxu0 0.0
      %2737 = vmatpush1.msra.mxu0 0.0
      %2738 = vmatprep.subr.mxu0 0.0
      %2739 = vmatpush1.msra.mxu0 0.0
      %2740 = vmatprep.subr.mxu0 0.0
      %2741 = vmatpush1.msra.mxu0 0.0
      %2742 = vmatprep.subr.mxu0 0.0
      %2743 = vmatpush1.msra.mxu0 0.0
      %2744 = vmatprep.subr.mxu0 0.0
      %2745 = vmatpush1.msra.mxu0 0.0
      %2746 = vmatprep.subr.mxu0 0.0
      %2747 = vmatpush1.msra.mxu0 0.0
      %2748 = vmatprep.mubr.f32.mxu0 0.0
      %2749 = vmatmul.mubr.f32.gmra.mrb[0].mxu0 %v2679
      %v2750 = vpop.f32.mrb[0].mxu0
      %v2751 = vadd.f32 0.0, %v2750
      %v2752 = vpop.f32.mrb[0].mxu0
      %2753 = vmatprep.mubr.f32.mxu0 0.0
      %2754 = vmatmul.mubr.f32.gmra.mrb[0].mxu0 %v2682
      %v2755 = vpop.f32.mrb[0].mxu0
      %v2756 = vadd.f32 0.0, %v2755
      %v2757 = vpop.f32.mrb[0].mxu0
      %2758 = vdwg.mxu0
      %2759 = vmatprep.subr.mxu0 0.0
      %2760 = vmatpush1.msra.mxu0 %v209
      %2761 = vmatprep.subr.mxu0 0.0
      %2762 = vmatpush1.msra.mxu0 %v210
      %2763 = vmatprep.subr.mxu0 0.0
      %2764 = vmatpush1.msra.mxu0 0.0
      %2765 = vmatprep.subr.mxu0 0.0
      %2766 = vmatpush1.msra.mxu0 0.0
      %2767 = vmatprep.subr.mxu0 0.0
      %2768 = vmatpush1.msra.mxu0 0.0
      %2769 = vmatprep.subr.mxu0 0.0
      %2770 = vmatpush1.msra.mxu0 0.0
      %2771 = vmatprep.subr.mxu0 0.0
      %2772 = vmatpush1.msra.mxu0 0.0
      %2773 = vmatprep.subr.mxu0 0.0
      %2774 = vmatpush1.msra.mxu0 0.0
      %2775 = vmatprep.subr.mxu0 0.0
      %2776 = vmatpush1.msra.mxu0 0.0
      %2777 = vmatprep.subr.mxu0 0.0
      %2778 = vmatpush1.msra.mxu0 0.0
      %2779 = vmatprep.subr.mxu0 0.0
      %2780 = vmatpush1.msra.mxu0 0.0
      %2781 = vmatprep.subr.mxu0 0.0
      %2782 = vmatpush1.msra.mxu0 0.0
      %2783 = vmatprep.subr.mxu0 0.0
      %2784 = vmatpush1.msra.mxu0 0.0
      %2785 = vmatprep.subr.mxu0 0.0
      %2786 = vmatpush1.msra.mxu0 0.0
      %2787 = vmatprep.subr.mxu0 0.0
      %2788 = vmatpush1.msra.mxu0 0.0
      %2789 = vmatprep.subr.mxu0 0.0
      %2790 = vmatpush1.msra.mxu0 0.0
      %2791 = vmatprep.subr.mxu0 0.0
      %2792 = vmatpush1.msra.mxu0 0.0
      %2793 = vmatprep.subr.mxu0 0.0
      %2794 = vmatpush1.msra.mxu0 0.0
      %2795 = vmatprep.subr.mxu0 0.0
      %2796 = vmatpush1.msra.mxu0 0.0
      %2797 = vmatprep.subr.mxu0 0.0
      %2798 = vmatpush1.msra.mxu0 0.0
      %2799 = vmatprep.subr.mxu0 0.0
      %2800 = vmatpush1.msra.mxu0 0.0
      %2801 = vmatprep.subr.mxu0 0.0
      %2802 = vmatpush1.msra.mxu0 0.0
      %2803 = vmatprep.subr.mxu0 0.0
      %2804 = vmatpush1.msra.mxu0 0.0
      %2805 = vmatprep.subr.mxu0 0.0
      %2806 = vmatpush1.msra.mxu0 0.0
      %2807 = vmatprep.subr.mxu0 0.0
      %2808 = vmatpush1.msra.mxu0 0.0
      %2809 = vmatprep.subr.mxu0 0.0
      %2810 = vmatpush1.msra.mxu0 0.0
      %2811 = vmatprep.subr.mxu0 0.0
      %2812 = vmatpush1.msra.mxu0 0.0
      %2813 = vmatprep.subr.mxu0 0.0
      %2814 = vmatpush1.msra.mxu0 0.0
      %2815 = vmatprep.subr.mxu0 0.0
      %2816 = vmatpush1.msra.mxu0 0.0
      %2817 = vmatprep.subr.mxu0 0.0
      %2818 = vmatpush1.msra.mxu0 0.0
      %2819 = vmatprep.subr.mxu0 0.0
      %2820 = vmatpush1.msra.mxu0 0.0
      %2821 = vmatprep.subr.mxu0 0.0
      %2822 = vmatpush1.msra.mxu0 0.0
      %2823 = vmatprep.mubr.f32.mxu0 0.0
      %2824 = vmatmul.mubr.f32.gmra.mrb[0].mxu0 %v2679
      %v2825 = vpop.f32.mrb[0].mxu0
      %v2826 = vadd.f32 0.0, %v2825
      %v2827 = vpop.f32.mrb[0].mxu0
      %2828 = vmatprep.mubr.f32.mxu0 0.0
      %2829 = vmatmul.mubr.f32.gmra.mrb[0].mxu0 %v2682
      %v2830 = vpop.f32.mrb[0].mxu0
      %v2831 = vadd.f32 0.0, %v2830
      %v2832 = vpop.f32.mrb[0].mxu0
      %2833 = vdwg.mxu0
      %v2835 = vsel %vm380, %v2831, 0
      %2837 = vmatprep.subr.mxu0 0.0
      %2838 = vmatpush1.msra.mxu0 %v2826
      %2839 = vmatprep.subr.mxu0 0.0
      %2840 = vmatpush1.msra.mxu0 %v2835
      %2841 = vmatprep.subr.mxu0 0.0
      %2842 = vmatpush1.msra.mxu0 0.0
      %2843 = vmatprep.subr.mxu0 0.0
      %2844 = vmatpush1.msra.mxu0 0.0
      %2845 = vmatprep.subr.mxu0 0.0
      %2846 = vmatpush1.msra.mxu0 0.0
      %2847 = vmatprep.subr.mxu0 0.0
      %2848 = vmatpush1.msra.mxu0 0.0
      %2849 = vmatprep.subr.mxu0 0.0
      %2850 = vmatpush1.msra.mxu0 0.0
      %2851 = vmatprep.subr.mxu0 0.0
      %2852 = vmatpush1.msra.mxu0 0.0
      %2853 = vmatprep.subr.mxu0 0.0
      %2854 = vmatpush1.msra.mxu0 0.0
      %2855 = vmatprep.subr.mxu0 0.0
      %2856 = vmatpush1.msra.mxu0 0.0
      %2857 = vmatprep.subr.mxu0 0.0
      %2858 = vmatpush1.msra.mxu0 0.0
      %2859 = vmatprep.subr.mxu0 0.0
      %2860 = vmatpush1.msra.mxu0 0.0
      %2861 = vmatprep.subr.mxu0 0.0
      %2862 = vmatpush1.msra.mxu0 0.0
      %2863 = vmatprep.subr.mxu0 0.0
      %2864 = vmatpush1.msra.mxu0 0.0
      %2865 = vmatprep.subr.mxu0 0.0
      %2866 = vmatpush1.msra.mxu0 0.0
      %2867 = vmatprep.subr.mxu0 0.0
      %2868 = vmatpush1.msra.mxu0 0.0
      %2869 = vmatprep.subr.mxu0 0.0
      %2870 = vmatpush1.msra.mxu0 0.0
      %2871 = vmatprep.subr.mxu0 0.0
      %2872 = vmatpush1.msra.mxu0 0.0
      %2873 = vmatprep.subr.mxu0 0.0
      %2874 = vmatpush1.msra.mxu0 0.0
      %2875 = vmatprep.subr.mxu0 0.0
      %2876 = vmatpush1.msra.mxu0 0.0
      %2877 = vmatprep.subr.mxu0 0.0
      %2878 = vmatpush1.msra.mxu0 0.0
      %2879 = vmatprep.subr.mxu0 0.0
      %2880 = vmatpush1.msra.mxu0 0.0
      %2881 = vmatprep.subr.mxu0 0.0
      %2882 = vmatpush1.msra.mxu0 0.0
      %2883 = vmatprep.subr.mxu0 0.0
      %2884 = vmatpush1.msra.mxu0 0.0
      %2885 = vmatprep.subr.mxu0 0.0
      %2886 = vmatpush1.msra.mxu0 0.0
      %2887 = vmatprep.subr.mxu0 0.0
      %2888 = vmatpush1.msra.mxu0 0.0
      %2889 = vmatprep.subr.mxu0 0.0
      %2890 = vmatpush1.msra.mxu0 0.0
      %2891 = vmatprep.subr.mxu0 0.0
      %2892 = vmatpush1.msra.mxu0 0.0
      %2893 = vmatprep.subr.mxu0 0.0
      %2894 = vmatpush1.msra.mxu0 0.0
      %2895 = vmatprep.subr.mxu0 0.0
      %2896 = vmatpush1.msra.mxu0 0.0
      %2897 = vmatprep.subr.mxu0 0.0
      %2898 = vmatpush1.msra.mxu0 0.0
      %2899 = vmatprep.subr.mxu0 0.0
      %2900 = vmatpush1.msra.mxu0 0.0
      %2901 = vmatprep.mubr.f32.mxu0 0.0
      %2902 = vmatmul.mubr.f32.gmra.mrb[0].mxu0 %v375
      %v2903 = vpop.f32.mrb[0].mxu0
      %v2904 = vadd.f32 0.0, %v2903
      %v2905 = vpop.f32.mrb[0].mxu0
      %2906 = vmatprep.mubr.f32.mxu0 0.0
      %2907 = vmatmul.mubr.f32.gmra.mrb[0].mxu0 %v378
      %v2908 = vpop.f32.mrb[0].mxu0
      %v2909 = vadd.f32 0.0, %v2908
      %v2910 = vpop.f32.mrb[0].mxu0
      %2911 = vdwg.mxu0
      %v2913 = vsel %vm380, %v2756, 0
      %2915 = vmatprep.subr.mxu0 0.0
      %2916 = vmatpush1.msra.mxu0 %v2751
      %2917 = vmatprep.subr.mxu0 0.0
      %2918 = vmatpush1.msra.mxu0 %v2913
      %2919 = vmatprep.subr.mxu0 0.0
      %2920 = vmatpush1.msra.mxu0 0.0
      %2921 = vmatprep.subr.mxu0 0.0
      %2922 = vmatpush1.msra.mxu0 0.0
      %2923 = vmatprep.subr.mxu0 0.0
      %2924 = vmatpush1.msra.mxu0 0.0
      %2925 = vmatprep.subr.mxu0 0.0
      %2926 = vmatpush1.msra.mxu0 0.0
      %2927 = vmatprep.subr.mxu0 0.0
      %2928 = vmatpush1.msra.mxu0 0.0
      %2929 = vmatprep.subr.mxu0 0.0
      %2930 = vmatpush1.msra.mxu0 0.0
      %2931 = vmatprep.subr.mxu0 0.0
      %2932 = vmatpush1.msra.mxu0 0.0
      %2933 = vmatprep.subr.mxu0 0.0
      %2934 = vmatpush1.msra.mxu0 0.0
      %2935 = vmatprep.subr.mxu0 0.0
      %2936 = vmatpush1.msra.mxu0 0.0
      %2937 = vmatprep.subr.mxu0 0.0
      %2938 = vmatpush1.msra.mxu0 0.0
      %2939 = vmatprep.subr.mxu0 0.0
      %2940 = vmatpush1.msra.mxu0 0.0
      %2941 = vmatprep.subr.mxu0 0.0
      %2942 = vmatpush1.msra.mxu0 0.0
      %2943 = vmatprep.subr.mxu0 0.0
      %2944 = vmatpush1.msra.mxu0 0.0
      %2945 = vmatprep.subr.mxu0 0.0
      %2946 = vmatpush1.msra.mxu0 0.0
      %2947 = vmatprep.subr.mxu0 0.0
      %2948 = vmatpush1.msra.mxu0 0.0
      %2949 = vmatprep.subr.mxu0 0.0
      %2950 = vmatpush1.msra.mxu0 0.0
      %2951 = vmatprep.subr.mxu0 0.0
      %2952 = vmatpush1.msra.mxu0 0.0
      %2953 = vmatprep.subr.mxu0 0.0
      %2954 = vmatpush1.msra.mxu0 0.0
      %2955 = vmatprep.subr.mxu0 0.0
      %2956 = vmatpush1.msra.mxu0 0.0
      %2957 = vmatprep.subr.mxu0 0.0
      %2958 = vmatpush1.msra.mxu0 0.0
      %2959 = vmatprep.subr.mxu0 0.0
      %2960 = vmatpush1.msra.mxu0 0.0
      %2961 = vmatprep.subr.mxu0 0.0
      %2962 = vmatpush1.msra.mxu0 0.0
      %2963 = vmatprep.subr.mxu0 0.0
      %2964 = vmatpush1.msra.mxu0 0.0
      %2965 = vmatprep.subr.mxu0 0.0
      %2966 = vmatpush1.msra.mxu0 0.0
      %2967 = vmatprep.subr.mxu0 0.0
      %2968 = vmatpush1.msra.mxu0 0.0
      %2969 = vmatprep.subr.mxu0 0.0
      %2970 = vmatpush1.msra.mxu0 0.0
      %2971 = vmatprep.subr.mxu0 0.0
      %2972 = vmatpush1.msra.mxu0 0.0
      %2973 = vmatprep.subr.mxu0 0.0
      %2974 = vmatpush1.msra.mxu0 0.0
      %2975 = vmatprep.subr.mxu0 0.0
      %2976 = vmatpush1.msra.mxu0 0.0
      %2977 = vmatprep.subr.mxu0 0.0
      %2978 = vmatpush1.msra.mxu0 0.0
      %2979 = vmatprep.mubr.f32.mxu0 0.0
      %2980 = vmatmul.mubr.f32.gmra.mrb[0].mxu0 %v460
      %v2981 = vpop.f32.mrb[0].mxu0
      %v2982 = vadd.f32 %v2904, %v2981
      %v2983 = vpop.f32.mrb[0].mxu0
      %2984 = vmatprep.mubr.f32.mxu0 0.0
      %2985 = vmatmul.mubr.f32.gmra.mrb[0].mxu0 %v463
      %v2986 = vpop.f32.mrb[0].mxu0
      %v2987 = vadd.f32 %v2909, %v2986
      %v2988 = vpop.f32.mrb[0].mxu0
      %2989 = vdwg.mxu0
      %2990 = vmatprep.subr.mxu0 0.0
      %2991 = vmatpush1.msra.mxu0 %v212
      %2992 = vmatprep.subr.mxu0 0.0
      %2993 = vmatpush1.msra.mxu0 %v213
      %2994 = vmatprep.subr.mxu0 0.0
      %2995 = vmatpush1.msra.mxu0 0.0
      %2996 = vmatprep.subr.mxu0 0.0
      %2997 = vmatpush1.msra.mxu0 0.0
      %2998 = vmatprep.subr.mxu0 0.0
      %2999 = vmatpush1.msra.mxu0 0.0
      %3000 = vmatprep.subr.mxu0 0.0
      %3001 = vmatpush1.msra.mxu0 0.0
      %3002 = vmatprep.subr.mxu0 0.0
      %3003 = vmatpush1.msra.mxu0 0.0
      %3004 = vmatprep.subr.mxu0 0.0
      %3005 = vmatpush1.msra.mxu0 0.0
      %3006 = vmatprep.subr.mxu0 0.0
      %3007 = vmatpush1.msra.mxu0 0.0
      %3008 = vmatprep.subr.mxu0 0.0
      %3009 = vmatpush1.msra.mxu0 0.0
      %3010 = vmatprep.subr.mxu0 0.0
      %3011 = vmatpush1.msra.mxu0 0.0
      %3012 = vmatprep.subr.mxu0 0.0
      %3013 = vmatpush1.msra.mxu0 0.0
      %3014 = vmatprep.subr.mxu0 0.0
      %3015 = vmatpush1.msra.mxu0 0.0
      %3016 = vmatprep.subr.mxu0 0.0
      %3017 = vmatpush1.msra.mxu0 0.0
      %3018 = vmatprep.subr.mxu0 0.0
      %3019 = vmatpush1.msra.mxu0 0.0
      %3020 = vmatprep.subr.mxu0 0.0
      %3021 = vmatpush1.msra.mxu0 0.0
      %3022 = vmatprep.subr.mxu0 0.0
      %3023 = vmatpush1.msra.mxu0 0.0
      %3024 = vmatprep.subr.mxu0 0.0
      %3025 = vmatpush1.msra.mxu0 0.0
      %3026 = vmatprep.subr.mxu0 0.0
      %3027 = vmatpush1.msra.mxu0 0.0
      %3028 = vmatprep.subr.mxu0 0.0
      %3029 = vmatpush1.msra.mxu0 0.0
      %3030 = vmatprep.subr.mxu0 0.0
      %3031 = vmatpush1.msra.mxu0 0.0
      %3032 = vmatprep.subr.mxu0 0.0
      %3033 = vmatpush1.msra.mxu0 0.0
      %3034 = vmatprep.subr.mxu0 0.0
      %3035 = vmatpush1.msra.mxu0 0.0
      %3036 = vmatprep.subr.mxu0 0.0
      %3037 = vmatpush1.msra.mxu0 0.0
      %3038 = vmatprep.subr.mxu0 0.0
      %3039 = vmatpush1.msra.mxu0 0.0
      %3040 = vmatprep.subr.mxu0 0.0
      %3041 = vmatpush1.msra.mxu0 0.0
      %3042 = vmatprep.subr.mxu0 0.0
      %3043 = vmatpush1.msra.mxu0 0.0
      %3044 = vmatprep.subr.mxu0 0.0
      %3045 = vmatpush1.msra.mxu0 0.0
      %3046 = vmatprep.subr.mxu0 0.0
      %3047 = vmatpush1.msra.mxu0 0.0
      %3048 = vmatprep.subr.mxu0 0.0
      %3049 = vmatpush1.msra.mxu0 0.0
      %3050 = vmatprep.subr.mxu0 0.0
      %3051 = vmatpush1.msra.mxu0 0.0
      %3052 = vmatprep.subr.mxu0 0.0
      %3053 = vmatpush1.msra.mxu0 0.0
      %3054 = vmatprep.mubr.f32.mxu0 0.0
      %3055 = vmatmul.mubr.f32.gmra.mrb[0].mxu0 %v2679
      %v3056 = vpop.f32.mrb[0].mxu0
      %v3057 = vadd.f32 0.0, %v3056
      %v3058 = vpop.f32.mrb[0].mxu0
      %3059 = vmatprep.mubr.f32.mxu0 0.0
      %3060 = vmatmul.mubr.f32.gmra.mrb[0].mxu0 %v2682
      %v3061 = vpop.f32.mrb[0].mxu0
      %v3062 = vadd.f32 0.0, %v3061
      %v3063 = vpop.f32.mrb[0].mxu0
      %3064 = vdwg.mxu0
      %v3066 = vsel %vm380, %v3062, 0
      %3068 = vmatprep.subr.mxu0 0.0
      %3069 = vmatpush1.msra.mxu0 %v3057
      %3070 = vmatprep.subr.mxu0 0.0
      %3071 = vmatpush1.msra.mxu0 %v3066
      %3072 = vmatprep.subr.mxu0 0.0
      %3073 = vmatpush1.msra.mxu0 0.0
      %3074 = vmatprep.subr.mxu0 0.0
      %3075 = vmatpush1.msra.mxu0 0.0
      %3076 = vmatprep.subr.mxu0 0.0
      %3077 = vmatpush1.msra.mxu0 0.0
      %3078 = vmatprep.subr.mxu0 0.0
      %3079 = vmatpush1.msra.mxu0 0.0
      %3080 = vmatprep.subr.mxu0 0.0
      %3081 = vmatpush1.msra.mxu0 0.0
      %3082 = vmatprep.subr.mxu0 0.0
      %3083 = vmatpush1.msra.mxu0 0.0
      %3084 = vmatprep.subr.mxu0 0.0
      %3085 = vmatpush1.msra.mxu0 0.0
      %3086 = vmatprep.subr.mxu0 0.0
      %3087 = vmatpush1.msra.mxu0 0.0
      %3088 = vmatprep.subr.mxu0 0.0
      %3089 = vmatpush1.msra.mxu0 0.0
      %3090 = vmatprep.subr.mxu0 0.0
      %3091 = vmatpush1.msra.mxu0 0.0
      %3092 = vmatprep.subr.mxu0 0.0
      %3093 = vmatpush1.msra.mxu0 0.0
      %3094 = vmatprep.subr.mxu0 0.0
      %3095 = vmatpush1.msra.mxu0 0.0
      %3096 = vmatprep.subr.mxu0 0.0
      %3097 = vmatpush1.msra.mxu0 0.0
      %3098 = vmatprep.subr.mxu0 0.0
      %3099 = vmatpush1.msra.mxu0 0.0
      %3100 = vmatprep.subr.mxu0 0.0
      %3101 = vmatpush1.msra.mxu0 0.0
      %3102 = vmatprep.subr.mxu0 0.0
      %3103 = vmatpush1.msra.mxu0 0.0
      %3104 = vmatprep.subr.mxu0 0.0
      %3105 = vmatpush1.msra.mxu0 0.0
      %3106 = vmatprep.subr.mxu0 0.0
      %3107 = vmatpush1.msra.mxu0 0.0
      %3108 = vmatprep.subr.mxu0 0.0
      %3109 = vmatpush1.msra.mxu0 0.0
      %3110 = vmatprep.subr.mxu0 0.0
      %3111 = vmatpush1.msra.mxu0 0.0
      %3112 = vmatprep.subr.mxu0 0.0
      %3113 = vmatpush1.msra.mxu0 0.0
      %3114 = vmatprep.subr.mxu0 0.0
      %3115 = vmatpush1.msra.mxu0 0.0
      %3116 = vmatprep.subr.mxu0 0.0
      %3117 = vmatpush1.msra.mxu0 0.0
      %3118 = vmatprep.subr.mxu0 0.0
      %3119 = vmatpush1.msra.mxu0 0.0
      %3120 = vmatprep.subr.mxu0 0.0
      %3121 = vmatpush1.msra.mxu0 0.0
      %3122 = vmatprep.subr.mxu0 0.0
      %3123 = vmatpush1.msra.mxu0 0.0
      %3124 = vmatprep.subr.mxu0 0.0
      %3125 = vmatpush1.msra.mxu0 0.0
      %3126 = vmatprep.subr.mxu0 0.0
      %3127 = vmatpush1.msra.mxu0 0.0
      %3128 = vmatprep.subr.mxu0 0.0
      %3129 = vmatpush1.msra.mxu0 0.0
      %3130 = vmatprep.subr.mxu0 0.0
      %3131 = vmatpush1.msra.mxu0 0.0
      %3132 = vmatprep.mubr.f32.mxu0 0.0
      %3133 = vmatmul.mubr.f32.gmra.mrb[0].mxu0 %v619
      %v3134 = vpop.f32.mrb[0].mxu0
      %v3135 = vadd.f32 0.0, %v3134
      %v3136 = vpop.f32.mrb[0].mxu0
      %3137 = vmatprep.mubr.f32.mxu0 0.0
      %3138 = vmatmul.mubr.f32.gmra.mrb[0].mxu0 %v622
      %v3139 = vpop.f32.mrb[0].mxu0
      %v3140 = vadd.f32 0.0, %v3139
      %v3141 = vpop.f32.mrb[0].mxu0
      %3142 = vdwg.mxu0
      %v3143 = vadd.f32 %v2982, %v3135
      %v3144 = vadd.f32 %v2987, %v3140
      %v3145 = vadd.f32 %v3143, %v707
      %v3146 = vadd.f32 %v3144, %v712
      %v3147 = vand.u32 2147483647, %v3146
      %v3148 = vsub.f32 0.0, %v3147
      %v3149 = vmul.f32 %v3148, 1.442695
      %v3150 = vpow.pop %v3149
      %vm3151 = vcmp.ge.f32.partialorder %v3146, 0.0
      %v3152 = vsel %vm3151, 1.0, %v3150
      %v3153 = vadd.f32 %v3150, 1.0
      %v3154 = vrcp.pop %v3153
      %v3155 = vmul.f32 %v3152, %v3154
      %v3156 = vmul.f32 %v3145, %v3155
      %3158 = vrot.lane.b32.xlu0 %v3156, 35
      %v3159 = vpop.permute.xlu0 %3158
      %vm3161 = vcmask 343320
      %3162 = vst.msk [vmem:[%s195] sm:$0xff] %vm3161, %v3159
      %v3163 = vld [vmem:[%s191 + $0x30] sm:$0xff]
      %v3164 = vld [vmem:[%s191 + $0x38] sm:$0xf]
      %v3166 = vsel %vm216, %v3163, 0
      %v3169 = vsel %vm216, %v3164, 0
      %3171 = vmatprep.subr.mxu0 0.0
      %3172 = vmatpush1.msra.mxu0 %v206
      %3173 = vmatprep.subr.mxu0 0.0
      %3174 = vmatpush1.msra.mxu0 %v207
      %3175 = vmatprep.subr.mxu0 0.0
      %3176 = vmatpush1.msra.mxu0 0.0
      %3177 = vmatprep.subr.mxu0 0.0
      %3178 = vmatpush1.msra.mxu0 0.0
      %3179 = vmatprep.subr.mxu0 0.0
      %3180 = vmatpush1.msra.mxu0 0.0
      %3181 = vmatprep.subr.mxu0 0.0
      %3182 = vmatpush1.msra.mxu0 0.0
      %3183 = vmatprep.subr.mxu0 0.0
      %3184 = vmatpush1.msra.mxu0 0.0
      %3185 = vmatprep.subr.mxu0 0.0
      %3186 = vmatpush1.msra.mxu0 0.0
      %3187 = vmatprep.subr.mxu0 0.0
      %3188 = vmatpush1.msra.mxu0 0.0
      %3189 = vmatprep.subr.mxu0 0.0
      %3190 = vmatpush1.msra.mxu0 0.0
      %3191 = vmatprep.subr.mxu0 0.0
      %3192 = vmatpush1.msra.mxu0 0.0
      %3193 = vmatprep.subr.mxu0 0.0
      %3194 = vmatpush1.msra.mxu0 0.0
      %3195 = vmatprep.subr.mxu0 0.0
      %3196 = vmatpush1.msra.mxu0 0.0
      %3197 = vmatprep.subr.mxu0 0.0
      %3198 = vmatpush1.msra.mxu0 0.0
      %3199 = vmatprep.subr.mxu0 0.0
      %3200 = vmatpush1.msra.mxu0 0.0
      %3201 = vmatprep.subr.mxu0 0.0
      %3202 = vmatpush1.msra.mxu0 0.0
      %3203 = vmatprep.subr.mxu0 0.0
      %3204 = vmatpush1.msra.mxu0 0.0
      %3205 = vmatprep.subr.mxu0 0.0
      %3206 = vmatpush1.msra.mxu0 0.0
      %3207 = vmatprep.subr.mxu0 0.0
      %3208 = vmatpush1.msra.mxu0 0.0
      %3209 = vmatprep.subr.mxu0 0.0
      %3210 = vmatpush1.msra.mxu0 0.0
      %3211 = vmatprep.subr.mxu0 0.0
      %3212 = vmatpush1.msra.mxu0 0.0
      %3213 = vmatprep.subr.mxu0 0.0
      %3214 = vmatpush1.msra.mxu0 0.0
      %3215 = vmatprep.subr.mxu0 0.0
      %3216 = vmatpush1.msra.mxu0 0.0
      %3217 = vmatprep.subr.mxu0 0.0
      %3218 = vmatpush1.msra.mxu0 0.0
      %3219 = vmatprep.subr.mxu0 0.0
      %3220 = vmatpush1.msra.mxu0 0.0
      %3221 = vmatprep.subr.mxu0 0.0
      %3222 = vmatpush1.msra.mxu0 0.0
      %3223 = vmatprep.subr.mxu0 0.0
      %3224 = vmatpush1.msra.mxu0 0.0
      %3225 = vmatprep.subr.mxu0 0.0
      %3226 = vmatpush1.msra.mxu0 0.0
      %3227 = vmatprep.subr.mxu0 0.0
      %3228 = vmatpush1.msra.mxu0 0.0
      %3229 = vmatprep.subr.mxu0 0.0
      %3230 = vmatpush1.msra.mxu0 0.0
      %3231 = vmatprep.subr.mxu0 0.0
      %3232 = vmatpush1.msra.mxu0 0.0
      %3233 = vmatprep.subr.mxu0 0.0
      %3234 = vmatpush1.msra.mxu0 0.0
      %3235 = vmatprep.mubr.f32.mxu0 0.0
      %3236 = vmatmul.mubr.f32.gmra.mrb[0].mxu0 %v3166
      %v3237 = vpop.f32.mrb[0].mxu0
      %v3238 = vadd.f32 0.0, %v3237
      %v3239 = vpop.f32.mrb[0].mxu0
      %3240 = vmatprep.mubr.f32.mxu0 0.0
      %3241 = vmatmul.mubr.f32.gmra.mrb[0].mxu0 %v3169
      %v3242 = vpop.f32.mrb[0].mxu0
      %v3243 = vadd.f32 0.0, %v3242
      %v3244 = vpop.f32.mrb[0].mxu0
      %3245 = vdwg.mxu0
      %3246 = vmatprep.subr.mxu0 0.0
      %3247 = vmatpush1.msra.mxu0 %v209
      %3248 = vmatprep.subr.mxu0 0.0
      %3249 = vmatpush1.msra.mxu0 %v210
      %3250 = vmatprep.subr.mxu0 0.0
      %3251 = vmatpush1.msra.mxu0 0.0
      %3252 = vmatprep.subr.mxu0 0.0
      %3253 = vmatpush1.msra.mxu0 0.0
      %3254 = vmatprep.subr.mxu0 0.0
      %3255 = vmatpush1.msra.mxu0 0.0
      %3256 = vmatprep.subr.mxu0 0.0
      %3257 = vmatpush1.msra.mxu0 0.0
      %3258 = vmatprep.subr.mxu0 0.0
      %3259 = vmatpush1.msra.mxu0 0.0
      %3260 = vmatprep.subr.mxu0 0.0
      %3261 = vmatpush1.msra.mxu0 0.0
      %3262 = vmatprep.subr.mxu0 0.0
      %3263 = vmatpush1.msra.mxu0 0.0
      %3264 = vmatprep.subr.mxu0 0.0
      %3265 = vmatpush1.msra.mxu0 0.0
      %3266 = vmatprep.subr.mxu0 0.0
      %3267 = vmatpush1.msra.mxu0 0.0
      %3268 = vmatprep.subr.mxu0 0.0
      %3269 = vmatpush1.msra.mxu0 0.0
      %3270 = vmatprep.subr.mxu0 0.0
      %3271 = vmatpush1.msra.mxu0 0.0
      %3272 = vmatprep.subr.mxu0 0.0
      %3273 = vmatpush1.msra.mxu0 0.0
      %3274 = vmatprep.subr.mxu0 0.0
      %3275 = vmatpush1.msra.mxu0 0.0
      %3276 = vmatprep.subr.mxu0 0.0
      %3277 = vmatpush1.msra.mxu0 0.0
      %3278 = vmatprep.subr.mxu0 0.0
      %3279 = vmatpush1.msra.mxu0 0.0
      %3280 = vmatprep.subr.mxu0 0.0
      %3281 = vmatpush1.msra.mxu0 0.0
      %3282 = vmatprep.subr.mxu0 0.0
      %3283 = vmatpush1.msra.mxu0 0.0
      %3284 = vmatprep.subr.mxu0 0.0
      %3285 = vmatpush1.msra.mxu0 0.0
      %3286 = vmatprep.subr.mxu0 0.0
      %3287 = vmatpush1.msra.mxu0 0.0
      %3288 = vmatprep.subr.mxu0 0.0
      %3289 = vmatpush1.msra.mxu0 0.0
      %3290 = vmatprep.subr.mxu0 0.0
      %3291 = vmatpush1.msra.mxu0 0.0
      %3292 = vmatprep.subr.mxu0 0.0
      %3293 = vmatpush1.msra.mxu0 0.0
      %3294 = vmatprep.subr.mxu0 0.0
      %3295 = vmatpush1.msra.mxu0 0.0
      %3296 = vmatprep.subr.mxu0 0.0
      %3297 = vmatpush1.msra.mxu0 0.0
      %3298 = vmatprep.subr.mxu0 0.0
      %3299 = vmatpush1.msra.mxu0 0.0
      %3300 = vmatprep.subr.mxu0 0.0
      %3301 = vmatpush1.msra.mxu0 0.0
      %3302 = vmatprep.subr.mxu0 0.0
      %3303 = vmatpush1.msra.mxu0 0.0
      %3304 = vmatprep.subr.mxu0 0.0
      %3305 = vmatpush1.msra.mxu0 0.0
      %3306 = vmatprep.subr.mxu0 0.0
      %3307 = vmatpush1.msra.mxu0 0.0
      %3308 = vmatprep.subr.mxu0 0.0
      %3309 = vmatpush1.msra.mxu0 0.0
      %3310 = vmatprep.mubr.f32.mxu0 0.0
      %3311 = vmatmul.mubr.f32.gmra.mrb[0].mxu0 %v3166
      %v3312 = vpop.f32.mrb[0].mxu0
      %v3313 = vadd.f32 0.0, %v3312
      %v3314 = vpop.f32.mrb[0].mxu0
      %3315 = vmatprep.mubr.f32.mxu0 0.0
      %3316 = vmatmul.mubr.f32.gmra.mrb[0].mxu0 %v3169
      %v3317 = vpop.f32.mrb[0].mxu0
      %v3318 = vadd.f32 0.0, %v3317
      %v3319 = vpop.f32.mrb[0].mxu0
      %3320 = vdwg.mxu0
      %v3322 = vsel %vm380, %v3318, 0
      %3324 = vmatprep.subr.mxu0 0.0
      %3325 = vmatpush1.msra.mxu0 %v3313
      %3326 = vmatprep.subr.mxu0 0.0
      %3327 = vmatpush1.msra.mxu0 %v3322
      %3328 = vmatprep.subr.mxu0 0.0
      %3329 = vmatpush1.msra.mxu0 0.0
      %3330 = vmatprep.subr.mxu0 0.0
      %3331 = vmatpush1.msra.mxu0 0.0
      %3332 = vmatprep.subr.mxu0 0.0
      %3333 = vmatpush1.msra.mxu0 0.0
      %3334 = vmatprep.subr.mxu0 0.0
      %3335 = vmatpush1.msra.mxu0 0.0
      %3336 = vmatprep.subr.mxu0 0.0
      %3337 = vmatpush1.msra.mxu0 0.0
      %3338 = vmatprep.subr.mxu0 0.0
      %3339 = vmatpush1.msra.mxu0 0.0
      %3340 = vmatprep.subr.mxu0 0.0
      %3341 = vmatpush1.msra.mxu0 0.0
      %3342 = vmatprep.subr.mxu0 0.0
      %3343 = vmatpush1.msra.mxu0 0.0
      %3344 = vmatprep.subr.mxu0 0.0
      %3345 = vmatpush1.msra.mxu0 0.0
      %3346 = vmatprep.subr.mxu0 0.0
      %3347 = vmatpush1.msra.mxu0 0.0
      %3348 = vmatprep.subr.mxu0 0.0
      %3349 = vmatpush1.msra.mxu0 0.0
      %3350 = vmatprep.subr.mxu0 0.0
      %3351 = vmatpush1.msra.mxu0 0.0
      %3352 = vmatprep.subr.mxu0 0.0
      %3353 = vmatpush1.msra.mxu0 0.0
      %3354 = vmatprep.subr.mxu0 0.0
      %3355 = vmatpush1.msra.mxu0 0.0
      %3356 = vmatprep.subr.mxu0 0.0
      %3357 = vmatpush1.msra.mxu0 0.0
      %3358 = vmatprep.subr.mxu0 0.0
      %3359 = vmatpush1.msra.mxu0 0.0
      %3360 = vmatprep.subr.mxu0 0.0
      %3361 = vmatpush1.msra.mxu0 0.0
      %3362 = vmatprep.subr.mxu0 0.0
      %3363 = vmatpush1.msra.mxu0 0.0
      %3364 = vmatprep.subr.mxu0 0.0
      %3365 = vmatpush1.msra.mxu0 0.0
      %3366 = vmatprep.subr.mxu0 0.0
      %3367 = vmatpush1.msra.mxu0 0.0
      %3368 = vmatprep.subr.mxu0 0.0
      %3369 = vmatpush1.msra.mxu0 0.0
      %3370 = vmatprep.subr.mxu0 0.0
      %3371 = vmatpush1.msra.mxu0 0.0
      %3372 = vmatprep.subr.mxu0 0.0
      %3373 = vmatpush1.msra.mxu0 0.0
      %3374 = vmatprep.subr.mxu0 0.0
      %3375 = vmatpush1.msra.mxu0 0.0
      %3376 = vmatprep.subr.mxu0 0.0
      %3377 = vmatpush1.msra.mxu0 0.0
      %3378 = vmatprep.subr.mxu0 0.0
      %3379 = vmatpush1.msra.mxu0 0.0
      %3380 = vmatprep.subr.mxu0 0.0
      %3381 = vmatpush1.msra.mxu0 0.0
      %3382 = vmatprep.subr.mxu0 0.0
      %3383 = vmatpush1.msra.mxu0 0.0
      %3384 = vmatprep.subr.mxu0 0.0
      %3385 = vmatpush1.msra.mxu0 0.0
      %3386 = vmatprep.subr.mxu0 0.0
      %3387 = vmatpush1.msra.mxu0 0.0
      %3388 = vmatprep.mubr.f32.mxu0 0.0
      %3389 = vmatmul.mubr.f32.gmra.mrb[0].mxu0 %v375
      %v3390 = vpop.f32.mrb[0].mxu0
      %v3391 = vadd.f32 0.0, %v3390
      %v3392 = vpop.f32.mrb[0].mxu0
      %3393 = vmatprep.mubr.f32.mxu0 0.0
      %3394 = vmatmul.mubr.f32.gmra.mrb[0].mxu0 %v378
      %v3395 = vpop.f32.mrb[0].mxu0
      %v3396 = vadd.f32 0.0, %v3395
      %v3397 = vpop.f32.mrb[0].mxu0
      %3398 = vdwg.mxu0
      %v3400 = vsel %vm380, %v3243, 0
      %3402 = vmatprep.subr.mxu0 0.0
      %3403 = vmatpush1.msra.mxu0 %v3238
      %3404 = vmatprep.subr.mxu0 0.0
      %3405 = vmatpush1.msra.mxu0 %v3400
      %3406 = vmatprep.subr.mxu0 0.0
      %3407 = vmatpush1.msra.mxu0 0.0
      %3408 = vmatprep.subr.mxu0 0.0
      %3409 = vmatpush1.msra.mxu0 0.0
      %3410 = vmatprep.subr.mxu0 0.0
      %3411 = vmatpush1.msra.mxu0 0.0
      %3412 = vmatprep.subr.mxu0 0.0
      %3413 = vmatpush1.msra.mxu0 0.0
      %3414 = vmatprep.subr.mxu0 0.0
      %3415 = vmatpush1.msra.mxu0 0.0
      %3416 = vmatprep.subr.mxu0 0.0
      %3417 = vmatpush1.msra.mxu0 0.0
      %3418 = vmatprep.subr.mxu0 0.0
      %3419 = vmatpush1.msra.mxu0 0.0
      %3420 = vmatprep.subr.mxu0 0.0
      %3421 = vmatpush1.msra.mxu0 0.0
      %3422 = vmatprep.subr.mxu0 0.0
      %3423 = vmatpush1.msra.mxu0 0.0
      %3424 = vmatprep.subr.mxu0 0.0
      %3425 = vmatpush1.msra.mxu0 0.0
      %3426 = vmatprep.subr.mxu0 0.0
      %3427 = vmatpush1.msra.mxu0 0.0
      %3428 = vmatprep.subr.mxu0 0.0
      %3429 = vmatpush1.msra.mxu0 0.0
      %3430 = vmatprep.subr.mxu0 0.0
      %3431 = vmatpush1.msra.mxu0 0.0
      %3432 = vmatprep.subr.mxu0 0.0
      %3433 = vmatpush1.msra.mxu0 0.0
      %3434 = vmatprep.subr.mxu0 0.0
      %3435 = vmatpush1.msra.mxu0 0.0
      %3436 = vmatprep.subr.mxu0 0.0
      %3437 = vmatpush1.msra.mxu0 0.0
      %3438 = vmatprep.subr.mxu0 0.0
      %3439 = vmatpush1.msra.mxu0 0.0
      %3440 = vmatprep.subr.mxu0 0.0
      %3441 = vmatpush1.msra.mxu0 0.0
      %3442 = vmatprep.subr.mxu0 0.0
      %3443 = vmatpush1.msra.mxu0 0.0
      %3444 = vmatprep.subr.mxu0 0.0
      %3445 = vmatpush1.msra.mxu0 0.0
      %3446 = vmatprep.subr.mxu0 0.0
      %3447 = vmatpush1.msra.mxu0 0.0
      %3448 = vmatprep.subr.mxu0 0.0
      %3449 = vmatpush1.msra.mxu0 0.0
      %3450 = vmatprep.subr.mxu0 0.0
      %3451 = vmatpush1.msra.mxu0 0.0
      %3452 = vmatprep.subr.mxu0 0.0
      %3453 = vmatpush1.msra.mxu0 0.0
      %3454 = vmatprep.subr.mxu0 0.0
      %3455 = vmatpush1.msra.mxu0 0.0
      %3456 = vmatprep.subr.mxu0 0.0
      %3457 = vmatpush1.msra.mxu0 0.0
      %3458 = vmatprep.subr.mxu0 0.0
      %3459 = vmatpush1.msra.mxu0 0.0
      %3460 = vmatprep.subr.mxu0 0.0
      %3461 = vmatpush1.msra.mxu0 0.0
      %3462 = vmatprep.subr.mxu0 0.0
      %3463 = vmatpush1.msra.mxu0 0.0
      %3464 = vmatprep.subr.mxu0 0.0
      %3465 = vmatpush1.msra.mxu0 0.0
      %3466 = vmatprep.mubr.f32.mxu0 0.0
      %3467 = vmatmul.mubr.f32.gmra.mrb[0].mxu0 %v460
      %v3468 = vpop.f32.mrb[0].mxu0
      %v3469 = vadd.f32 %v3391, %v3468
      %v3470 = vpop.f32.mrb[0].mxu0
      %3471 = vmatprep.mubr.f32.mxu0 0.0
      %3472 = vmatmul.mubr.f32.gmra.mrb[0].mxu0 %v463
      %v3473 = vpop.f32.mrb[0].mxu0
      %v3474 = vadd.f32 %v3396, %v3473
      %v3475 = vpop.f32.mrb[0].mxu0
      %3476 = vdwg.mxu0
      %3477 = vmatprep.subr.mxu0 0.0
      %3478 = vmatpush1.msra.mxu0 %v212
      %3479 = vmatprep.subr.mxu0 0.0
      %3480 = vmatpush1.msra.mxu0 %v213
      %3481 = vmatprep.subr.mxu0 0.0
      %3482 = vmatpush1.msra.mxu0 0.0
      %3483 = vmatprep.subr.mxu0 0.0
      %3484 = vmatpush1.msra.mxu0 0.0
      %3485 = vmatprep.subr.mxu0 0.0
      %3486 = vmatpush1.msra.mxu0 0.0
      %3487 = vmatprep.subr.mxu0 0.0
      %3488 = vmatpush1.msra.mxu0 0.0
      %3489 = vmatprep.subr.mxu0 0.0
      %3490 = vmatpush1.msra.mxu0 0.0
      %3491 = vmatprep.subr.mxu0 0.0
      %3492 = vmatpush1.msra.mxu0 0.0
      %3493 = vmatprep.subr.mxu0 0.0
      %3494 = vmatpush1.msra.mxu0 0.0
      %3495 = vmatprep.subr.mxu0 0.0
      %3496 = vmatpush1.msra.mxu0 0.0
      %3497 = vmatprep.subr.mxu0 0.0
      %3498 = vmatpush1.msra.mxu0 0.0
      %3499 = vmatprep.subr.mxu0 0.0
      %3500 = vmatpush1.msra.mxu0 0.0
      %3501 = vmatprep.subr.mxu0 0.0
      %3502 = vmatpush1.msra.mxu0 0.0
      %3503 = vmatprep.subr.mxu0 0.0
      %3504 = vmatpush1.msra.mxu0 0.0
      %3505 = vmatprep.subr.mxu0 0.0
      %3506 = vmatpush1.msra.mxu0 0.0
      %3507 = vmatprep.subr.mxu0 0.0
      %3508 = vmatpush1.msra.mxu0 0.0
      %3509 = vmatprep.subr.mxu0 0.0
      %3510 = vmatpush1.msra.mxu0 0.0
      %3511 = vmatprep.subr.mxu0 0.0
      %3512 = vmatpush1.msra.mxu0 0.0
      %3513 = vmatprep.subr.mxu0 0.0
      %3514 = vmatpush1.msra.mxu0 0.0
      %3515 = vmatprep.subr.mxu0 0.0
      %3516 = vmatpush1.msra.mxu0 0.0
      %3517 = vmatprep.subr.mxu0 0.0
      %3518 = vmatpush1.msra.mxu0 0.0
      %3519 = vmatprep.subr.mxu0 0.0
      %3520 = vmatpush1.msra.mxu0 0.0
      %3521 = vmatprep.subr.mxu0 0.0
      %3522 = vmatpush1.msra.mxu0 0.0
      %3523 = vmatprep.subr.mxu0 0.0
      %3524 = vmatpush1.msra.mxu0 0.0
      %3525 = vmatprep.subr.mxu0 0.0
      %3526 = vmatpush1.msra.mxu0 0.0
      %3527 = vmatprep.subr.mxu0 0.0
      %3528 = vmatpush1.msra.mxu0 0.0
      %3529 = vmatprep.subr.mxu0 0.0
      %3530 = vmatpush1.msra.mxu0 0.0
      %3531 = vmatprep.subr.mxu0 0.0
      %3532 = vmatpush1.msra.mxu0 0.0
      %3533 = vmatprep.subr.mxu0 0.0
      %3534 = vmatpush1.msra.mxu0 0.0
      %3535 = vmatprep.subr.mxu0 0.0
      %3536 = vmatpush1.msra.mxu0 0.0
      %3537 = vmatprep.subr.mxu0 0.0
      %3538 = vmatpush1.msra.mxu0 0.0
      %3539 = vmatprep.subr.mxu0 0.0
      %3540 = vmatpush1.msra.mxu0 0.0
      %3541 = vmatprep.mubr.f32.mxu0 0.0
      %3542 = vmatmul.mubr.f32.gmra.mrb[0].mxu0 %v3166
      %v3543 = vpop.f32.mrb[0].mxu0
      %v3544 = vadd.f32 0.0, %v3543
      %v3545 = vpop.f32.mrb[0].mxu0
      %3546 = vmatprep.mubr.f32.mxu0 0.0
      %3547 = vmatmul.mubr.f32.gmra.mrb[0].mxu0 %v3169
      %v3548 = vpop.f32.mrb[0].mxu0
      %v3549 = vadd.f32 0.0, %v3548
      %v3550 = vpop.f32.mrb[0].mxu0
      %3551 = vdwg.mxu0
      %v3553 = vsel %vm380, %v3549, 0
      %3555 = vmatprep.subr.mxu0 0.0
      %3556 = vmatpush1.msra.mxu0 %v3544
      %3557 = vmatprep.subr.mxu0 0.0
      %3558 = vmatpush1.msra.mxu0 %v3553
      %3559 = vmatprep.subr.mxu0 0.0
      %3560 = vmatpush1.msra.mxu0 0.0
      %3561 = vmatprep.subr.mxu0 0.0
      %3562 = vmatpush1.msra.mxu0 0.0
      %3563 = vmatprep.subr.mxu0 0.0
      %3564 = vmatpush1.msra.mxu0 0.0
      %3565 = vmatprep.subr.mxu0 0.0
      %3566 = vmatpush1.msra.mxu0 0.0
      %3567 = vmatprep.subr.mxu0 0.0
      %3568 = vmatpush1.msra.mxu0 0.0
      %3569 = vmatprep.subr.mxu0 0.0
      %3570 = vmatpush1.msra.mxu0 0.0
      %3571 = vmatprep.subr.mxu0 0.0
      %3572 = vmatpush1.msra.mxu0 0.0
      %3573 = vmatprep.subr.mxu0 0.0
      %3574 = vmatpush1.msra.mxu0 0.0
      %3575 = vmatprep.subr.mxu0 0.0
      %3576 = vmatpush1.msra.mxu0 0.0
      %3577 = vmatprep.subr.mxu0 0.0
      %3578 = vmatpush1.msra.mxu0 0.0
      %3579 = vmatprep.subr.mxu0 0.0
      %3580 = vmatpush1.msra.mxu0 0.0
      %3581 = vmatprep.subr.mxu0 0.0
      %3582 = vmatpush1.msra.mxu0 0.0
      %3583 = vmatprep.subr.mxu0 0.0
      %3584 = vmatpush1.msra.mxu0 0.0
      %3585 = vmatprep.subr.mxu0 0.0
      %3586 = vmatpush1.msra.mxu0 0.0
      %3587 = vmatprep.subr.mxu0 0.0
      %3588 = vmatpush1.msra.mxu0 0.0
      %3589 = vmatprep.subr.mxu0 0.0
      %3590 = vmatpush1.msra.mxu0 0.0
      %3591 = vmatprep.subr.mxu0 0.0
      %3592 = vmatpush1.msra.mxu0 0.0
      %3593 = vmatprep.subr.mxu0 0.0
      %3594 = vmatpush1.msra.mxu0 0.0
      %3595 = vmatprep.subr.mxu0 0.0
      %3596 = vmatpush1.msra.mxu0 0.0
      %3597 = vmatprep.subr.mxu0 0.0
      %3598 = vmatpush1.msra.mxu0 0.0
      %3599 = vmatprep.subr.mxu0 0.0
      %3600 = vmatpush1.msra.mxu0 0.0
      %3601 = vmatprep.subr.mxu0 0.0
      %3602 = vmatpush1.msra.mxu0 0.0
      %3603 = vmatprep.subr.mxu0 0.0
      %3604 = vmatpush1.msra.mxu0 0.0
      %3605 = vmatprep.subr.mxu0 0.0
      %3606 = vmatpush1.msra.mxu0 0.0
      %3607 = vmatprep.subr.mxu0 0.0
      %3608 = vmatpush1.msra.mxu0 0.0
      %3609 = vmatprep.subr.mxu0 0.0
      %3610 = vmatpush1.msra.mxu0 0.0
      %3611 = vmatprep.subr.mxu0 0.0
      %3612 = vmatpush1.msra.mxu0 0.0
      %3613 = vmatprep.subr.mxu0 0.0
      %3614 = vmatpush1.msra.mxu0 0.0
      %3615 = vmatprep.subr.mxu0 0.0
      %3616 = vmatpush1.msra.mxu0 0.0
      %3617 = vmatprep.subr.mxu0 0.0
      %3618 = vmatpush1.msra.mxu0 0.0
      %3619 = vmatprep.mubr.f32.mxu0 0.0
      %3620 = vmatmul.mubr.f32.gmra.mrb[0].mxu0 %v619
      %v3621 = vpop.f32.mrb[0].mxu0
      %v3622 = vadd.f32 0.0, %v3621
      %v3623 = vpop.f32.mrb[0].mxu0
      %3624 = vmatprep.mubr.f32.mxu0 0.0
      %3625 = vmatmul.mubr.f32.gmra.mrb[0].mxu0 %v622
      %v3626 = vpop.f32.mrb[0].mxu0
      %v3627 = vadd.f32 0.0, %v3626
      %v3628 = vpop.f32.mrb[0].mxu0
      %3629 = vdwg.mxu0
      %v3630 = vadd.f32 %v3469, %v3622
      %v3631 = vadd.f32 %v3474, %v3627
      %v3632 = vadd.f32 %v3630, %v707
      %v3633 = vadd.f32 %v3631, %v712
      %v3634 = vand.u32 2147483647, %v3633
      %v3635 = vsub.f32 0.0, %v3634
      %v3636 = vmul.f32 %v3635, 1.442695
      %v3637 = vpow.pop %v3636
      %vm3638 = vcmp.ge.f32.partialorder %v3633, 0.0
      %v3639 = vsel %vm3638, 1.0, %v3637
      %v3640 = vadd.f32 %v3637, 1.0
      %v3641 = vrcp.pop %v3640
      %v3642 = vmul.f32 %v3639, %v3641
      %v3643 = vmul.f32 %v3632, %v3642
      %3645 = vrot.lane.b32.xlu0 %v3643, 42
      %v3646 = vpop.permute.xlu0 %3645
      %vm3648 = vcmask 400720
      %3649 = vst.msk [vmem:[%s195] sm:$0xff] %vm3648, %v3646
      %p3650 = scmp.lt.s32.totalorder %s15, 1
      %s3651 = scalar_select %p3650, %s15, 1
      %s3652 = smul.addr %s3651, 8
      %s3653 = scalar_lea.vmem %s4, %s3652
      // Predicated region
      $region37: #{glu_conv2d.1} parent=35 // pred_check
        %p3654 = pneg %p122
      $region38: #{glu_conv2d.1} parent=35 // pred_check_branch
        %3656 = sbr.rel (%p3654) target = $region40
      $region39: #{glu_conv2d.1} parent=35 // pred_region
        _
      $region40: #{glu_conv2d.1} parent=35 // pred_fallthru
        _
    $region36: #{glu_conv2d.1} parent=5 // pred_fallthru
      _
    %p3657 = scmp.le.s32.totalorder 2, %s10
    // Predicated region
    $region41: #{glu_conv2d.1} parent=5 // pred_check
      %p3658 = pneg %p3657
    $region42: #{glu_conv2d.1} parent=5 // pred_check_branch
      %3660 = sbr.rel (%p3658) target = $region44
    $region43: #{glu_conv2d.1} parent=5 // pred_region
      %s3661 = ssub.s32 %s10, 2
      // Predicated region
      $region45: #{glu_conv2d.1} parent=43 // pred_check
        %p3662 = pneg %p128
      $region46: #{glu_conv2d.1} parent=43 // pred_check_branch
        %3664 = sbr.rel (%p3662) target = $region48
      $region47: #{glu_conv2d.1} parent=43 // pred_region
        %p3665 = scmp.lt.s32.totalorder %s16, 1
        %s3666 = scalar_select %p3665, %s16, 1
        %s3667 = smul.addr %s3666, 8
        %s3668 = scalar_lea.vmem %s4, %s3667
      $region48: #{glu_conv2d.1} parent=43 // pred_fallthru
        _
    $region44: #{glu_conv2d.1} parent=5 // pred_fallthru
      _
  $region6: #{glu_conv2d.1} parent=0 // loop_footer
    %s14 = sadd.s32 1, %s10
  $region7: #{glu_conv2d.1} parent=0 // loop_footer_branch
    %9 = sbr.rel target = $region3
  $region8: #{glu_conv2d.1} parent=0 // loop_exit
    _

</llo_original>
